<compile_context>
chip_gen: v5e
topology: v5e:2x2
jax: 0.10.0
libtpu: 0.0.40
codegen_flags: <defaults>
</compile_context>

<pallas_src>
import functools
import math

import jax
import jax.numpy as jnp
from jax.experimental import pallas as pl
from jax.experimental.pallas import tpu as pltpu


# --------------------------------------------------------------------------- kernel

def _window_attn_kernel(*refs, num_heads, head_dim, block_windows, has_mask,
                        return_attn):
    (x_ref, q_w_ref, q_b_ref, k_w_ref, k_b_ref, v_w_ref, v_b_ref,
     bias_ref) = refs[:8]
    i = 8
    mask_ref = None
    if has_mask:
        mask_ref = refs[i]
        i += 1
    proj_w_ref = refs[i]
    proj_b_ref = refs[i + 1]
    i += 2
    out_ref = refs[i]
    i += 1
    attn_ref = refs[i] if return_attn else None
    y_ref = refs[-1]                      # (BW, N, C) bf16 VMEM scratch (merged heads)

    BW = block_windows
    N = x_ref.shape[1]
    H, D = num_heads, head_dim
    C = H * D
    R = BW * N

    x2 = x_ref[...].astype(jnp.bfloat16).reshape(R, C)

    # ---- Q/K/V projections: three full-width MXU matmuls (head scale folded into Q).
    # Cast each result to bf16 right away so the f32 copies are never live together.
    q = (jnp.dot(x2, q_w_ref[...], preferred_element_type=jnp.float32)
         + q_b_ref[...]).astype(jnp.bfloat16).reshape(BW, N, C)
    k = (jnp.dot(x2, k_w_ref[...], preferred_element_type=jnp.float32)
         + k_b_ref[...]).astype(jnp.bfloat16).reshape(BW, N, C)
    v = (jnp.dot(x2, v_w_ref[...], preferred_element_type=jnp.float32)
         + v_b_ref[...]).astype(jnp.bfloat16).reshape(BW, N, C)

    mask = mask_ref[...] if has_mask else None            # (BW, N, N) f32 or None

    for h in range(H):      # static unroll; every matmul stays batched over BW windows
        lo = h * D
        hi = lo + D
        # scores: contract head_dim directly (no materialised K^T), f32 accumulation
        s = jnp.einsum('bnd,bmd->bnm', q[:, :, lo:hi], k[:, :, lo:hi],
                       preferred_element_type=jnp.float32)          # (BW, N, N)
        s = s + bias_ref[h]                                          # rel-pos bias (N, N)
        if mask is not None:
            s = s + mask                                             # additive window mask
        # numerically stable softmax in f32 (EUP approx reciprocal for the denominator)
        s = s - jnp.max(s, axis=-1, keepdims=True)
        p = jnp.exp(s)
        p = p * pl.reciprocal(jnp.sum(p, axis=-1, keepdims=True), approx=True)

        if return_attn:
            attn_ref[:, h, :, :] = p.astype(attn_ref.dtype)

        av = jnp.einsum('bnm,bmd->bnd', p.astype(jnp.bfloat16), v[:, :, lo:hi],
                        preferred_element_type=jnp.float32)          # (BW, N, D)
        # merge heads by storing into the VMEM scratch at this head's lane offset
        # (replaces the old H-way jnp.concatenate).
        y_ref[:, :, lo:hi] = av.astype(jnp.bfloat16)

    # ---- output projection: one full-width MXU matmul for the whole block ----
    y = y_ref[...].reshape(R, C)
    out = (jnp.dot(y, proj_w_ref[...], preferred_element_type=jnp.float32)
           + proj_b_ref[...])
    out_ref[...] = out.reshape(BW, N, C).astype(out_ref.dtype)
    # TODO(synk): attn_drop / proj_drop are identity at p=0.0 (module default); not
    # implemented here.


# ----------------------------------------------------------------- block / VMEM sizing

def _default_vmem_limit_bytes():
    """Half of the detected physical VMEM (64 MiB on v5e/v6e, 32 MiB on v7x),
    with a conservative 32 MiB fallback when the query is unavailable."""
    cap = 64 * 1024 * 1024
    try:
        info = pltpu.get_tpu_info()
        for name in ("vmem_capacity_bytes", "vmem_size_bytes", "vmem_bytes"):
            val = getattr(info, name, None)
            if val:
                cap = int(val)
                break
    except Exception:
        pass
    return min(cap // 2, 96 * 1024 * 1024)


def _estimate_step_vmem_bytes(BW, N, C, H, has_mask, return_attn):
    rows = BW * N
    b = 2 * rows * C * 4                        # x block (f32, double-buffered)
    b += 2 * rows * C * 4                       # out block
    if return_attn:
        b += 2 * BW * H * N * N * 4             # attn block
    if has_mask:
        b += 2 * BW * N * N * 4                 # mask block
    b += 2 * H * N * N * 4                      # rel bias (constant index, budget 2 bufs)
    b += 2 * (4 * C * C * 2 + 4 * C * 4)        # q/k/v/proj weights (bf16) + biases
    b += rows * C * 2                           # merged-head scratch (bf16)
    b += 4 * rows * C * 2 + 3 * BW * N * N * 4  # transient x2/q/k/v + per-head s/p
    return b


def _pick_block_windows(B_, N, C, H, has_mask, return_attn, vmem_limit_bytes):
    """Windows per grid step: target ~256-512 rows (amortise the ~0.35us/step pipeline
    overhead and feed the 256-wide MXU), stay inside the VMEM budget, and keep >= 2
    (preferably an even number of) grid steps so the 'parallel' window axis can shard
    across both v7x TensorCores."""
    divisors = [d for d in range(1, B_ + 1) if B_ % d == 0]
    budget = int(0.85 * vmem_limit_bytes)
    feasible = [d for d in divisors
                if _estimate_step_vmem_bytes(d, N, C, H, has_mask, return_attn) <= budget]
    if not feasible:
        feasible = [1]

    def key(bw):
        rows = bw * N
        nblk = B_ // bw
        return (nblk >= 2,            # at least two blocks -> both TCs get work
                rows >= 256,          # big-enough MXU / DMA tiles
                nblk % 2 == 0,        # balanced across v7x's 2 TensorCores
                rows <= 1024,         # diminishing returns past ~1k rows
                -abs(rows - 512))     # prefer ~512 rows per step

    return max(feasible, key=key)


# --------------------------------------------------------------------------- wrapper

def window_attention(x, params, rel_bias, mask=None, *, qk_scale=None,
                     return_attn=True, attn_dtype=jnp.float32,
                     block_windows=None, vmem_limit_bytes=None):
    """Swin WindowAttention forward.

    x:        (B_, N, C) window tokens, B_ = num_windows * B (f32 or bf16).
    params:   dict with 'qkv_w' (C, 3C), 'qkv_b' (3C,), 'proj_w' (C, C), 'proj_b' (C,)
              stored input-major (y = x @ W + b).
    rel_bias: (H, N, N) relative-position bias, already gathered per head.
    mask:     (nW, N, N) additive 0/-inf window mask, or None.

    Returns (out, attn) like the PyTorch module; attn is None when return_attn=False
    (fast path that skips the largest HBM writeback).
    """
    B_, N, C = x.shape
    num_heads = rel_bias.shape[0]
    head_dim = C // num_heads
    scale = qk_scale if qk_scale is not None else head_dim ** (-0.5)
    has_mask = mask is not None

    # ---- one-time parameter prep (constant transforms, done by XLA outside) ----
    qkv_w = params["qkv_w"].astype(jnp.float32)
    qkv_b = params["qkv_b"].astype(jnp.float32)
    q_w = (qkv_w[:, :C] * scale).astype(jnp.bfloat16)        # head scale folded into Q
    k_w = qkv_w[:, C:2 * C].astype(jnp.bfloat16)
    v_w = qkv_w[:, 2 * C:].astype(jnp.bfloat16)
    q_b = (qkv_b[:C] * scale).reshape(1, C)
    k_b = qkv_b[C:2 * C].reshape(1, C)
    v_b = qkv_b[2 * C:].reshape(1, C)
    proj_w = params["proj_w"].astype(jnp.bfloat16)
    proj_b = params["proj_b"].astype(jnp.float32).reshape(1, C)
    rel_bias_f32 = rel_bias.astype(jnp.float32)

    if vmem_limit_bytes is None:
        vmem_limit_bytes = _default_vmem_limit_bytes()
    if block_windows is None:
        block_windows = _pick_block_windows(B_, N, C, num_heads, has_mask,
                                            return_attn, vmem_limit_bytes)
    BW = block_windows
    assert B_ % BW == 0, f"block_windows={BW} must divide B_={B_}"
    num_blocks = B_ // BW

    in_specs = [
        pl.BlockSpec((BW, N, C), lambda g: (g, 0, 0)),                  # x
        pl.BlockSpec((C, C), lambda g: (0, 0)),                         # q_w (resident)
        pl.BlockSpec((1, C), lambda g: (0, 0)),                         # q_b
        pl.BlockSpec((C, C), lambda g: (0, 0)),                         # k_w (resident)
        pl.BlockSpec((1, C), lambda g: (0, 0)),                         # k_b
        pl.BlockSpec((C, C), lambda g: (0, 0)),                         # v_w (resident)
        pl.BlockSpec((1, C), lambda g: (0, 0)),                         # v_b
        pl.BlockSpec((num_heads, N, N), lambda g: (0, 0, 0)),           # rel bias (resident)
    ]
    args = [x, q_w, q_b, k_w, k_b, v_w, v_b, rel_bias_f32]

    if has_mask:
        nW = mask.shape[0]
        P = (nW * BW) // math.gcd(nW, BW)                               # lcm(nW, BW)
        mask_tiled = jnp.tile(mask.astype(jnp.float32), (P // nW, 1, 1))  # (P, N, N)
        n_mask_blocks = P // BW
        in_specs.append(pl.BlockSpec((BW, N, N),
                                     lambda g: (g % n_mask_blocks, 0, 0)))
        args.append(mask_tiled)

    in_specs += [
        pl.BlockSpec((C, C), lambda g: (0, 0)),                         # proj_w (resident)
        pl.BlockSpec((1, C), lambda g: (0, 0)),                         # proj_b
    ]
    args += [proj_w, proj_b]

    out_block = pl.BlockSpec((BW, N, C), lambda g: (g, 0, 0))
    if return_attn:
        out_specs = [out_block,
                     pl.BlockSpec((BW, num_heads, N, N), lambda g: (g, 0, 0, 0))]
        out_shape = (jax.ShapeDtypeStruct((B_, N, C), x.dtype),
                     jax.ShapeDtypeStruct((B_, num_heads, N, N), attn_dtype))
    else:
        out_specs = out_block
        out_shape = jax.ShapeDtypeStruct((B_, N, C), x.dtype)

    kernel = functools.partial(
        _window_attn_kernel, num_heads=num_heads, head_dim=head_dim,
        block_windows=BW, has_mask=has_mask, return_attn=return_attn)

    grid_spec = pltpu.PrefetchScalarGridSpec(
        num_scalar_prefetch=0,
        grid=(num_blocks,),
        in_specs=in_specs,
        out_specs=out_specs,
        scratch_shapes=[pltpu.VMEM((BW, N, C), jnp.bfloat16)],          # merged-heads y
    )

    result = pl.pallas_call(
        kernel,
        out_shape=out_shape,
        grid_spec=grid_spec,
        compiler_params=pltpu.CompilerParams(
            dimension_semantics=("parallel",),      # shard window blocks across 2 TCs
            vmem_limit_bytes=int(vmem_limit_bytes)),
    )(*args)

    if return_attn:
        out, attn = result
        return out, attn
    return result, None


# ---------------- parameter / buffer construction (glue, plain JAX) ----------------

def make_relative_position_index(window_size):
    Wh, Ww = window_size
    coords_h = jnp.arange(Wh)
    coords_w = jnp.arange(Ww)
    coords = jnp.stack(jnp.meshgrid(coords_h, coords_w, indexing="ij"))      # (2, Wh, Ww)
    coords_flatten = coords.reshape(2, -1)                                   # (2, N)
    rel = coords_flatten[:, :, None] - coords_flatten[:, None, :]            # (2, N, N)
    rel = jnp.transpose(rel, (1, 2, 0))                                      # (N, N, 2)
    rel = rel.at[:, :, 0].add(Wh - 1)
    rel = rel.at[:, :, 1].add(Ww - 1)
    rel = rel.at[:, :, 0].multiply(2 * Ww - 1)
    return rel.sum(-1)                                                       # (N, N) int32


def init_params(key, dim, window_size, num_heads):
    Wh, Ww = window_size
    k1, k2, k3, k4, k5 = jax.random.split(key, 5)
    table = 0.02 * jax.random.truncated_normal(
        k1, -2.0, 2.0, ((2 * Wh - 1) * (2 * Ww - 1), num_heads), jnp.float32)
    params = {
        "qkv_w": jax.random.normal(k2, (dim, 3 * dim), jnp.float32) * (1.0 / math.sqrt(dim)),
        "qkv_b": jax.random.normal(k3, (3 * dim,), jnp.float32) * 0.02,
        "proj_w": jax.random.normal(k4, (dim, dim), jnp.float32) * (1.0 / math.sqrt(dim)),
        "proj_b": jax.random.normal(k5, (dim,), jnp.float32) * 0.02,
    }
    rel_index = make_relative_position_index(window_size)                    # (N, N)
    N = Wh * Ww
    rel_bias = table[rel_index.reshape(-1)].reshape(N, N, num_heads)
    rel_bias = jnp.transpose(rel_bias, (2, 0, 1))                            # (H, N, N)
    return params, rel_bias


def reference_window_attention(x, params, rel_bias, num_heads, mask=None,
                               qk_scale=None, match_kernel_precision=True):
    """Pure-JAX reference mirroring the PyTorch forward.  When
    match_kernel_precision=True the same bf16 operand rounding used by the kernel's
    MXU matmuls is applied, so the comparison tolerance stays tight."""
    B_, N, C = x.shape
    head_dim = C // num_heads
    scale = qk_scale if qk_scale is not None else head_dim ** (-0.5)

    def rnd(a):
        return a.astype(jnp.bfloat16).astype(jnp.float32) if match_kernel_precision else a

    col_scale = jnp.concatenate([jnp.full((C,), scale, jnp.float32),
                                 jnp.ones((2 * C,), jnp.float32)])
    qkv_w = rnd(params["qkv_w"].astype(jnp.float32) * col_scale[None, :])
    qkv_b = params["qkv_b"].astype(jnp.float32) * col_scale
    qkv = rnd(rnd(x) @ qkv_w + qkv_b)
    qkv = qkv.reshape(B_, N, 3, num_heads, head_dim).transpose(2, 0, 3, 1, 4)
    q, k, v = qkv[0], qkv[1], qkv[2]          # scale already folded into q
    attn = jnp.einsum("bhnd,bhmd->bhnm", q, k)
    attn = attn + rel_bias.astype(jnp.float32)[None]
    if mask is not None:
        nW = mask.shape[0]
        attn = (attn.reshape(B_ // nW, nW, num_heads, N, N)
                + mask.astype(jnp.float32)[None, :, None])
        attn = attn.reshape(-1, num_heads, N, N)
    attn = jax.nn.softmax(attn, axis=-1)
    y = jnp.einsum("bhnm,bhmd->bhnd", rnd(attn), v)
    y = y.transpose(0, 2, 1, 3).reshape(B_, N, C)
    out = rnd(y) @ rnd(params["proj_w"].astype(jnp.float32)) + params["proj_b"].astype(jnp.float32)
    return out, attn


if __name__ == "__main__":
    dim = 32
    num_heads = 4
    window_size = (4, 4)          # N = 16
    N = window_size[0] * window_size[1]

    key = jax.random.PRNGKey(0)
    kp, kx, km, kx2, km2 = jax.random.split(key, 5)
    params, rel_bias = init_params(kp, dim, window_size, num_heads)

    # --- config 1: B=4 images x nW=4 windows -> B_=16, auto block_windows ---
    nW = 4
    B_ = 4 * nW
    x = jax.random.normal(kx, (B_, N, dim), jnp.float32)
    mask = jnp.where(jax.random.bernoulli(km, 0.2, (nW, N, N)), -100.0, 0.0)
    mask = mask.astype(jnp.float32)

    out, attn = window_attention(x, params, rel_bias, mask=mask)
    out, attn = jax.block_until_ready((out, attn))
    ref_out, ref_attn = reference_window_attention(x, params, rel_bias, num_heads, mask=mask)
    assert bool(jnp.allclose(out, ref_out, atol=2e-2, rtol=2e-2)), \
        float(jnp.max(jnp.abs(out - ref_out)))
    assert bool(jnp.allclose(attn, ref_attn, atol=2e-2, rtol=2e-2)), \
        float(jnp.max(jnp.abs(attn - ref_attn)))

    # mask=None path
    out2, attn2 = window_attention(x, params, rel_bias, mask=None)
    out2, attn2 = jax.block_until_ready((out2, attn2))
    ref_out2, ref_attn2 = reference_window_attention(x, params, rel_bias, num_heads, mask=None)
    assert bool(jnp.allclose(out2, ref_out2, atol=2e-2, rtol=2e-2))
    assert bool(jnp.allclose(attn2, ref_attn2, atol=2e-2, rtol=2e-2))

    # fast path that skips the attention-probability writeback entirely
    out3, attn3 = window_attention(x, params, rel_bias, mask=mask, return_attn=False)
    out3 = jax.block_until_ready(out3)
    assert attn3 is None
    assert bool(jnp.allclose(out3, ref_out, atol=2e-2, rtol=2e-2))

    # --- config 2: nW=6 with explicit block_windows=4 (neither divides the other)
    #     and num_blocks > n_mask_blocks -> exercises the lcm-based mask indexing ---
    nW2 = 6
    B_2 = 4 * nW2
    x2 = jax.random.normal(kx2, (B_2, N, dim), jnp.float32)
    mask2 = jnp.where(jax.random.bernoulli(km2, 0.2, (nW2, N, N)), -100.0, 0.0)
    mask2 = mask2.astype(jnp.float32)
    out4, attn4 = window_attention(x2, params, rel_bias, mask=mask2, block_windows=4)
    out4, attn4 = jax.block_until_ready((out4, attn4))
    ref_out4, ref_attn4 = reference_window_attention(x2, params, rel_bias, num_heads, mask=mask2)
    assert bool(jnp.allclose(out4, ref_out4, atol=2e-2, rtol=2e-2))
    assert bool(jnp.allclose(attn4, ref_attn4, atol=2e-2, rtol=2e-2))

    print("KERNEL_OK")
</pallas_src>

<mosaic_0001>
module attributes {stable_mosaic.version = 11 : i64} {
  func.func @_window_attn_kernel(%arg0: i32, %arg1: memref<8x16x32xf32, #tpu.memory_space<vmem>>, %arg2: memref<32x32xbf16, #tpu.memory_space<vmem>>, %arg3: memref<1x32xf32, #tpu.memory_space<vmem>>, %arg4: memref<32x32xbf16, #tpu.memory_space<vmem>>, %arg5: memref<1x32xf32, #tpu.memory_space<vmem>>, %arg6: memref<32x32xbf16, #tpu.memory_space<vmem>>, %arg7: memref<1x32xf32, #tpu.memory_space<vmem>>, %arg8: memref<4x16x16xf32, #tpu.memory_space<vmem>>, %arg9: memref<8x16x16xf32, #tpu.memory_space<vmem>>, %arg10: memref<32x32xbf16, #tpu.memory_space<vmem>>, %arg11: memref<1x32xf32, #tpu.memory_space<vmem>>, %arg12: memref<8x16x32xf32, #tpu.memory_space<vmem>>, %arg13: memref<8x4x16x16xf32, #tpu.memory_space<vmem>>, %arg14: memref<8x16x32xbf16, #tpu.memory_space<vmem>>) attributes {dimension_semantics = [#tpu.dimension_semantics<parallel>], iteration_bounds = array<i64: 2>, scalar_prefetch = 0 : i64, scratch_operands = 1 : i64, tpu.core_type = #tpu.core_type<tc>, window_params = [{transform_indices = @transform_0, window_bounds = array<i64: 8, 16, 32>}, {pipeline_mode = #tpu.pipeline_mode<synchronous>, transform_indices = @transform_1, window_bounds = array<i64: 32, 32>}, {pipeline_mode = #tpu.pipeline_mode<synchronous>, transform_indices = @transform_2, window_bounds = array<i64: 1, 32>}, {pipeline_mode = #tpu.pipeline_mode<synchronous>, transform_indices = @transform_3, window_bounds = array<i64: 32, 32>}, {pipeline_mode = #tpu.pipeline_mode<synchronous>, transform_indices = @transform_4, window_bounds = array<i64: 1, 32>}, {pipeline_mode = #tpu.pipeline_mode<synchronous>, transform_indices = @transform_5, window_bounds = array<i64: 32, 32>}, {pipeline_mode = #tpu.pipeline_mode<synchronous>, transform_indices = @transform_6, window_bounds = array<i64: 1, 32>}, {pipeline_mode = #tpu.pipeline_mode<synchronous>, transform_indices = @transform_7, window_bounds = array<i64: 4, 16, 16>}, {transform_indices = @transform_8, window_bounds = array<i64: 8, 16, 16>}, {pipeline_mode = #tpu.pipeline_mode<synchronous>, transform_indices = @transform_9, window_bounds = array<i64: 32, 32>}, {pipeline_mode = #tpu.pipeline_mode<synchronous>, transform_indices = @transform_10, window_bounds = array<i64: 1, 32>}, {transform_indices = @transform_11, window_bounds = array<i64: 8, 16, 32>}, {transform_indices = @transform_12, window_bounds = array<i64: 8, 4, 16, 16>}]} {
    %c0 = arith.constant 0 : index
    %c0_0 = arith.constant 0 : index
    %c0_1 = arith.constant 0 : index
    %0 = vector.load %arg1[%c0, %c0_0, %c0_1] : memref<8x16x32xf32, #tpu.memory_space<vmem>>, vector<8x16x32xf32>
    %1 = arith.truncf %0 : vector<8x16x32xf32> to vector<8x16x32xbf16>
    %2 = vector.shape_cast %1 : vector<8x16x32xbf16> to vector<128x32xbf16>
    %c0_2 = arith.constant 0 : index
    %c0_3 = arith.constant 0 : index
    %3 = vector.load %arg2[%c0_2, %c0_3] : memref<32x32xbf16, #tpu.memory_space<vmem>>, vector<32x32xbf16>
    %cst = arith.constant dense<0.000000e+00> : vector<128x32xf32>
    %4 = tpu.matmul %2, %3, %cst {dimension_numbers = #tpu.dot_dimension_numbers<[1], [0], [0], [1], [0, 0, 1, 1], [], []>} : vector<128x32xbf16>, vector<32x32xbf16>, vector<128x32xf32> -> vector<128x32xf32>
    %c0_4 = arith.constant 0 : index
    %c0_5 = arith.constant 0 : index
    %5 = vector.load %arg3[%c0_4, %c0_5] : memref<1x32xf32, #tpu.memory_space<vmem>>, vector<1x32xf32>
    %6 = vector.broadcast %5 : vector<1x32xf32> to vector<128x32xf32>
    %7 = arith.addf %4, %6 : vector<128x32xf32>
    %8 = arith.truncf %7 : vector<128x32xf32> to vector<128x32xbf16>
    %9 = vector.shape_cast %8 : vector<128x32xbf16> to vector<8x16x32xbf16>
    %c0_6 = arith.constant 0 : index
    %c0_7 = arith.constant 0 : index
    %10 = vector.load %arg4[%c0_6, %c0_7] : memref<32x32xbf16, #tpu.memory_space<vmem>>, vector<32x32xbf16>
    %cst_8 = arith.constant dense<0.000000e+00> : vector<128x32xf32>
    %11 = tpu.matmul %2, %10, %cst_8 {dimension_numbers = #tpu.dot_dimension_numbers<[1], [0], [0], [1], [0, 0, 1, 1], [], []>} : vector<128x32xbf16>, vector<32x32xbf16>, vector<128x32xf32> -> vector<128x32xf32>
    %c0_9 = arith.constant 0 : index
    %c0_10 = arith.constant 0 : index
    %12 = vector.load %arg5[%c0_9, %c0_10] : memref<1x32xf32, #tpu.memory_space<vmem>>, vector<1x32xf32>
    %13 = vector.broadcast %12 : vector<1x32xf32> to vector<128x32xf32>
    %14 = arith.addf %11, %13 : vector<128x32xf32>
    %15 = arith.truncf %14 : vector<128x32xf32> to vector<128x32xbf16>
    %16 = vector.shape_cast %15 : vector<128x32xbf16> to vector<8x16x32xbf16>
    %c0_11 = arith.constant 0 : index
    %c0_12 = arith.constant 0 : index
    %17 = vector.load %arg6[%c0_11, %c0_12] : memref<32x32xbf16, #tpu.memory_space<vmem>>, vector<32x32xbf16>
    %cst_13 = arith.constant dense<0.000000e+00> : vector<128x32xf32>
    %18 = tpu.matmul %2, %17, %cst_13 {dimension_numbers = #tpu.dot_dimension_numbers<[1], [0], [0], [1], [0, 0, 1, 1], [], []>} : vector<128x32xbf16>, vector<32x32xbf16>, vector<128x32xf32> -> vector<128x32xf32>
    %c0_14 = arith.constant 0 : index
    %c0_15 = arith.constant 0 : index
    %19 = vector.load %arg7[%c0_14, %c0_15] : memref<1x32xf32, #tpu.memory_space<vmem>>, vector<1x32xf32>
    %20 = vector.broadcast %19 : vector<1x32xf32> to vector<128x32xf32>
    %21 = arith.addf %18, %20 : vector<128x32xf32>
    %22 = arith.truncf %21 : vector<128x32xf32> to vector<128x32xbf16>
    %23 = vector.shape_cast %22 : vector<128x32xbf16> to vector<8x16x32xbf16>
    %c0_16 = arith.constant 0 : index
    %c0_17 = arith.constant 0 : index
    %c0_18 = arith.constant 0 : index
    %24 = vector.load %arg9[%c0_16, %c0_17, %c0_18] : memref<8x16x16xf32, #tpu.memory_space<vmem>>, vector<8x16x16xf32>
    %25 = vector.extract_strided_slice %9 {offsets = [0, 0, 0], sizes = [8, 16, 8], strides = [1, 1, 1]} : vector<8x16x32xbf16> to vector<8x16x8xbf16>
    %26 = vector.extract_strided_slice %16 {offsets = [0, 0, 0], sizes = [8, 16, 8], strides = [1, 1, 1]} : vector<8x16x32xbf16> to vector<8x16x8xbf16>
    "tpu.trace_start"() <{level = 10 : i32, message = "bnd,bmd->bnm"}> : () -> ()
    %cst_19 = arith.constant dense<0.000000e+00> : vector<8x16x16xf32>
    %27 = tpu.matmul %25, %26, %cst_19 {dimension_numbers = #tpu.dot_dimension_numbers<[2], [2], [1], [1], [0, 0, 0, 1, 1, 1], [0], [0]>} : vector<8x16x8xbf16>, vector<8x16x8xbf16>, vector<8x16x16xf32> -> vector<8x16x16xf32>
    "tpu.trace_stop"() : () -> ()
    %c0_20 = arith.constant 0 : index
    %c0_21 = arith.constant 0 : index
    %c0_22 = arith.constant 0 : index
    %28 = vector.load %arg8[%c0_20, %c0_21, %c0_22] : memref<4x16x16xf32, #tpu.memory_space<vmem>>, vector<1x16x16xf32>
    %29 = vector.shape_cast %28 : vector<1x16x16xf32> to vector<16x16xf32>
    %30 = vector.shape_cast %29 : vector<16x16xf32> to vector<1x16x16xf32>
    %31 = vector.broadcast %30 : vector<1x16x16xf32> to vector<8x16x16xf32>
    %32 = arith.addf %27, %31 : vector<8x16x16xf32>
    %33 = arith.addf %32, %24 : vector<8x16x16xf32>
    %cst_23 = arith.constant dense<0xFF800000> : vector<8x16xf32>
    %34 = vector.multi_reduction <maximumf>, %33, %cst_23 [2] : vector<8x16x16xf32> to vector<8x16xf32>
    %35 = vector.shape_cast %34 : vector<8x16xf32> to vector<8x16x1xf32>
    %36 = vector.broadcast %35 : vector<8x16x1xf32> to vector<8x16x16xf32>
    %37 = arith.subf %33, %36 : vector<8x16x16xf32>
    %38 = math.exp %37 : vector<8x16x16xf32>
    %cst_24 = arith.constant dense<0.000000e+00> : vector<8x16xf32>
    %39 = vector.multi_reduction <add>, %38, %cst_24 [2] : vector<8x16x16xf32> to vector<8x16xf32>
    %40 = vector.shape_cast %39 : vector<8x16xf32> to vector<8x16x1xf32>
    %41 = tpu.reciprocal %40 {approx = true} : vector<8x16x1xf32> -> vector<8x16x1xf32>
    %42 = vector.broadcast %41 : vector<8x16x1xf32> to vector<8x16x16xf32>
    %43 = arith.mulf %38, %42 : vector<8x16x16xf32>
    %c0_25 = arith.constant 0 : index
    %c0_26 = arith.constant 0 : index
    %c0_27 = arith.constant 0 : index
    %c0_28 = arith.constant 0 : index
    %44 = vector.load %arg13[%c0_25, %c0_26, %c0_27, %c0_28] : memref<8x4x16x16xf32, #tpu.memory_space<vmem>>, vector<8x1x16x16xf32>
    %45 = vector.shape_cast %44 : vector<8x1x16x16xf32> to vector<8x16x16xf32>
    %46 = vector.shape_cast %43 : vector<8x16x16xf32> to vector<8x1x16x16xf32>
    tpu.vector_store %arg13[%c0_25, %c0_26, %c0_27, %c0_28], %46 {strides = array<i32>} : memref<8x4x16x16xf32, #tpu.memory_space<vmem>>, vector<8x1x16x16xf32>,
    %47 = arith.truncf %43 : vector<8x16x16xf32> to vector<8x16x16xbf16>
    %48 = vector.extract_strided_slice %23 {offsets = [0, 0, 0], sizes = [8, 16, 8], strides = [1, 1, 1]} : vector<8x16x32xbf16> to vector<8x16x8xbf16>
    "tpu.trace_start"() <{level = 10 : i32, message = "bnm,bmd->bnd"}> : () -> ()
    %cst_29 = arith.constant dense<0.000000e+00> : vector<8x16x8xf32>
    %49 = tpu.matmul %47, %48, %cst_29 {dimension_numbers = #tpu.dot_dimension_numbers<[2], [1], [1], [2], [0, 0, 0, 1, 1, 2], [0], [0]>} : vector<8x16x16xbf16>, vector<8x16x8xbf16>, vector<8x16x8xf32> -> vector<8x16x8xf32>
    "tpu.trace_stop"() : () -> ()
    %50 = arith.truncf %49 : vector<8x16x8xf32> to vector<8x16x8xbf16>
    %c0_30 = arith.constant 0 : index
    %c0_31 = arith.constant 0 : index
    %c0_32 = arith.constant 0 : index
    %51 = vector.load %arg14[%c0_30, %c0_31, %c0_32] : memref<8x16x32xbf16, #tpu.memory_space<vmem>>, vector<8x16x8xbf16>
    tpu.vector_store %arg14[%c0_30, %c0_31, %c0_32], %50 {strides = array<i32>} : memref<8x16x32xbf16, #tpu.memory_space<vmem>>, vector<8x16x8xbf16>,
    %52 = vector.extract_strided_slice %9 {offsets = [0, 0, 8], sizes = [8, 16, 8], strides = [1, 1, 1]} : vector<8x16x32xbf16> to vector<8x16x8xbf16>
    %53 = vector.extract_strided_slice %16 {offsets = [0, 0, 8], sizes = [8, 16, 8], strides = [1, 1, 1]} : vector<8x16x32xbf16> to vector<8x16x8xbf16>
    "tpu.trace_start"() <{level = 10 : i32, message = "bnd,bmd->bnm"}> : () -> ()
    %cst_33 = arith.constant dense<0.000000e+00> : vector<8x16x16xf32>
    %54 = tpu.matmul %52, %53, %cst_33 {dimension_numbers = #tpu.dot_dimension_numbers<[2], [2], [1], [1], [0, 0, 0, 1, 1, 1], [0], [0]>} : vector<8x16x8xbf16>, vector<8x16x8xbf16>, vector<8x16x16xf32> -> vector<8x16x16xf32>
    "tpu.trace_stop"() : () -> ()
    %c1 = arith.constant 1 : index
    %c0_34 = arith.constant 0 : index
    %c0_35 = arith.constant 0 : index
    %55 = vector.load %arg8[%c1, %c0_34, %c0_35] : memref<4x16x16xf32, #tpu.memory_space<vmem>>, vector<1x16x16xf32>
    %56 = vector.shape_cast %55 : vector<1x16x16xf32> to vector<16x16xf32>
    %57 = vector.shape_cast %56 : vector<16x16xf32> to vector<1x16x16xf32>
    %58 = vector.broadcast %57 : vector<1x16x16xf32> to vector<8x16x16xf32>
    %59 = arith.addf %54, %58 : vector<8x16x16xf32>
    %60 = arith.addf %59, %24 : vector<8x16x16xf32>
    %cst_36 = arith.constant dense<0xFF800000> : vector<8x16xf32>
    %61 = vector.multi_reduction <maximumf>, %60, %cst_36 [2] : vector<8x16x16xf32> to vector<8x16xf32>
    %62 = vector.shape_cast %61 : vector<8x16xf32> to vector<8x16x1xf32>
    %63 = vector.broadcast %62 : vector<8x16x1xf32> to vector<8x16x16xf32>
    %64 = arith.subf %60, %63 : vector<8x16x16xf32>
    %65 = math.exp %64 : vector<8x16x16xf32>
    %cst_37 = arith.constant dense<0.000000e+00> : vector<8x16xf32>
    %66 = vector.multi_reduction <add>, %65, %cst_37 [2] : vector<8x16x16xf32> to vector<8x16xf32>
    %67 = vector.shape_cast %66 : vector<8x16xf32> to vector<8x16x1xf32>
    %68 = tpu.reciprocal %67 {approx = true} : vector<8x16x1xf32> -> vector<8x16x1xf32>
    %69 = vector.broadcast %68 : vector<8x16x1xf32> to vector<8x16x16xf32>
    %70 = arith.mulf %65, %69 : vector<8x16x16xf32>
    %c0_38 = arith.constant 0 : index
    %c1_39 = arith.constant 1 : index
    %c0_40 = arith.constant 0 : index
    %c0_41 = arith.constant 0 : index
    %71 = vector.load %arg13[%c0_38, %c1_39, %c0_40, %c0_41] : memref<8x4x16x16xf32, #tpu.memory_space<vmem>>, vector<8x1x16x16xf32>
    %72 = vector.shape_cast %71 : vector<8x1x16x16xf32> to vector<8x16x16xf32>
    %73 = vector.shape_cast %70 : vector<8x16x16xf32> to vector<8x1x16x16xf32>
    tpu.vector_store %arg13[%c0_38, %c1_39, %c0_40, %c0_41], %73 {strides = array<i32>} : memref<8x4x16x16xf32, #tpu.memory_space<vmem>>, vector<8x1x16x16xf32>,
    %74 = arith.truncf %70 : vector<8x16x16xf32> to vector<8x16x16xbf16>
    %75 = vector.extract_strided_slice %23 {offsets = [0, 0, 8], sizes = [8, 16, 8], strides = [1, 1, 1]} : vector<8x16x32xbf16> to vector<8x16x8xbf16>
    "tpu.trace_start"() <{level = 10 : i32, message = "bnm,bmd->bnd"}> : () -> ()
    %cst_42 = arith.constant dense<0.000000e+00> : vector<8x16x8xf32>
    %76 = tpu.matmul %74, %75, %cst_42 {dimension_numbers = #tpu.dot_dimension_numbers<[2], [1], [1], [2], [0, 0, 0, 1, 1, 2], [0], [0]>} : vector<8x16x16xbf16>, vector<8x16x8xbf16>, vector<8x16x8xf32> -> vector<8x16x8xf32>
    "tpu.trace_stop"() : () -> ()
    %77 = arith.truncf %76 : vector<8x16x8xf32> to vector<8x16x8xbf16>
    %c0_43 = arith.constant 0 : index
    %c0_44 = arith.constant 0 : index
    %c8 = arith.constant 8 : index
    %78 = vector.load %arg14[%c0_43, %c0_44, %c8] : memref<8x16x32xbf16, #tpu.memory_space<vmem>>, vector<8x16x8xbf16>
    tpu.vector_store %arg14[%c0_43, %c0_44, %c8], %77 {strides = array<i32>} : memref<8x16x32xbf16, #tpu.memory_space<vmem>>, vector<8x16x8xbf16>,
    %79 = vector.extract_strided_slice %9 {offsets = [0, 0, 16], sizes = [8, 16, 8], strides = [1, 1, 1]} : vector<8x16x32xbf16> to vector<8x16x8xbf16>
    %80 = vector.extract_strided_slice %16 {offsets = [0, 0, 16], sizes = [8, 16, 8], strides = [1, 1, 1]} : vector<8x16x32xbf16> to vector<8x16x8xbf16>
    "tpu.trace_start"() <{level = 10 : i32, message = "bnd,bmd->bnm"}> : () -> ()
    %cst_45 = arith.constant dense<0.000000e+00> : vector<8x16x16xf32>
    %81 = tpu.matmul %79, %80, %cst_45 {dimension_numbers = #tpu.dot_dimension_numbers<[2], [2], [1], [1], [0, 0, 0, 1, 1, 1], [0], [0]>} : vector<8x16x8xbf16>, vector<8x16x8xbf16>, vector<8x16x16xf32> -> vector<8x16x16xf32>
    "tpu.trace_stop"() : () -> ()
    %c2 = arith.constant 2 : index
    %c0_46 = arith.constant 0 : index
    %c0_47 = arith.constant 0 : index
    %82 = vector.load %arg8[%c2, %c0_46, %c0_47] : memref<4x16x16xf32, #tpu.memory_space<vmem>>, vector<1x16x16xf32>
    %83 = vector.shape_cast %82 : vector<1x16x16xf32> to vector<16x16xf32>
    %84 = vector.shape_cast %83 : vector<16x16xf32> to vector<1x16x16xf32>
    %85 = vector.broadcast %84 : vector<1x16x16xf32> to vector<8x16x16xf32>
    %86 = arith.addf %81, %85 : vector<8x16x16xf32>
    %87 = arith.addf %86, %24 : vector<8x16x16xf32>
    %cst_48 = arith.constant dense<0xFF800000> : vector<8x16xf32>
    %88 = vector.multi_reduction <maximumf>, %87, %cst_48 [2] : vector<8x16x16xf32> to vector<8x16xf32>
    %89 = vector.shape_cast %88 : vector<8x16xf32> to vector<8x16x1xf32>
    %90 = vector.broadcast %89 : vector<8x16x1xf32> to vector<8x16x16xf32>
    %91 = arith.subf %87, %90 : vector<8x16x16xf32>
    %92 = math.exp %91 : vector<8x16x16xf32>
    %cst_49 = arith.constant dense<0.000000e+00> : vector<8x16xf32>
    %93 = vector.multi_reduction <add>, %92, %cst_49 [2] : vector<8x16x16xf32> to vector<8x16xf32>
    %94 = vector.shape_cast %93 : vector<8x16xf32> to vector<8x16x1xf32>
    %95 = tpu.reciprocal %94 {approx = true} : vector<8x16x1xf32> -> vector<8x16x1xf32>
    %96 = vector.broadcast %95 : vector<8x16x1xf32> to vector<8x16x16xf32>
    %97 = arith.mulf %92, %96 : vector<8x16x16xf32>
    %c0_50 = arith.constant 0 : index
    %c2_51 = arith.constant 2 : index
    %c0_52 = arith.constant 0 : index
    %c0_53 = arith.constant 0 : index
    %98 = vector.load %arg13[%c0_50, %c2_51, %c0_52, %c0_53] : memref<8x4x16x16xf32, #tpu.memory_space<vmem>>, vector<8x1x16x16xf32>
    %99 = vector.shape_cast %98 : vector<8x1x16x16xf32> to vector<8x16x16xf32>
    %100 = vector.shape_cast %97 : vector<8x16x16xf32> to vector<8x1x16x16xf32>
    tpu.vector_store %arg13[%c0_50, %c2_51, %c0_52, %c0_53], %100 {strides = array<i32>} : memref<8x4x16x16xf32, #tpu.memory_space<vmem>>, vector<8x1x16x16xf32>,
    %101 = arith.truncf %97 : vector<8x16x16xf32> to vector<8x16x16xbf16>
    %102 = vector.extract_strided_slice %23 {offsets = [0, 0, 16], sizes = [8, 16, 8], strides = [1, 1, 1]} : vector<8x16x32xbf16> to vector<8x16x8xbf16>
    "tpu.trace_start"() <{level = 10 : i32, message = "bnm,bmd->bnd"}> : () -> ()
    %cst_54 = arith.constant dense<0.000000e+00> : vector<8x16x8xf32>
    %103 = tpu.matmul %101, %102, %cst_54 {dimension_numbers = #tpu.dot_dimension_numbers<[2], [1], [1], [2], [0, 0, 0, 1, 1, 2], [0], [0]>} : vector<8x16x16xbf16>, vector<8x16x8xbf16>, vector<8x16x8xf32> -> vector<8x16x8xf32>
    "tpu.trace_stop"() : () -> ()
    %104 = arith.truncf %103 : vector<8x16x8xf32> to vector<8x16x8xbf16>
    %c0_55 = arith.constant 0 : index
    %c0_56 = arith.constant 0 : index
    %c16 = arith.constant 16 : index
    %105 = vector.load %arg14[%c0_55, %c0_56, %c16] : memref<8x16x32xbf16, #tpu.memory_space<vmem>>, vector<8x16x8xbf16>
    tpu.vector_store %arg14[%c0_55, %c0_56, %c16], %104 {strides = array<i32>} : memref<8x16x32xbf16, #tpu.memory_space<vmem>>, vector<8x16x8xbf16>,
    %106 = vector.extract_strided_slice %9 {offsets = [0, 0, 24], sizes = [8, 16, 8], strides = [1, 1, 1]} : vector<8x16x32xbf16> to vector<8x16x8xbf16>
    %107 = vector.extract_strided_slice %16 {offsets = [0, 0, 24], sizes = [8, 16, 8], strides = [1, 1, 1]} : vector<8x16x32xbf16> to vector<8x16x8xbf16>
    "tpu.trace_start"() <{level = 10 : i32, message = "bnd,bmd->bnm"}> : () -> ()
    %cst_57 = arith.constant dense<0.000000e+00> : vector<8x16x16xf32>
    %108 = tpu.matmul %106, %107, %cst_57 {dimension_numbers = #tpu.dot_dimension_numbers<[2], [2], [1], [1], [0, 0, 0, 1, 1, 1], [0], [0]>} : vector<8x16x8xbf16>, vector<8x16x8xbf16>, vector<8x16x16xf32> -> vector<8x16x16xf32>
    "tpu.trace_stop"() : () -> ()
    %c3 = arith.constant 3 : index
    %c0_58 = arith.constant 0 : index
    %c0_59 = arith.constant 0 : index
    %109 = vector.load %arg8[%c3, %c0_58, %c0_59] : memref<4x16x16xf32, #tpu.memory_space<vmem>>, vector<1x16x16xf32>
    %110 = vector.shape_cast %109 : vector<1x16x16xf32> to vector<16x16xf32>
    %111 = vector.shape_cast %110 : vector<16x16xf32> to vector<1x16x16xf32>
    %112 = vector.broadcast %111 : vector<1x16x16xf32> to vector<8x16x16xf32>
    %113 = arith.addf %108, %112 : vector<8x16x16xf32>
    %114 = arith.addf %113, %24 : vector<8x16x16xf32>
    %cst_60 = arith.constant dense<0xFF800000> : vector<8x16xf32>
    %115 = vector.multi_reduction <maximumf>, %114, %cst_60 [2] : vector<8x16x16xf32> to vector<8x16xf32>
    %116 = vector.shape_cast %115 : vector<8x16xf32> to vector<8x16x1xf32>
    %117 = vector.broadcast %116 : vector<8x16x1xf32> to vector<8x16x16xf32>
    %118 = arith.subf %114, %117 : vector<8x16x16xf32>
    %119 = math.exp %118 : vector<8x16x16xf32>
    %cst_61 = arith.constant dense<0.000000e+00> : vector<8x16xf32>
    %120 = vector.multi_reduction <add>, %119, %cst_61 [2] : vector<8x16x16xf32> to vector<8x16xf32>
    %121 = vector.shape_cast %120 : vector<8x16xf32> to vector<8x16x1xf32>
    %122 = tpu.reciprocal %121 {approx = true} : vector<8x16x1xf32> -> vector<8x16x1xf32>
    %123 = vector.broadcast %122 : vector<8x16x1xf32> to vector<8x16x16xf32>
    %124 = arith.mulf %119, %123 : vector<8x16x16xf32>
    %c0_62 = arith.constant 0 : index
    %c3_63 = arith.constant 3 : index
    %c0_64 = arith.constant 0 : index
    %c0_65 = arith.constant 0 : index
    %125 = vector.load %arg13[%c0_62, %c3_63, %c0_64, %c0_65] : memref<8x4x16x16xf32, #tpu.memory_space<vmem>>, vector<8x1x16x16xf32>
    %126 = vector.shape_cast %125 : vector<8x1x16x16xf32> to vector<8x16x16xf32>
    %127 = vector.shape_cast %124 : vector<8x16x16xf32> to vector<8x1x16x16xf32>
    tpu.vector_store %arg13[%c0_62, %c3_63, %c0_64, %c0_65], %127 {strides = array<i32>} : memref<8x4x16x16xf32, #tpu.memory_space<vmem>>, vector<8x1x16x16xf32>,
    %128 = arith.truncf %124 : vector<8x16x16xf32> to vector<8x16x16xbf16>
    %129 = vector.extract_strided_slice %23 {offsets = [0, 0, 24], sizes = [8, 16, 8], strides = [1, 1, 1]} : vector<8x16x32xbf16> to vector<8x16x8xbf16>
    "tpu.trace_start"() <{level = 10 : i32, message = "bnm,bmd->bnd"}> : () -> ()
    %cst_66 = arith.constant dense<0.000000e+00> : vector<8x16x8xf32>
    %130 = tpu.matmul %128, %129, %cst_66 {dimension_numbers = #tpu.dot_dimension_numbers<[2], [1], [1], [2], [0, 0, 0, 1, 1, 2], [0], [0]>} : vector<8x16x16xbf16>, vector<8x16x8xbf16>, vector<8x16x8xf32> -> vector<8x16x8xf32>
    "tpu.trace_stop"() : () -> ()
    %131 = arith.truncf %130 : vector<8x16x8xf32> to vector<8x16x8xbf16>
    %c0_67 = arith.constant 0 : index
    %c0_68 = arith.constant 0 : index
    %c24 = arith.constant 24 : index
    %132 = vector.load %arg14[%c0_67, %c0_68, %c24] : memref<8x16x32xbf16, #tpu.memory_space<vmem>>, vector<8x16x8xbf16>
    tpu.vector_store %arg14[%c0_67, %c0_68, %c24], %131 {strides = array<i32>} : memref<8x16x32xbf16, #tpu.memory_space<vmem>>, vector<8x16x8xbf16>,
    %c0_69 = arith.constant 0 : index
    %c0_70 = arith.constant 0 : index
    %c0_71 = arith.constant 0 : index
    %133 = vector.load %arg14[%c0_69, %c0_70, %c0_71] : memref<8x16x32xbf16, #tpu.memory_space<vmem>>, vector<8x16x32xbf16>
    %134 = vector.shape_cast %133 : vector<8x16x32xbf16> to vector<128x32xbf16>
    %c0_72 = arith.constant 0 : index
    %c0_73 = arith.constant 0 : index
    %135 = vector.load %arg10[%c0_72, %c0_73] : memref<32x32xbf16, #tpu.memory_space<vmem>>, vector<32x32xbf16>
    %cst_74 = arith.constant dense<0.000000e+00> : vector<128x32xf32>
    %136 = tpu.matmul %134, %135, %cst_74 {dimension_numbers = #tpu.dot_dimension_numbers<[1], [0], [0], [1], [0, 0, 1, 1], [], []>} : vector<128x32xbf16>, vector<32x32xbf16>, vector<128x32xf32> -> vector<128x32xf32>
    %c0_75 = arith.constant 0 : index
    %c0_76 = arith.constant 0 : index
    %137 = vector.load %arg11[%c0_75, %c0_76] : memref<1x32xf32, #tpu.memory_space<vmem>>, vector<1x32xf32>
    %138 = vector.broadcast %137 : vector<1x32xf32> to vector<128x32xf32>
    %139 = arith.addf %136, %138 : vector<128x32xf32>
    %140 = vector.shape_cast %139 : vector<128x32xf32> to vector<8x16x32xf32>
    %c0_77 = arith.constant 0 : index
    %c0_78 = arith.constant 0 : index
    %c0_79 = arith.constant 0 : index
    %141 = vector.load %arg12[%c0_77, %c0_78, %c0_79] : memref<8x16x32xf32, #tpu.memory_space<vmem>>, vector<8x16x32xf32>
    tpu.vector_store %arg12[%c0_77, %c0_78, %c0_79], %140 {strides = array<i32>} : memref<8x16x32xf32, #tpu.memory_space<vmem>>, vector<8x16x32xf32>,
    return
  }
  func.func @transform_0(%arg0: i32) -> (i32, i32, i32) {
    %c0_i32 = arith.constant 0 : i32
    %c0_i32_0 = arith.constant 0 : i32
    %c0_i32_1 = arith.constant 0 : i32
    return %arg0, %c0_i32, %c0_i32_0 : i32, i32, i32
  }
  func.func @transform_1(%arg0: i32) -> (i32, i32) {
    %c0_i32 = arith.constant 0 : i32
    %c0_i32_0 = arith.constant 0 : i32
    %c0_i32_1 = arith.constant 0 : i32
    return %c0_i32, %c0_i32_0 : i32, i32
  }
  func.func @transform_2(%arg0: i32) -> (i32, i32) {
    %c0_i32 = arith.constant 0 : i32
    %c0_i32_0 = arith.constant 0 : i32
    %c0_i32_1 = arith.constant 0 : i32
    return %c0_i32, %c0_i32_0 : i32, i32
  }
  func.func @transform_3(%arg0: i32) -> (i32, i32) {
    %c0_i32 = arith.constant 0 : i32
    %c0_i32_0 = arith.constant 0 : i32
    %c0_i32_1 = arith.constant 0 : i32
    return %c0_i32, %c0_i32_0 : i32, i32
  }
  func.func @transform_4(%arg0: i32) -> (i32, i32) {
    %c0_i32 = arith.constant 0 : i32
    %c0_i32_0 = arith.constant 0 : i32
    %c0_i32_1 = arith.constant 0 : i32
    return %c0_i32, %c0_i32_0 : i32, i32
  }
  func.func @transform_5(%arg0: i32) -> (i32, i32) {
    %c0_i32 = arith.constant 0 : i32
    %c0_i32_0 = arith.constant 0 : i32
    %c0_i32_1 = arith.constant 0 : i32
    return %c0_i32, %c0_i32_0 : i32, i32
  }
  func.func @transform_6(%arg0: i32) -> (i32, i32) {
    %c0_i32 = arith.constant 0 : i32
    %c0_i32_0 = arith.constant 0 : i32
    %c0_i32_1 = arith.constant 0 : i32
    return %c0_i32, %c0_i32_0 : i32, i32
  }
  func.func @transform_7(%arg0: i32) -> (i32, i32, i32) {
    %c0_i32 = arith.constant 0 : i32
    %c0_i32_0 = arith.constant 0 : i32
    %c0_i32_1 = arith.constant 0 : i32
    %c0_i32_2 = arith.constant 0 : i32
    return %c0_i32, %c0_i32_0, %c0_i32_1 : i32, i32, i32
  }
  func.func @transform_8(%arg0: i32) -> (i32, i32, i32) {
    %c1_i32 = arith.constant 1 : i32
    %c0_i32 = arith.constant 0 : i32
    %0 = arith.cmpi eq, %c1_i32, %c0_i32 : i32
    %c1_i32_0 = arith.constant 1 : i32
    %1 = arith.select %0, %c1_i32_0, %c1_i32 : i32
    %2 = arith.remsi %arg0, %1 : i32
    %c0_i32_1 = arith.constant 0 : i32
    %3 = arith.cmpi ne, %2, %c0_i32_1 : i32
    %c0_i32_2 = arith.constant 0 : i32
    %4 = arith.cmpi slt, %2, %c0_i32_2 : i32
    %c0_i32_3 = arith.constant 0 : i32
    %5 = arith.cmpi slt, %1, %c0_i32_3 : i32
    %6 = arith.xori %4, %5 : i1
    %7 = arith.andi %6, %3 : i1
    %8 = arith.addi %2, %1 : i32
    %9 = arith.select %7, %8, %2 : i32
    %c0_i32_4 = arith.constant 0 : i32
    %c0_i32_5 = arith.constant 0 : i32
    %c0_i32_6 = arith.constant 0 : i32
    return %9, %c0_i32_4, %c0_i32_5 : i32, i32, i32
  }
  func.func @transform_9(%arg0: i32) -> (i32, i32) {
    %c0_i32 = arith.constant 0 : i32
    %c0_i32_0 = arith.constant 0 : i32
    %c0_i32_1 = arith.constant 0 : i32
    return %c0_i32, %c0_i32_0 : i32, i32
  }
  func.func @transform_10(%arg0: i32) -> (i32, i32) {
    %c0_i32 = arith.constant 0 : i32
    %c0_i32_0 = arith.constant 0 : i32
    %c0_i32_1 = arith.constant 0 : i32
    return %c0_i32, %c0_i32_0 : i32, i32
  }
  func.func @transform_11(%arg0: i32) -> (i32, i32, i32) {
    %c0_i32 = arith.constant 0 : i32
    %c0_i32_0 = arith.constant 0 : i32
    %c0_i32_1 = arith.constant 0 : i32
    return %arg0, %c0_i32, %c0_i32_0 : i32, i32, i32
  }
  func.func @transform_12(%arg0: i32) -> (i32, i32, i32, i32) {
    %c0_i32 = arith.constant 0 : i32
    %c0_i32_0 = arith.constant 0 : i32
    %c0_i32_1 = arith.constant 0 : i32
    %c0_i32_2 = arith.constant 0 : i32
    return %arg0, %c0_i32, %c0_i32_0, %c0_i32_1 : i32, i32, i32, i32
  }
}

</mosaic_0001>

<llo_original>
// kernel: tpu_custom_call.1
$region0: #{tpu_custom_call.1}
  #allocation0 [shape = 'u32[]', space=smem, size = 0x4, offset = 0x4, fixed_abs, tag = 'smem constant byte address 0x4 - core index']
  #allocation1 [shape = 'u32[72,128]{1,0:T(1,128)}', space=vmem, size = 0x9000, scoped, tag = 'internal scratch']
  #allocation2 [shape = 'bf16[8,16,32]{2,1,0:T(8,128)(2,1)}', space=vmem, size = 0x8000, scoped, tag = 'scratch operand']
  %s0 = inlined_call_operand.hbm [shape: f32[16,16,32], index: 0, kind: input, shape index: {}]
  %s1 = inlined_call_operand.hbm [shape: bf16[32,32], index: 1, kind: input, shape index: {}]
  %s2 = inlined_call_operand.vmem [shape: f32[1,32], index: 2, kind: input, shape index: {}]
  %s3 = inlined_call_operand.hbm [shape: bf16[32,32], index: 3, kind: input, shape index: {}]
  %s4 = inlined_call_operand.vmem [shape: f32[1,32], index: 4, kind: input, shape index: {}]
  %s5 = inlined_call_operand.hbm [shape: bf16[32,32], index: 5, kind: input, shape index: {}]
  %s6 = inlined_call_operand.vmem [shape: f32[1,32], index: 6, kind: input, shape index: {}]
  %s7 = inlined_call_operand.hbm [shape: f32[4,16,16], index: 7, kind: input, shape index: {}]
  %s8 = inlined_call_operand.hbm [shape: f32[8,16,16], index: 8, kind: input, shape index: {}]
  %s9 = inlined_call_operand.hbm [shape: bf16[32,32], index: 9, kind: input, shape index: {}]
  %s10 = inlined_call_operand.vmem [shape: f32[1,32], index: 10, kind: input, shape index: {}]
  %s11 = inlined_call_operand.hbm [shape: f32[16,16,32], index: 11, kind: output, shape index: {0}]
  %s12 = inlined_call_operand.hbm [shape: f32[16,4,16,16], index: 12, kind: output, shape index: {1}]
  %13 = xla_tuple %s11, %s12
  %s14 = sld [smem:[#allocation0]]
  $region113: #{tpu_custom_call.1} parent=0
    _
  %s16 = ssub.s32 1, %s14
  %s17 = scalar_select 0, %s16, %s14
  $region1: #{tpu_custom_call.1} parent=0
    #allocation3 [shape = 'u8[131072]{0}', space=vmem, size = 0x20000, scoped, tag = 'input window, operand 0']
    #allocation4 [shape = 's32[2]{0}', space=sflag, size = 0x8, scoped, tag = 'scoped memory for tpu_custom_call.1']
    #allocation5 [shape = 's32[2]{0}', space=sflag, size = 0x8, scoped, tag = 'scoped memory for tpu_custom_call.1']
    #allocation6 [shape = 'u8[8192]{0}', space=vmem, size = 0x2000, scoped, tag = 'input window, operand 1, single buffered']
    #allocation7 [shape = 's32[1]{0}', space=sflag, size = 0x4, scoped, tag = 'scoped memory for tpu_custom_call.1']
    #allocation8 [shape = 'u8[8192]{0}', space=vmem, size = 0x2000, scoped, tag = 'input window, operand 3, single buffered']
    #allocation9 [shape = 'u8[8192]{0}', space=vmem, size = 0x2000, scoped, tag = 'input window, operand 5, single buffered']
    #allocation10 [shape = 's32[1]{0}', space=sflag, size = 0x4, scoped, tag = 'scoped memory for tpu_custom_call.1']
    #allocation11 [shape = 'u8[32768]{0}', space=vmem, size = 0x8000, scoped, tag = 'input window, operand 7, single buffered']
    #allocation12 [shape = 'u8[65536]{0}', space=vmem, size = 0x10000, scoped, tag = 'input window, operand 8, single buffered']
    #allocation13 [shape = 's32[1]{0}', space=sflag, size = 0x4, scoped, tag = 'scoped memory for tpu_custom_call.1']
    #allocation14 [shape = 'u8[8192]{0}', space=vmem, size = 0x2000, scoped, tag = 'input window, operand 9, single buffered']
    #allocation15 [shape = 'u8[131072]{0}', space=vmem, size = 0x20000, scoped, tag = 'output window, operand 0']
    #allocation16 [shape = 'u8[524288]{0}', space=vmem, size = 0x80000, scoped, tag = 'output window, operand 1']
    #allocation17 [shape = 's32[2]{0}', space=sflag, size = 0x8, scoped, tag = 'scoped memory for tpu_custom_call.1']
    %18 = vsyncpa [#allocation4], 0
    %s19 = scalar_lea.sflag [#allocation4], 1
    %20 = vsyncpa %s19, 0
    %21 = vsyncpa [#allocation7], 0
    %22 = vsyncpa [#allocation10], 0
    %23 = vsyncpa [#allocation13], 0
    %24 = vsyncpa [#allocation5], 0
    %s25 = scalar_lea.sflag [#allocation5], 1
    %26 = vsyncpa %s25, 0
    %27 = vsyncpa [#allocation17], 0
    %s28 = scalar_lea.sflag [#allocation17], 1
    %29 = vsyncpa %s28, 0
    loop: start=0, step=1, limit=4
    $region2: #{tpu_custom_call.1} parent=1 // loop_pre_header
      _
    $region3: #{tpu_custom_call.1} parent=1 // loop_header
      %s31 = sphi 0, %s35
      %p32 = scmp.ge.s32.totalorder %s31, 4
      %s41 = sphi 0, %s43
      %s44 = sphi 0, %s41
      %s45 = sphi 0, %s44
      %s61 = sphi 0, %s45
      %s65 = sphi 0, %s65
      %s67 = sphi 0, %s65
      %s68 = sphi 0, %s67
      %s82 = sphi 0, %s68
      %s86 = sphi 0, %s86
      %s88 = sphi 0, %s86
      %s89 = sphi 0, %s88
      %s103 = sphi 0, %s89
      %s107 = sphi 0, %s107
      %s109 = sphi 0, %s107
      %s110 = sphi 0, %s109
      %s124 = sphi 0, %s110
      %s128 = sphi 0, %s128
      %s130 = sphi 0, %s128
      %s131 = sphi 0, %s130
      %s145 = sphi 0, %s131
      %s149 = sphi 0, %s149
      %s151 = sphi 0, %s149
      %s152 = sphi 0, %s151
      %s166 = sphi 0, %s152
      %s170 = sphi 0, %s170
      %s172 = sphi 0, %s170
      %s173 = sphi 0, %s172
      %s187 = sphi 0, %s173
      %s191 = sphi 0, %s191
      %s193 = sphi 0, %s191
      %s194 = sphi 0, %s193
      %s208 = sphi 0, %s194
      %s212 = sphi 0, %s212
      %s214 = sphi 0, %s212
      %s215 = sphi 0, %s214
      %s229 = sphi 0, %s215
      %s233 = sphi 0, %s233
      %s235 = sphi 0, %s233
      %s236 = sphi 0, %s235
      %s250 = sphi 0, %s236
      %s254 = sphi 0, %s254
      %s256 = sphi 0, %s254
      %s257 = sphi 0, %s256
      %s271 = sphi 0, %s257
      %s277 = sphi 0, %s279
      %s280 = sphi 0, %s277
      %s281 = sphi 0, %s280
      %s297 = sphi 0, %s281
      %s303 = sphi 0, %s305
      %s306 = sphi 0, %s303
      %s307 = sphi 0, %s306
      %s323 = sphi 0, %s307
    $region4: #{tpu_custom_call.1} parent=1 // loop_header_branch
      %34 = sbr.rel (%p32) target = $region8
    $region5: #{tpu_custom_call.1} parent=1 // loop_body
      %s36 = ssub.s32 %s31, 1
      %s37 = ssub.s32 %s31, 2
      %s38 = sadd.s32 %s31, 1
      %s39 = ssub.s32 %s31, %s38
      %p40 = scmp.eq.s32.totalorder %s39, 0
      %s42 = sadd.s32 %s41, 1
      %s43 = scalar_select %p40, %s41, %s42
      %p46 = pneg %p40
      %p47 = scmp.eq.s32.totalorder %s31, 1
      %p48 = por %p46, %p47
      %p49 = scmp.ne.s32.totalorder %s41, %s44
      %p50 = scmp.eq.s32.totalorder %s31, 0
      %p51 = por %p49, %p50
      %p52 = scmp.ne.s32.totalorder %s41, %s44
      %p53 = scmp.eq.s32.totalorder %s36, 1
      %p54 = por %p52, %p53
      %p55 = scmp.ne.s32.totalorder %s44, %s45
      %p56 = scmp.eq.s32.totalorder %s36, 0
      %p57 = por %p55, %p56
      %p58 = scmp.ne.s32.totalorder %s44, %s45
      %p59 = scmp.eq.s32.totalorder %s37, 1
      %p60 = por %p58, %p59
      %p62 = scmp.ne.s32.totalorder %s45, %s61
      %p63 = scmp.eq.s32.totalorder %s37, 0
      %p64 = por %p62, %p63
      %s66 = sadd.s32 %s65, 1
      %p69 = scmp.eq.s32.totalorder %s31, 1
      %p70 = scmp.ne.s32.totalorder %s65, %s67
      %p71 = scmp.eq.s32.totalorder %s31, 0
      %p72 = por %p70, %p71
      %p73 = scmp.ne.s32.totalorder %s65, %s67
      %p74 = scmp.eq.s32.totalorder %s36, 1
      %p75 = por %p73, %p74
      %p76 = scmp.ne.s32.totalorder %s67, %s68
      %p77 = scmp.eq.s32.totalorder %s36, 0
      %p78 = por %p76, %p77
      %p79 = scmp.ne.s32.totalorder %s67, %s68
      %p80 = scmp.eq.s32.totalorder %s37, 1
      %p81 = por %p79, %p80
      %p83 = scmp.ne.s32.totalorder %s68, %s82
      %p84 = scmp.eq.s32.totalorder %s37, 0
      %p85 = por %p83, %p84
      %s87 = sadd.s32 %s86, 1
      %p90 = scmp.eq.s32.totalorder %s31, 1
      %p91 = scmp.ne.s32.totalorder %s86, %s88
      %p92 = scmp.eq.s32.totalorder %s31, 0
      %p93 = por %p91, %p92
      %p94 = scmp.ne.s32.totalorder %s86, %s88
      %p95 = scmp.eq.s32.totalorder %s36, 1
      %p96 = por %p94, %p95
      %p97 = scmp.ne.s32.totalorder %s88, %s89
      %p98 = scmp.eq.s32.totalorder %s36, 0
      %p99 = por %p97, %p98
      %p100 = scmp.ne.s32.totalorder %s88, %s89
      %p101 = scmp.eq.s32.totalorder %s37, 1
      %p102 = por %p100, %p101
      %p104 = scmp.ne.s32.totalorder %s89, %s103
      %p105 = scmp.eq.s32.totalorder %s37, 0
      %p106 = por %p104, %p105
      %s108 = sadd.s32 %s107, 1
      %p111 = scmp.eq.s32.totalorder %s31, 1
      %p112 = scmp.ne.s32.totalorder %s107, %s109
      %p113 = scmp.eq.s32.totalorder %s31, 0
      %p114 = por %p112, %p113
      %p115 = scmp.ne.s32.totalorder %s107, %s109
      %p116 = scmp.eq.s32.totalorder %s36, 1
      %p117 = por %p115, %p116
      %p118 = scmp.ne.s32.totalorder %s109, %s110
      %p119 = scmp.eq.s32.totalorder %s36, 0
      %p120 = por %p118, %p119
      %p121 = scmp.ne.s32.totalorder %s109, %s110
      %p122 = scmp.eq.s32.totalorder %s37, 1
      %p123 = por %p121, %p122
      %p125 = scmp.ne.s32.totalorder %s110, %s124
      %p126 = scmp.eq.s32.totalorder %s37, 0
      %p127 = por %p125, %p126
      %s129 = sadd.s32 %s128, 1
      %p132 = scmp.eq.s32.totalorder %s31, 1
      %p133 = scmp.ne.s32.totalorder %s128, %s130
      %p134 = scmp.eq.s32.totalorder %s31, 0
      %p135 = por %p133, %p134
      %p136 = scmp.ne.s32.totalorder %s128, %s130
      %p137 = scmp.eq.s32.totalorder %s36, 1
      %p138 = por %p136, %p137
      %p139 = scmp.ne.s32.totalorder %s130, %s131
      %p140 = scmp.eq.s32.totalorder %s36, 0
      %p141 = por %p139, %p140
      %p142 = scmp.ne.s32.totalorder %s130, %s131
      %p143 = scmp.eq.s32.totalorder %s37, 1
      %p144 = por %p142, %p143
      %p146 = scmp.ne.s32.totalorder %s131, %s145
      %p147 = scmp.eq.s32.totalorder %s37, 0
      %p148 = por %p146, %p147
      %s150 = sadd.s32 %s149, 1
      %p153 = scmp.eq.s32.totalorder %s31, 1
      %p154 = scmp.ne.s32.totalorder %s149, %s151
      %p155 = scmp.eq.s32.totalorder %s31, 0
      %p156 = por %p154, %p155
      %p157 = scmp.ne.s32.totalorder %s149, %s151
      %p158 = scmp.eq.s32.totalorder %s36, 1
      %p159 = por %p157, %p158
      %p160 = scmp.ne.s32.totalorder %s151, %s152
      %p161 = scmp.eq.s32.totalorder %s36, 0
      %p162 = por %p160, %p161
      %p163 = scmp.ne.s32.totalorder %s151, %s152
      %p164 = scmp.eq.s32.totalorder %s37, 1
      %p165 = por %p163, %p164
      %p167 = scmp.ne.s32.totalorder %s152, %s166
      %p168 = scmp.eq.s32.totalorder %s37, 0
      %p169 = por %p167, %p168
      %s171 = sadd.s32 %s170, 1
      %p174 = scmp.eq.s32.totalorder %s31, 1
      %p175 = scmp.ne.s32.totalorder %s170, %s172
      %p176 = scmp.eq.s32.totalorder %s31, 0
      %p177 = por %p175, %p176
      %p178 = scmp.ne.s32.totalorder %s170, %s172
      %p179 = scmp.eq.s32.totalorder %s36, 1
      %p180 = por %p178, %p179
      %p181 = scmp.ne.s32.totalorder %s172, %s173
      %p182 = scmp.eq.s32.totalorder %s36, 0
      %p183 = por %p181, %p182
      %p184 = scmp.ne.s32.totalorder %s172, %s173
      %p185 = scmp.eq.s32.totalorder %s37, 1
      %p186 = por %p184, %p185
      %p188 = scmp.ne.s32.totalorder %s173, %s187
      %p189 = scmp.eq.s32.totalorder %s37, 0
      %p190 = por %p188, %p189
      %s192 = sadd.s32 %s191, 1
      %p195 = scmp.eq.s32.totalorder %s31, 1
      %p196 = scmp.ne.s32.totalorder %s191, %s193
      %p197 = scmp.eq.s32.totalorder %s31, 0
      %p198 = por %p196, %p197
      %p199 = scmp.ne.s32.totalorder %s191, %s193
      %p200 = scmp.eq.s32.totalorder %s36, 1
      %p201 = por %p199, %p200
      %p202 = scmp.ne.s32.totalorder %s193, %s194
      %p203 = scmp.eq.s32.totalorder %s36, 0
      %p204 = por %p202, %p203
      %p205 = scmp.ne.s32.totalorder %s193, %s194
      %p206 = scmp.eq.s32.totalorder %s37, 1
      %p207 = por %p205, %p206
      %p209 = scmp.ne.s32.totalorder %s194, %s208
      %p210 = scmp.eq.s32.totalorder %s37, 0
      %p211 = por %p209, %p210
      %s213 = sadd.s32 %s212, 1
      %p216 = scmp.eq.s32.totalorder %s31, 1
      %p217 = scmp.ne.s32.totalorder %s212, %s214
      %p218 = scmp.eq.s32.totalorder %s31, 0
      %p219 = por %p217, %p218
      %p220 = scmp.ne.s32.totalorder %s212, %s214
      %p221 = scmp.eq.s32.totalorder %s36, 1
      %p222 = por %p220, %p221
      %p223 = scmp.ne.s32.totalorder %s214, %s215
      %p224 = scmp.eq.s32.totalorder %s36, 0
      %p225 = por %p223, %p224
      %p226 = scmp.ne.s32.totalorder %s214, %s215
      %p227 = scmp.eq.s32.totalorder %s37, 1
      %p228 = por %p226, %p227
      %p230 = scmp.ne.s32.totalorder %s215, %s229
      %p231 = scmp.eq.s32.totalorder %s37, 0
      %p232 = por %p230, %p231
      %s234 = sadd.s32 %s233, 1
      %p237 = scmp.eq.s32.totalorder %s31, 1
      %p238 = scmp.ne.s32.totalorder %s233, %s235
      %p239 = scmp.eq.s32.totalorder %s31, 0
      %p240 = por %p238, %p239
      %p241 = scmp.ne.s32.totalorder %s233, %s235
      %p242 = scmp.eq.s32.totalorder %s36, 1
      %p243 = por %p241, %p242
      %p244 = scmp.ne.s32.totalorder %s235, %s236
      %p245 = scmp.eq.s32.totalorder %s36, 0
      %p246 = por %p244, %p245
      %p247 = scmp.ne.s32.totalorder %s235, %s236
      %p248 = scmp.eq.s32.totalorder %s37, 1
      %p249 = por %p247, %p248
      %p251 = scmp.ne.s32.totalorder %s236, %s250
      %p252 = scmp.eq.s32.totalorder %s37, 0
      %p253 = por %p251, %p252
      %s255 = sadd.s32 %s254, 1
      %p258 = scmp.eq.s32.totalorder %s31, 1
      %p259 = scmp.ne.s32.totalorder %s254, %s256
      %p260 = scmp.eq.s32.totalorder %s31, 0
      %p261 = por %p259, %p260
      %p262 = scmp.ne.s32.totalorder %s254, %s256
      %p263 = scmp.eq.s32.totalorder %s36, 1
      %p264 = por %p262, %p263
      %p265 = scmp.ne.s32.totalorder %s256, %s257
      %p266 = scmp.eq.s32.totalorder %s36, 0
      %p267 = por %p265, %p266
      %p268 = scmp.ne.s32.totalorder %s256, %s257
      %p269 = scmp.eq.s32.totalorder %s37, 1
      %p270 = por %p268, %p269
      %p272 = scmp.ne.s32.totalorder %s257, %s271
      %p273 = scmp.eq.s32.totalorder %s37, 0
      %p274 = por %p272, %p273
      %s275 = ssub.s32 %s31, %s38
      %p276 = scmp.eq.s32.totalorder %s275, 0
      %s278 = sadd.s32 %s277, 1
      %s279 = scalar_select %p276, %s277, %s278
      %p282 = pneg %p276
      %p283 = scmp.eq.s32.totalorder %s31, 1
      %p284 = por %p282, %p283
      %p285 = scmp.ne.s32.totalorder %s277, %s280
      %p286 = scmp.eq.s32.totalorder %s31, 0
      %p287 = por %p285, %p286
      %p288 = scmp.ne.s32.totalorder %s277, %s280
      %p289 = scmp.eq.s32.totalorder %s36, 1
      %p290 = por %p288, %p289
      %p291 = scmp.ne.s32.totalorder %s280, %s281
      %p292 = scmp.eq.s32.totalorder %s36, 0
      %p293 = por %p291, %p292
      %p294 = scmp.ne.s32.totalorder %s280, %s281
      %p295 = scmp.eq.s32.totalorder %s37, 1
      %p296 = por %p294, %p295
      %p298 = scmp.ne.s32.totalorder %s281, %s297
      %p299 = scmp.eq.s32.totalorder %s37, 0
      %p300 = por %p298, %p299
      %s301 = ssub.s32 %s31, %s38
      %p302 = scmp.eq.s32.totalorder %s301, 0
      %s304 = sadd.s32 %s303, 1
      %s305 = scalar_select %p302, %s303, %s304
      %p308 = pneg %p302
      %p309 = scmp.eq.s32.totalorder %s31, 1
      %p310 = por %p308, %p309
      %p311 = scmp.ne.s32.totalorder %s303, %s306
      %p312 = scmp.eq.s32.totalorder %s31, 0
      %p313 = por %p311, %p312
      %p314 = scmp.ne.s32.totalorder %s303, %s306
      %p315 = scmp.eq.s32.totalorder %s36, 1
      %p316 = por %p314, %p315
      %p317 = scmp.ne.s32.totalorder %s306, %s307
      %p318 = scmp.eq.s32.totalorder %s36, 0
      %p319 = por %p317, %p318
      %p320 = scmp.ne.s32.totalorder %s306, %s307
      %p321 = scmp.eq.s32.totalorder %s37, 1
      %p322 = por %p320, %p321
      %p324 = scmp.ne.s32.totalorder %s307, %s323
      %p325 = scmp.eq.s32.totalorder %s37, 0
      %p326 = por %p324, %p325
      %p327 = scmp.le.s32.totalorder 1, %s31
      %p328 = scmp.lt.s32.totalorder %s31, 3
      %p329 = pnand %p327, %p328
      %p330 = pneg %p329
      // Predicated region
      $region9: #{tpu_custom_call.1} parent=5 // pred_check
        _
      $region10: #{tpu_custom_call.1} parent=5 // pred_check_branch
        %332 = sbr.rel (%p329) target = $region12
      $region11: #{tpu_custom_call.1} parent=5 // pred_region
        %s333 = ssub.s32 %s31, 1
        // Predicated region
        $region13: #{tpu_custom_call.1} parent=11 // pred_check
          %p334 = pneg %p78
        $region14: #{tpu_custom_call.1} parent=11 // pred_check_branch
          %336 = sbr.rel (%p334) target = $region16
        $region15: #{tpu_custom_call.1} parent=11 // pred_region
          %338 = vsyncadd [#allocation7], 0
          %s339 = sshll.u32 %s1, 4
          %s340 = int_to_ptr.hbm [resolvable:$true] %s339
          %s341 = sshll.u32 [#allocation6], 4
          %s342 = int_to_ptr.vmem [resolvable:$true] %s341
          %347 = dma.hbm_to_vmem [thread:$0]  %s340, 256, %s342, [#allocation7], 64, 64, 4
        $region16: #{tpu_custom_call.1} parent=11 // pred_fallthru
          _
        // Predicated region
        $region17: #{tpu_custom_call.1} parent=11 // pred_check
          %p348 = pneg %p99
        $region18: #{tpu_custom_call.1} parent=11 // pred_check_branch
          %350 = sbr.rel (%p348) target = $region20
        $region19: #{tpu_custom_call.1} parent=11 // pred_region
          _
        $region20: #{tpu_custom_call.1} parent=11 // pred_fallthru
          _
        // Predicated region
        $region21: #{tpu_custom_call.1} parent=11 // pred_check
          %p351 = pneg %p120
        $region22: #{tpu_custom_call.1} parent=11 // pred_check_branch
          %353 = sbr.rel (%p351) target = $region24
        $region23: #{tpu_custom_call.1} parent=11 // pred_region
          %355 = vsyncadd [#allocation7], 0
          %s356 = sshll.u32 %s3, 4
          %s357 = int_to_ptr.hbm [resolvable:$true] %s356
          %s358 = sshll.u32 [#allocation8], 4
          %s359 = int_to_ptr.vmem [resolvable:$true] %s358
          %364 = dma.hbm_to_vmem [thread:$0]  %s357, 256, %s359, [#allocation7], 64, 64, 4
        $region24: #{tpu_custom_call.1} parent=11 // pred_fallthru
          _
        // Predicated region
        $region25: #{tpu_custom_call.1} parent=11 // pred_check
          %p365 = pneg %p141
        $region26: #{tpu_custom_call.1} parent=11 // pred_check_branch
          %367 = sbr.rel (%p365) target = $region28
        $region27: #{tpu_custom_call.1} parent=11 // pred_region
          _
        $region28: #{tpu_custom_call.1} parent=11 // pred_fallthru
          _
        // Predicated region
        $region29: #{tpu_custom_call.1} parent=11 // pred_check
          %p368 = pneg %p162
        $region30: #{tpu_custom_call.1} parent=11 // pred_check_branch
          %370 = sbr.rel (%p368) target = $region32
        $region31: #{tpu_custom_call.1} parent=11 // pred_region
          %372 = vsyncadd [#allocation10], 0
          %s373 = sshll.u32 %s5, 4
          %s374 = int_to_ptr.hbm [resolvable:$true] %s373
          %s375 = sshll.u32 [#allocation9], 4
          %s376 = int_to_ptr.vmem [resolvable:$true] %s375
          %381 = dma.hbm_to_vmem [thread:$0]  %s374, 256, %s376, [#allocation10], 64, 64, 4
        $region32: #{tpu_custom_call.1} parent=11 // pred_fallthru
          _
        // Predicated region
        $region33: #{tpu_custom_call.1} parent=11 // pred_check
          %p382 = pneg %p183
        $region34: #{tpu_custom_call.1} parent=11 // pred_check_branch
          %384 = sbr.rel (%p382) target = $region36
        $region35: #{tpu_custom_call.1} parent=11 // pred_region
          _
        $region36: #{tpu_custom_call.1} parent=11 // pred_fallthru
          _
        // Predicated region
        $region37: #{tpu_custom_call.1} parent=11 // pred_check
          %p385 = pneg %p204
        $region38: #{tpu_custom_call.1} parent=11 // pred_check_branch
          %387 = sbr.rel (%p385) target = $region40
        $region39: #{tpu_custom_call.1} parent=11 // pred_region
          %389 = vsyncadd [#allocation10], 0
          %s390 = sshll.u32 %s7, 4
          %s391 = int_to_ptr.hbm [resolvable:$true] %s390
          %s392 = sshll.u32 [#allocation11], 4
          %s393 = int_to_ptr.vmem [resolvable:$true] %s392
          %398 = dma.hbm_to_vmem [thread:$0]  %s391, 1024, %s393, [#allocation10], 128, 128, 8
        $region40: #{tpu_custom_call.1} parent=11 // pred_fallthru
          _
        // Predicated region
        $region41: #{tpu_custom_call.1} parent=11 // pred_check
          %p399 = pneg %p225
        $region42: #{tpu_custom_call.1} parent=11 // pred_check_branch
          %401 = sbr.rel (%p399) target = $region44
        $region43: #{tpu_custom_call.1} parent=11 // pred_region
          %403 = vsyncadd [#allocation13], 0
          %s404 = sshll.u32 %s8, 4
          %s405 = int_to_ptr.hbm [resolvable:$true] %s404
          %s406 = sshll.u32 [#allocation12], 4
          %s407 = int_to_ptr.vmem [resolvable:$true] %s406
          %412 = dma.hbm_to_vmem [thread:$0]  %s405, 2048, %s407, [#allocation13], 128, 128, 8
        $region44: #{tpu_custom_call.1} parent=11 // pred_fallthru
          _
        // Predicated region
        $region45: #{tpu_custom_call.1} parent=11 // pred_check
          %p413 = pneg %p246
        $region46: #{tpu_custom_call.1} parent=11 // pred_check_branch
          %415 = sbr.rel (%p413) target = $region48
        $region47: #{tpu_custom_call.1} parent=11 // pred_region
          %417 = vsyncadd [#allocation13], 0
          %s418 = sshll.u32 %s9, 4
          %s419 = int_to_ptr.hbm [resolvable:$true] %s418
          %s420 = sshll.u32 [#allocation14], 4
          %s421 = int_to_ptr.vmem [resolvable:$true] %s420
          %426 = dma.hbm_to_vmem [thread:$0]  %s419, 256, %s421, [#allocation13], 64, 64, 4
        $region48: #{tpu_custom_call.1} parent=11 // pred_fallthru
          _
        // Predicated region
        $region49: #{tpu_custom_call.1} parent=11 // pred_check
          %p427 = pneg %p267
        $region50: #{tpu_custom_call.1} parent=11 // pred_check_branch
          %429 = sbr.rel (%p427) target = $region52
        $region51: #{tpu_custom_call.1} parent=11 // pred_region
          _
        $region52: #{tpu_custom_call.1} parent=11 // pred_fallthru
          _
      $region12: #{tpu_custom_call.1} parent=5 // pred_fallthru
        _
      %p430 = scmp.lt.s32.totalorder %s31, 2
      // Predicated region
      $region53: #{tpu_custom_call.1} parent=5 // pred_check
        %p431 = pneg %p430
      $region54: #{tpu_custom_call.1} parent=5 // pred_check_branch
        %433 = sbr.rel (%p431) target = $region56
      $region55: #{tpu_custom_call.1} parent=5 // pred_region
        // Predicated region
        $region57: #{tpu_custom_call.1} parent=55 // pred_check
          %p434 = pneg %p51
        $region58: #{tpu_custom_call.1} parent=55 // pred_check_branch
          %436 = sbr.rel (%p434) target = $region60
        $region59: #{tpu_custom_call.1} parent=55 // pred_region
          %s437 = sand.u32 %s41, 1
          %s438 = scalar_lea.sflag [#allocation4], %s437
          %s439 = sand.u32 %s41, 1
          %s440 = smul.addr %s439, 128
          %s441 = scalar_lea.vmem [#allocation3], %s440
          %s442 = smul.u32 8, %s31
          %444 = vsyncadd %s438, 0
          %s445 = smul.addr %s442, 2
          %s446 = smul.addr %s445, 8
          %s447 = scalar_lea.hbm %s0, %s446
          %s448 = sshll.u32 %s447, 4
          %s449 = int_to_ptr.hbm [resolvable:$true] %s448
          %s450 = sshll.u32 %s441, 4
          %s451 = int_to_ptr.vmem [resolvable:$true] %s450
          %456 = dma.hbm_to_vmem [thread:$0]  %s449, 2048, %s451, %s438, 128, 128, 8
        $region60: #{tpu_custom_call.1} parent=55 // pred_fallthru
          _
      $region56: #{tpu_custom_call.1} parent=5 // pred_fallthru
        _
      %p457 = scmp.le.s32.totalorder 1, %s31
      %p458 = scmp.lt.s32.totalorder %s31, 3
      %p459 = pnand %p457, %p458
      %p460 = pneg %p459
      // Predicated region
      $region61: #{tpu_custom_call.1} parent=5 // pred_check
        _
      $region62: #{tpu_custom_call.1} parent=5 // pred_check_branch
        %462 = sbr.rel (%p459) target = $region64
      $region63: #{tpu_custom_call.1} parent=5 // pred_region
        %s463 = ssub.s32 %s31, 1
        %s464 = sand.u32 %s44, 1
        %s465 = scalar_lea.sflag [#allocation4], %s464
        %s466 = sand.u32 %s44, 1
        %s467 = smul.addr %s466, 128
        %s468 = scalar_lea.vmem [#allocation3], %s467
        // Predicated region
        $region65: #{tpu_custom_call.1} parent=63 // pred_check
          %p469 = pneg %p57
        $region66: #{tpu_custom_call.1} parent=63 // pred_check_branch
          %471 = sbr.rel (%p469) target = $region68
        $region67: #{tpu_custom_call.1} parent=63 // pred_region
          %473 = dma.done %s465, 2048
        $region68: #{tpu_custom_call.1} parent=63 // pred_fallthru
          _
        // Predicated region
        $region69: #{tpu_custom_call.1} parent=63 // pred_check
          %p474 = pneg %p78
        $region70: #{tpu_custom_call.1} parent=63 // pred_check_branch
          %476 = sbr.rel (%p474) target = $region72
        $region71: #{tpu_custom_call.1} parent=63 // pred_region
          %478 = dma.done [#allocation7], 256
        $region72: #{tpu_custom_call.1} parent=63 // pred_fallthru
          _
        // Predicated region
        $region73: #{tpu_custom_call.1} parent=63 // pred_check
          %p479 = pneg %p120
        $region74: #{tpu_custom_call.1} parent=63 // pred_check_branch
          %481 = sbr.rel (%p479) target = $region76
        $region75: #{tpu_custom_call.1} parent=63 // pred_region
          %483 = dma.done [#allocation7], 256
        $region76: #{tpu_custom_call.1} parent=63 // pred_fallthru
          _
        // Predicated region
        $region77: #{tpu_custom_call.1} parent=63 // pred_check
          %p484 = pneg %p162
        $region78: #{tpu_custom_call.1} parent=63 // pred_check_branch
          %486 = sbr.rel (%p484) target = $region80
        $region79: #{tpu_custom_call.1} parent=63 // pred_region
          %488 = dma.done [#allocation10], 256
        $region80: #{tpu_custom_call.1} parent=63 // pred_fallthru
          _
        // Predicated region
        $region81: #{tpu_custom_call.1} parent=63 // pred_check
          %p489 = pneg %p204
        $region82: #{tpu_custom_call.1} parent=63 // pred_check_branch
          %491 = sbr.rel (%p489) target = $region84
        $region83: #{tpu_custom_call.1} parent=63 // pred_region
          %493 = dma.done [#allocation10], 1024
        $region84: #{tpu_custom_call.1} parent=63 // pred_fallthru
          _
        // Predicated region
        $region85: #{tpu_custom_call.1} parent=63 // pred_check
          %p494 = pneg %p225
        $region86: #{tpu_custom_call.1} parent=63 // pred_check_branch
          %496 = sbr.rel (%p494) target = $region88
        $region87: #{tpu_custom_call.1} parent=63 // pred_region
          %498 = dma.done [#allocation13], 2048
        $region88: #{tpu_custom_call.1} parent=63 // pred_fallthru
          _
        // Predicated region
        $region89: #{tpu_custom_call.1} parent=63 // pred_check
          %p499 = pneg %p246
        $region90: #{tpu_custom_call.1} parent=63 // pred_check_branch
          %501 = sbr.rel (%p499) target = $region92
        $region91: #{tpu_custom_call.1} parent=63 // pred_region
          %503 = dma.done [#allocation13], 256
        $region92: #{tpu_custom_call.1} parent=63 // pred_fallthru
          _
        %s504 = sand.u32 %s44, 1
        %s505 = scalar_lea.sflag [#allocation4], %s504
        %s506 = sand.u32 %s44, 1
        %s507 = smul.addr %s506, 128
        %s508 = scalar_lea.vmem [#allocation3], %s507
        %p509 = pneg %p57
        %p510 = pneg %p54
        %p511 = pneg %p78
        %p512 = pneg %p75
        %p513 = pneg %p99
        %p514 = pneg %p96
        %p515 = pneg %p120
        %p516 = pneg %p117
        %p517 = pneg %p141
        %p518 = pneg %p138
        %p519 = pneg %p162
        %p520 = pneg %p159
        %p521 = pneg %p183
        %p522 = pneg %p180
        %p523 = pneg %p204
        %p524 = pneg %p201
        %p525 = pneg %p225
        %p526 = pneg %p222
        %p527 = pneg %p246
        %p528 = pneg %p243
        %p529 = pneg %p267
        %p530 = pneg %p264
        %p531 = pneg %p293
        %p532 = pneg %p290
        %s533 = sand.u32 %s280, 1
        %s534 = scalar_lea.sflag [#allocation5], %s533
        %s535 = sand.u32 %s280, 1
        %s536 = smul.addr %s535, 128
        %s537 = scalar_lea.vmem [#allocation15], %s536
        %p538 = pneg %p319
        %p539 = pneg %p316
        %s540 = sand.u32 %s306, 1
        %s541 = scalar_lea.sflag [#allocation17], %s540
        %s542 = sand.u32 %s306, 1
        %s543 = smul.addr %s542, 512
        %s544 = scalar_lea.vmem [#allocation16], %s543
        %s545 = smul.u32 8, %s36
        %s546 = smul.u32 8, %s36
        %s547 = smul.u32 8, %s36
        %v549 = vld [vmem:[%s468] sm:$0xff]
        %v550 = vld [vmem:[%s468 + $0x8] sm:$0xff]
        %v551 = vld [vmem:[%s468 + $0x10] sm:$0xff]
        %v552 = vld [vmem:[%s468 + $0x18] sm:$0xff]
        %v553 = vld [vmem:[%s468 + $0x20] sm:$0xff]
        %v554 = vld [vmem:[%s468 + $0x28] sm:$0xff]
        %v555 = vld [vmem:[%s468 + $0x30] sm:$0xff]
        %v556 = vld [vmem:[%s468 + $0x38] sm:$0xff]
        %v557 = vld [vmem:[%s468 + $0x40] sm:$0xff]
        %v558 = vld [vmem:[%s468 + $0x48] sm:$0xff]
        %v559 = vld [vmem:[%s468 + $0x50] sm:$0xff]
        %v560 = vld [vmem:[%s468 + $0x58] sm:$0xff]
        %v561 = vld [vmem:[%s468 + $0x60] sm:$0xff]
        %v562 = vld [vmem:[%s468 + $0x68] sm:$0xff]
        %v563 = vld [vmem:[%s468 + $0x70] sm:$0xff]
        %v564 = vld [vmem:[%s468 + $0x78] sm:$0xff]
        %v565 = vpack.c.bf16 %v549, %v549
        %v566 = vpack.c.bf16 %v550, %v550
        %v567 = vpack.c.bf16 %v551, %v551
        %v568 = vpack.c.bf16 %v552, %v552
        %v569 = vpack.c.bf16 %v553, %v553
        %v570 = vpack.c.bf16 %v554, %v554
        %v571 = vpack.c.bf16 %v555, %v555
        %v572 = vpack.c.bf16 %v556, %v556
        %v573 = vpack.c.bf16 %v557, %v557
        %v574 = vpack.c.bf16 %v558, %v558
        %v575 = vpack.c.bf16 %v559, %v559
        %v576 = vpack.c.bf16 %v560, %v560
        %v577 = vpack.c.bf16 %v561, %v561
        %v578 = vpack.c.bf16 %v562, %v562
        %v579 = vpack.c.bf16 %v563, %v563
        %v580 = vpack.c.bf16 %v564, %v564
        %v581 = vld [vmem:[#allocation6] sm:$0xf]
        %v582 = vld [vmem:[#allocation6 + $0x4] sm:$0xf]
        %v583 = vld [vmem:[#allocation6 + $0x8] sm:$0xf]
        %v584 = vld [vmem:[#allocation6 + $0xc] sm:$0xf]
        %v585 = vld [vmem:[%s2] sm:$0x1]
        %v587 = vperm.slane %v585, 0
        %v605 = vunpack.c.l.b16 %v565
        %v606 = vunpack.c.l.b16 %v566
        %v607 = vunpack.c.l.b16 %v567
        %v608 = vunpack.c.l.b16 %v568
        %v609 = vunpack.c.l.b16 %v569
        %v610 = vunpack.c.l.b16 %v570
        %v611 = vunpack.c.l.b16 %v571
        %v612 = vunpack.c.l.b16 %v572
        %v613 = vunpack.c.l.b16 %v573
        %v614 = vunpack.c.l.b16 %v574
        %v615 = vunpack.c.l.b16 %v575
        %v616 = vunpack.c.l.b16 %v576
        %v617 = vunpack.c.l.b16 %v577
        %v618 = vunpack.c.l.b16 %v578
        %v619 = vunpack.c.l.b16 %v579
        %v620 = vunpack.c.l.b16 %v580
        %v621 = vpack.c.b16 %v606, %v605
        %v622 = vpack.c.b16 %v608, %v607
        %v623 = vpack.c.b16 %v610, %v609
        %v624 = vpack.c.b16 %v612, %v611
        %v625 = vpack.c.b16 %v614, %v613
        %v626 = vpack.c.b16 %v616, %v615
        %v627 = vpack.c.b16 %v618, %v617
        %v628 = vpack.c.b16 %v620, %v619
        %v633 = vunpack.c.l.b16 %v581
        %v634 = vunpack.c.l.b16 %v582
        %v635 = vunpack.c.l.b16 %v583
        %v636 = vunpack.c.l.b16 %v584
        %v637 = vpack.c.b16 %v634, %v633
        %v638 = vpack.c.b16 %v636, %v635
        %vm641 = vcmask 261120
        %v643 = vsel %vm641, %v621, 0
        %v646 = vsel %vm641, %v622, 0
        %v649 = vsel %vm641, %v623, 0
        %v652 = vsel %vm641, %v624, 0
        %v655 = vsel %vm641, %v625, 0
        %v658 = vsel %vm641, %v626, 0
        %v661 = vsel %vm641, %v627, 0
        %v664 = vsel %vm641, %v628, 0
        %666 = vmatpush.bf16.msra.mxu0 0
        %667 = vmatpush.bf16.msra.mxu0 0
        %668 = vmatpush.bf16.msra.mxu0 0
        %669 = vmatpush.bf16.msra.mxu0 0
        %670 = vmatpush.bf16.msra.mxu0 0
        %671 = vmatpush.bf16.msra.mxu0 0
        %672 = vmatpush.bf16.msra.mxu0 %v638
        %673 = vmatpush.bf16.msra.mxu0 %v637
        %674 = vmatmul.bf16.gmra.mxu0 %v643
        %v675 = vpop.f32.mrf.mxu0
        %v676 = vadd.f32 %v587, %v675
        %v677 = vpop.f32.mrf.mxu0
        %v678 = vadd.f32 %v587, %v677
        %679 = vmatmul.bf16.gmra.mxu0 %v646
        %v680 = vpop.f32.mrf.mxu0
        %v681 = vadd.f32 %v587, %v680
        %v682 = vpop.f32.mrf.mxu0
        %v683 = vadd.f32 %v587, %v682
        %684 = vmatmul.bf16.gmra.mxu0 %v649
        %v685 = vpop.f32.mrf.mxu0
        %v686 = vadd.f32 %v587, %v685
        %v687 = vpop.f32.mrf.mxu0
        %v688 = vadd.f32 %v587, %v687
        %689 = vmatmul.bf16.gmra.mxu0 %v652
        %v690 = vpop.f32.mrf.mxu0
        %v691 = vadd.f32 %v587, %v690
        %v692 = vpop.f32.mrf.mxu0
        %v693 = vadd.f32 %v587, %v692
        %694 = vmatmul.bf16.gmra.mxu0 %v655
        %v695 = vpop.f32.mrf.mxu0
        %v696 = vadd.f32 %v587, %v695
        %v697 = vpop.f32.mrf.mxu0
        %v698 = vadd.f32 %v587, %v697
        %699 = vmatmul.bf16.gmra.mxu0 %v658
        %v700 = vpop.f32.mrf.mxu0
        %v701 = vadd.f32 %v587, %v700
        %v702 = vpop.f32.mrf.mxu0
        %v703 = vadd.f32 %v587, %v702
        %704 = vmatmul.bf16.gmra.mxu0 %v661
        %v705 = vpop.f32.mrf.mxu0
        %v706 = vadd.f32 %v587, %v705
        %v707 = vpop.f32.mrf.mxu0
        %v708 = vadd.f32 %v587, %v707
        %709 = vmatmul.bf16.gmra.mxu0 %v664
        %v710 = vpop.f32.mrf.mxu0
        %v711 = vadd.f32 %v587, %v710
        %v712 = vpop.f32.mrf.mxu0
        %v713 = vadd.f32 %v587, %v712
        %714 = vdwg.mxu0
        %v715 = vpack.c.bf16 %v676, %v676
        %v716 = vpack.c.bf16 %v678, %v678
        %v717 = vpack.c.bf16 %v681, %v681
        %v718 = vpack.c.bf16 %v683, %v683
        %v719 = vpack.c.bf16 %v686, %v686
        %v720 = vpack.c.bf16 %v688, %v688
        %v721 = vpack.c.bf16 %v691, %v691
        %v722 = vpack.c.bf16 %v693, %v693
        %v723 = vpack.c.bf16 %v696, %v696
        %v724 = vpack.c.bf16 %v698, %v698
        %v725 = vpack.c.bf16 %v701, %v701
        %v726 = vpack.c.bf16 %v703, %v703
        %v727 = vpack.c.bf16 %v706, %v706
        %v728 = vpack.c.bf16 %v708, %v708
        %v729 = vpack.c.bf16 %v711, %v711
        %v730 = vpack.c.bf16 %v713, %v713
        %v731 = vld [vmem:[#allocation8] sm:$0xf]
        %v732 = vld [vmem:[#allocation8 + $0x4] sm:$0xf]
        %v733 = vld [vmem:[#allocation8 + $0x8] sm:$0xf]
        %v734 = vld [vmem:[#allocation8 + $0xc] sm:$0xf]
        %v735 = vld [vmem:[%s4] sm:$0x1]
        %v737 = vperm.slane %v735, 0
        %v743 = vunpack.c.l.b16 %v731
        %v744 = vunpack.c.l.b16 %v732
        %v745 = vunpack.c.l.b16 %v733
        %v746 = vunpack.c.l.b16 %v734
        %v747 = vpack.c.b16 %v744, %v743
        %v748 = vpack.c.b16 %v746, %v745
        %751 = vmatpush.bf16.msra.mxu0 0
        %752 = vmatpush.bf16.msra.mxu0 0
        %753 = vmatpush.bf16.msra.mxu0 0
        %754 = vmatpush.bf16.msra.mxu0 0
        %755 = vmatpush.bf16.msra.mxu0 0
        %756 = vmatpush.bf16.msra.mxu0 0
        %757 = vmatpush.bf16.msra.mxu0 %v748
        %758 = vmatpush.bf16.msra.mxu0 %v747
        %759 = vmatmul.bf16.gmra.mxu0 %v643
        %v760 = vpop.f32.mrf.mxu0
        %v761 = vadd.f32 %v737, %v760
        %v762 = vpop.f32.mrf.mxu0
        %v763 = vadd.f32 %v737, %v762
        %764 = vmatmul.bf16.gmra.mxu0 %v646
        %v765 = vpop.f32.mrf.mxu0
        %v766 = vadd.f32 %v737, %v765
        %v767 = vpop.f32.mrf.mxu0
        %v768 = vadd.f32 %v737, %v767
        %769 = vmatmul.bf16.gmra.mxu0 %v649
        %v770 = vpop.f32.mrf.mxu0
        %v771 = vadd.f32 %v737, %v770
        %v772 = vpop.f32.mrf.mxu0
        %v773 = vadd.f32 %v737, %v772
        %774 = vmatmul.bf16.gmra.mxu0 %v652
        %v775 = vpop.f32.mrf.mxu0
        %v776 = vadd.f32 %v737, %v775
        %v777 = vpop.f32.mrf.mxu0
        %v778 = vadd.f32 %v737, %v777
        %779 = vmatmul.bf16.gmra.mxu0 %v655
        %v780 = vpop.f32.mrf.mxu0
        %v781 = vadd.f32 %v737, %v780
        %v782 = vpop.f32.mrf.mxu0
        %v783 = vadd.f32 %v737, %v782
        %784 = vmatmul.bf16.gmra.mxu0 %v658
        %v785 = vpop.f32.mrf.mxu0
        %v786 = vadd.f32 %v737, %v785
        %v787 = vpop.f32.mrf.mxu0
        %v788 = vadd.f32 %v737, %v787
        %789 = vmatmul.bf16.gmra.mxu0 %v661
        %v790 = vpop.f32.mrf.mxu0
        %v791 = vadd.f32 %v737, %v790
        %v792 = vpop.f32.mrf.mxu0
        %v793 = vadd.f32 %v737, %v792
        %794 = vmatmul.bf16.gmra.mxu0 %v664
        %v795 = vpop.f32.mrf.mxu0
        %v796 = vadd.f32 %v737, %v795
        %v797 = vpop.f32.mrf.mxu0
        %v798 = vadd.f32 %v737, %v797
        %799 = vdwg.mxu0
        %v800 = vpack.c.bf16 %v761, %v761
        %v801 = vpack.c.bf16 %v763, %v763
        %v802 = vpack.c.bf16 %v766, %v766
        %v803 = vpack.c.bf16 %v768, %v768
        %v804 = vpack.c.bf16 %v771, %v771
        %v805 = vpack.c.bf16 %v773, %v773
        %v806 = vpack.c.bf16 %v776, %v776
        %v807 = vpack.c.bf16 %v778, %v778
        %v808 = vpack.c.bf16 %v781, %v781
        %v809 = vpack.c.bf16 %v783, %v783
        %v810 = vpack.c.bf16 %v786, %v786
        %v811 = vpack.c.bf16 %v788, %v788
        %v812 = vpack.c.bf16 %v791, %v791
        %v813 = vpack.c.bf16 %v793, %v793
        %v814 = vpack.c.bf16 %v796, %v796
        %v815 = vpack.c.bf16 %v798, %v798
        %v816 = vld [vmem:[#allocation9] sm:$0xf]
        %v817 = vld [vmem:[#allocation9 + $0x4] sm:$0xf]
        %v818 = vld [vmem:[#allocation9 + $0x8] sm:$0xf]
        %v819 = vld [vmem:[#allocation9 + $0xc] sm:$0xf]
        %v820 = vld [vmem:[%s6] sm:$0x1]
        %v822 = vperm.slane %v820, 0
        %v828 = vunpack.c.l.b16 %v816
        %v829 = vunpack.c.l.b16 %v817
        %v830 = vunpack.c.l.b16 %v818
        %v831 = vunpack.c.l.b16 %v819
        %v832 = vpack.c.b16 %v829, %v828
        %v833 = vpack.c.b16 %v831, %v830
        %836 = vmatpush.bf16.msra.mxu0 0
        %837 = vmatpush.bf16.msra.mxu0 0
        %838 = vmatpush.bf16.msra.mxu0 0
        %839 = vmatpush.bf16.msra.mxu0 0
        %840 = vmatpush.bf16.msra.mxu0 0
        %841 = vmatpush.bf16.msra.mxu0 0
        %842 = vmatpush.bf16.msra.mxu0 %v833
        %843 = vmatpush.bf16.msra.mxu0 %v832
        %844 = vmatmul.bf16.gmra.mxu0 %v643
        %v845 = vpop.f32.mrf.mxu0
        %v846 = vadd.f32 %v822, %v845
        %v847 = vpop.f32.mrf.mxu0
        %v848 = vadd.f32 %v822, %v847
        %849 = vmatmul.bf16.gmra.mxu0 %v646
        %v850 = vpop.f32.mrf.mxu0
        %v851 = vadd.f32 %v822, %v850
        %v852 = vpop.f32.mrf.mxu0
        %v853 = vadd.f32 %v822, %v852
        %854 = vmatmul.bf16.gmra.mxu0 %v649
        %v855 = vpop.f32.mrf.mxu0
        %v856 = vadd.f32 %v822, %v855
        %v857 = vpop.f32.mrf.mxu0
        %v858 = vadd.f32 %v822, %v857
        %859 = vmatmul.bf16.gmra.mxu0 %v652
        %v860 = vpop.f32.mrf.mxu0
        %v861 = vadd.f32 %v822, %v860
        %v862 = vpop.f32.mrf.mxu0
        %v863 = vadd.f32 %v822, %v862
        %864 = vmatmul.bf16.gmra.mxu0 %v655
        %v865 = vpop.f32.mrf.mxu0
        %v866 = vadd.f32 %v822, %v865
        %v867 = vpop.f32.mrf.mxu0
        %v868 = vadd.f32 %v822, %v867
        %869 = vmatmul.bf16.gmra.mxu0 %v658
        %v870 = vpop.f32.mrf.mxu0
        %v871 = vadd.f32 %v822, %v870
        %v872 = vpop.f32.mrf.mxu0
        %v873 = vadd.f32 %v822, %v872
        %874 = vmatmul.bf16.gmra.mxu0 %v661
        %v875 = vpop.f32.mrf.mxu0
        %v876 = vadd.f32 %v822, %v875
        %v877 = vpop.f32.mrf.mxu0
        %v878 = vadd.f32 %v822, %v877
        %879 = vmatmul.bf16.gmra.mxu0 %v664
        %v880 = vpop.f32.mrf.mxu0
        %v881 = vadd.f32 %v822, %v880
        %v882 = vpop.f32.mrf.mxu0
        %v883 = vadd.f32 %v822, %v882
        %884 = vdwg.mxu0
        %v885 = vpack.c.bf16 %v846, %v846
        %v886 = vpack.c.bf16 %v848, %v848
        %v887 = vpack.c.bf16 %v851, %v851
        %v888 = vpack.c.bf16 %v853, %v853
        %v889 = vpack.c.bf16 %v856, %v856
        %v890 = vpack.c.bf16 %v858, %v858
        %v891 = vpack.c.bf16 %v861, %v861
        %v892 = vpack.c.bf16 %v863, %v863
        %v893 = vpack.c.bf16 %v866, %v866
        %v894 = vpack.c.bf16 %v868, %v868
        %v895 = vpack.c.bf16 %v871, %v871
        %v896 = vpack.c.bf16 %v873, %v873
        %v897 = vpack.c.bf16 %v876, %v876
        %v898 = vpack.c.bf16 %v878, %v878
        %v899 = vpack.c.bf16 %v881, %v881
        %v900 = vpack.c.bf16 %v883, %v883
        %v901 = vld [vmem:[#allocation12] sm:$0xff]
        %v902 = vld [vmem:[#allocation12 + $0x8] sm:$0xff]
        %v903 = vld [vmem:[#allocation12 + $0x10] sm:$0xff]
        %v904 = vld [vmem:[#allocation12 + $0x18] sm:$0xff]
        %v905 = vld [vmem:[#allocation12 + $0x20] sm:$0xff]
        %v906 = vld [vmem:[#allocation12 + $0x28] sm:$0xff]
        %v907 = vld [vmem:[#allocation12 + $0x30] sm:$0xff]
        %v908 = vld [vmem:[#allocation12 + $0x38] sm:$0xff]
        %v909 = vld [vmem:[#allocation12 + $0x40] sm:$0xff]
        %v910 = vld [vmem:[#allocation12 + $0x48] sm:$0xff]
        %v911 = vld [vmem:[#allocation12 + $0x50] sm:$0xff]
        %v912 = vld [vmem:[#allocation12 + $0x58] sm:$0xff]
        %v913 = vld [vmem:[#allocation12 + $0x60] sm:$0xff]
        %v914 = vld [vmem:[#allocation12 + $0x68] sm:$0xff]
        %v915 = vld [vmem:[#allocation12 + $0x70] sm:$0xff]
        %v916 = vld [vmem:[#allocation12 + $0x78] sm:$0xff]
        %v917 = vld [vmem:[#allocation11] sm:$0xff]
        %v918 = vld [vmem:[#allocation11 + $0x8] sm:$0xff]
        %v921 = vunpack.c.l.b16 %v715
        %v922 = vunpack.c.l.b16 %v716
        %v923 = vpack.c.b16 %v922, %v921
        %v926 = vunpack.c.l.b16 %v800
        %v927 = vunpack.c.l.b16 %v801
        %v928 = vpack.c.b16 %v927, %v926
        %vm929 = vcmask 64512
        %v931 = vsel %vm929, %v923, 0
        %v934 = vsel %vm929, %v928, 0
        %936 = vmatpush.bf16.xpose.msra.mxu0 0
        %937 = vmatpush.bf16.xpose.msra.mxu0 0
        %938 = vmatpush.bf16.xpose.msra.mxu0 0
        %939 = vmatpush.bf16.xpose.msra.mxu0 0
        %940 = vmatpush.bf16.xpose.msra.mxu0 0
        %941 = vmatpush.bf16.xpose.msra.mxu0 0
        %942 = vmatpush.bf16.xpose.msra.mxu0 0
        %943 = vmatpush.bf16.xpose.msra.mxu0 %v934
        %944 = vmatmul.bf16.gmra.mxu0 %v931
        %v945 = vpop.f32.mrf.mxu0
        %v946 = vadd.f32 %v917, %v945
        %v947 = vpop.f32.mrf.mxu0
        %v948 = vadd.f32 %v918, %v947
        %949 = vdwg.mxu0
        %v952 = vunpack.c.l.b16 %v717
        %v953 = vunpack.c.l.b16 %v718
        %v954 = vpack.c.b16 %v953, %v952
        %v957 = vunpack.c.l.b16 %v802
        %v958 = vunpack.c.l.b16 %v803
        %v959 = vpack.c.b16 %v958, %v957
        %v961 = vsel %vm929, %v954, 0
        %v964 = vsel %vm929, %v959, 0
        %966 = vmatpush.bf16.xpose.msra.mxu0 0
        %967 = vmatpush.bf16.xpose.msra.mxu0 0
        %968 = vmatpush.bf16.xpose.msra.mxu0 0
        %969 = vmatpush.bf16.xpose.msra.mxu0 0
        %970 = vmatpush.bf16.xpose.msra.mxu0 0
        %971 = vmatpush.bf16.xpose.msra.mxu0 0
        %972 = vmatpush.bf16.xpose.msra.mxu0 0
        %973 = vmatpush.bf16.xpose.msra.mxu0 %v964
        %974 = vmatmul.bf16.gmra.mxu0 %v961
        %v975 = vpop.f32.mrf.mxu0
        %v976 = vadd.f32 %v917, %v975
        %v977 = vpop.f32.mrf.mxu0
        %v978 = vadd.f32 %v918, %v977
        %979 = vdwg.mxu0
        %v982 = vunpack.c.l.b16 %v719
        %v983 = vunpack.c.l.b16 %v720
        %v984 = vpack.c.b16 %v983, %v982
        %v987 = vunpack.c.l.b16 %v804
        %v988 = vunpack.c.l.b16 %v805
        %v989 = vpack.c.b16 %v988, %v987
        %v991 = vsel %vm929, %v984, 0
        %v994 = vsel %vm929, %v989, 0
        %996 = vmatpush.bf16.xpose.msra.mxu0 0
        %997 = vmatpush.bf16.xpose.msra.mxu0 0
        %998 = vmatpush.bf16.xpose.msra.mxu0 0
        %999 = vmatpush.bf16.xpose.msra.mxu0 0
        %1000 = vmatpush.bf16.xpose.msra.mxu0 0
        %1001 = vmatpush.bf16.xpose.msra.mxu0 0
        %1002 = vmatpush.bf16.xpose.msra.mxu0 0
        %1003 = vmatpush.bf16.xpose.msra.mxu0 %v994
        %1004 = vmatmul.bf16.gmra.mxu0 %v991
        %v1005 = vpop.f32.mrf.mxu0
        %v1006 = vadd.f32 %v917, %v1005
        %v1007 = vpop.f32.mrf.mxu0
        %v1008 = vadd.f32 %v918, %v1007
        %1009 = vdwg.mxu0
        %v1012 = vunpack.c.l.b16 %v721
        %v1013 = vunpack.c.l.b16 %v722
        %v1014 = vpack.c.b16 %v1013, %v1012
        %v1017 = vunpack.c.l.b16 %v806
        %v1018 = vunpack.c.l.b16 %v807
        %v1019 = vpack.c.b16 %v1018, %v1017
        %v1021 = vsel %vm929, %v1014, 0
        %v1024 = vsel %vm929, %v1019, 0
        %1026 = vmatpush.bf16.xpose.msra.mxu0 0
        %1027 = vmatpush.bf16.xpose.msra.mxu0 0
        %1028 = vmatpush.bf16.xpose.msra.mxu0 0
        %1029 = vmatpush.bf16.xpose.msra.mxu0 0
        %1030 = vmatpush.bf16.xpose.msra.mxu0 0
        %1031 = vmatpush.bf16.xpose.msra.mxu0 0
        %1032 = vmatpush.bf16.xpose.msra.mxu0 0
        %1033 = vmatpush.bf16.xpose.msra.mxu0 %v1024
        %1034 = vmatmul.bf16.gmra.mxu0 %v1021
        %v1035 = vpop.f32.mrf.mxu0
        %v1036 = vadd.f32 %v917, %v1035
        %v1037 = vpop.f32.mrf.mxu0
        %v1038 = vadd.f32 %v918, %v1037
        %1039 = vdwg.mxu0
        %v1042 = vunpack.c.l.b16 %v723
        %v1043 = vunpack.c.l.b16 %v724
        %v1044 = vpack.c.b16 %v1043, %v1042
        %v1047 = vunpack.c.l.b16 %v808
        %v1048 = vunpack.c.l.b16 %v809
        %v1049 = vpack.c.b16 %v1048, %v1047
        %v1051 = vsel %vm929, %v1044, 0
        %v1054 = vsel %vm929, %v1049, 0
        %1056 = vmatpush.bf16.xpose.msra.mxu0 0
        %1057 = vmatpush.bf16.xpose.msra.mxu0 0
        %1058 = vmatpush.bf16.xpose.msra.mxu0 0
        %1059 = vmatpush.bf16.xpose.msra.mxu0 0
        %1060 = vmatpush.bf16.xpose.msra.mxu0 0
        %1061 = vmatpush.bf16.xpose.msra.mxu0 0
        %1062 = vmatpush.bf16.xpose.msra.mxu0 0
        %1063 = vmatpush.bf16.xpose.msra.mxu0 %v1054
        %1064 = vmatmul.bf16.gmra.mxu0 %v1051
        %v1065 = vpop.f32.mrf.mxu0
        %v1066 = vadd.f32 %v917, %v1065
        %v1067 = vpop.f32.mrf.mxu0
        %v1068 = vadd.f32 %v918, %v1067
        %1069 = vdwg.mxu0
        %v1072 = vunpack.c.l.b16 %v725
        %v1073 = vunpack.c.l.b16 %v726
        %v1074 = vpack.c.b16 %v1073, %v1072
        %v1077 = vunpack.c.l.b16 %v810
        %v1078 = vunpack.c.l.b16 %v811
        %v1079 = vpack.c.b16 %v1078, %v1077
        %v1081 = vsel %vm929, %v1074, 0
        %v1084 = vsel %vm929, %v1079, 0
        %1086 = vmatpush.bf16.xpose.msra.mxu0 0
        %1087 = vmatpush.bf16.xpose.msra.mxu0 0
        %1088 = vmatpush.bf16.xpose.msra.mxu0 0
        %1089 = vmatpush.bf16.xpose.msra.mxu0 0
        %1090 = vmatpush.bf16.xpose.msra.mxu0 0
        %1091 = vmatpush.bf16.xpose.msra.mxu0 0
        %1092 = vmatpush.bf16.xpose.msra.mxu0 0
        %1093 = vmatpush.bf16.xpose.msra.mxu0 %v1084
        %1094 = vmatmul.bf16.gmra.mxu0 %v1081
        %v1095 = vpop.f32.mrf.mxu0
        %v1096 = vadd.f32 %v917, %v1095
        %v1097 = vpop.f32.mrf.mxu0
        %v1098 = vadd.f32 %v918, %v1097
        %1099 = vdwg.mxu0
        %v1102 = vunpack.c.l.b16 %v727
        %v1103 = vunpack.c.l.b16 %v728
        %v1104 = vpack.c.b16 %v1103, %v1102
        %v1107 = vunpack.c.l.b16 %v812
        %v1108 = vunpack.c.l.b16 %v813
        %v1109 = vpack.c.b16 %v1108, %v1107
        %v1111 = vsel %vm929, %v1104, 0
        %v1114 = vsel %vm929, %v1109, 0
        %1116 = vmatpush.bf16.xpose.msra.mxu0 0
        %1117 = vmatpush.bf16.xpose.msra.mxu0 0
        %1118 = vmatpush.bf16.xpose.msra.mxu0 0
        %1119 = vmatpush.bf16.xpose.msra.mxu0 0
        %1120 = vmatpush.bf16.xpose.msra.mxu0 0
        %1121 = vmatpush.bf16.xpose.msra.mxu0 0
        %1122 = vmatpush.bf16.xpose.msra.mxu0 0
        %1123 = vmatpush.bf16.xpose.msra.mxu0 %v1114
        %1124 = vmatmul.bf16.gmra.mxu0 %v1111
        %v1125 = vpop.f32.mrf.mxu0
        %v1126 = vadd.f32 %v917, %v1125
        %v1127 = vpop.f32.mrf.mxu0
        %v1128 = vadd.f32 %v918, %v1127
        %1129 = vdwg.mxu0
        %v1132 = vunpack.c.l.b16 %v729
        %v1133 = vunpack.c.l.b16 %v730
        %v1134 = vpack.c.b16 %v1133, %v1132
        %v1137 = vunpack.c.l.b16 %v814
        %v1138 = vunpack.c.l.b16 %v815
        %v1139 = vpack.c.b16 %v1138, %v1137
        %v1141 = vsel %vm929, %v1134, 0
        %v1144 = vsel %vm929, %v1139, 0
        %1146 = vmatpush.bf16.xpose.msra.mxu0 0
        %1147 = vmatpush.bf16.xpose.msra.mxu0 0
        %1148 = vmatpush.bf16.xpose.msra.mxu0 0
        %1149 = vmatpush.bf16.xpose.msra.mxu0 0
        %1150 = vmatpush.bf16.xpose.msra.mxu0 0
        %1151 = vmatpush.bf16.xpose.msra.mxu0 0
        %1152 = vmatpush.bf16.xpose.msra.mxu0 0
        %1153 = vmatpush.bf16.xpose.msra.mxu0 %v1144
        %1154 = vmatmul.bf16.gmra.mxu0 %v1141
        %v1155 = vpop.f32.mrf.mxu0
        %v1156 = vadd.f32 %v917, %v1155
        %v1157 = vpop.f32.mrf.mxu0
        %v1158 = vadd.f32 %v918, %v1157
        %1159 = vdwg.mxu0
        %v1160 = vadd.f32 %v946, %v901
        %v1161 = vadd.f32 %v948, %v902
        %v1162 = vadd.f32 %v976, %v903
        %v1163 = vadd.f32 %v978, %v904
        %v1164 = vadd.f32 %v1006, %v905
        %v1165 = vadd.f32 %v1008, %v906
        %v1166 = vadd.f32 %v1036, %v907
        %v1167 = vadd.f32 %v1038, %v908
        %v1168 = vadd.f32 %v1066, %v909
        %v1169 = vadd.f32 %v1068, %v910
        %v1170 = vadd.f32 %v1096, %v911
        %v1171 = vadd.f32 %v1098, %v912
        %v1172 = vadd.f32 %v1126, %v913
        %v1173 = vadd.f32 %v1128, %v914
        %v1174 = vadd.f32 %v1156, %v915
        %v1175 = vadd.f32 %v1158, %v916
        %vm1176 = vcmask 130048
        %v1177 = vsel %vm1176, %v1160, -inf
        %1178 = vmax.xlane.f32.xlu0 %v1177
        %v1179 = vpop.xlane.xlu0 %1178
        %v1180 = vsel %vm1176, %v1161, -inf
        %1181 = vmax.xlane.f32.xlu0 %v1180
        %v1182 = vpop.xlane.xlu0 %1181
        %v1183 = vsel %vm1176, %v1162, -inf
        %1184 = vmax.xlane.f32.xlu0 %v1183
        %v1185 = vpop.xlane.xlu0 %1184
        %v1186 = vsel %vm1176, %v1163, -inf
        %1187 = vmax.xlane.f32.xlu0 %v1186
        %v1188 = vpop.xlane.xlu0 %1187
        %v1189 = vsel %vm1176, %v1164, -inf
        %1190 = vmax.xlane.f32.xlu0 %v1189
        %v1191 = vpop.xlane.xlu0 %1190
        %v1192 = vsel %vm1176, %v1165, -inf
        %1193 = vmax.xlane.f32.xlu0 %v1192
        %v1194 = vpop.xlane.xlu0 %1193
        %v1195 = vsel %vm1176, %v1166, -inf
        %1196 = vmax.xlane.f32.xlu0 %v1195
        %v1197 = vpop.xlane.xlu0 %1196
        %v1198 = vsel %vm1176, %v1167, -inf
        %1199 = vmax.xlane.f32.xlu0 %v1198
        %v1200 = vpop.xlane.xlu0 %1199
        %v1201 = vsel %vm1176, %v1168, -inf
        %1202 = vmax.xlane.f32.xlu0 %v1201
        %v1203 = vpop.xlane.xlu0 %1202
        %v1204 = vsel %vm1176, %v1169, -inf
        %1205 = vmax.xlane.f32.xlu0 %v1204
        %v1206 = vpop.xlane.xlu0 %1205
        %v1207 = vsel %vm1176, %v1170, -inf
        %1208 = vmax.xlane.f32.xlu0 %v1207
        %v1209 = vpop.xlane.xlu0 %1208
        %v1210 = vsel %vm1176, %v1171, -inf
        %1211 = vmax.xlane.f32.xlu0 %v1210
        %v1212 = vpop.xlane.xlu0 %1211
        %v1213 = vsel %vm1176, %v1172, -inf
        %1214 = vmax.xlane.f32.xlu0 %v1213
        %v1215 = vpop.xlane.xlu0 %1214
        %v1216 = vsel %vm1176, %v1173, -inf
        %1217 = vmax.xlane.f32.xlu0 %v1216
        %v1218 = vpop.xlane.xlu0 %1217
        %v1219 = vsel %vm1176, %v1174, -inf
        %1220 = vmax.xlane.f32.xlu0 %v1219
        %v1221 = vpop.xlane.xlu0 %1220
        %v1222 = vsel %vm1176, %v1175, -inf
        %1223 = vmax.xlane.f32.xlu0 %v1222
        %v1224 = vpop.xlane.xlu0 %1223
        %v1225 = vsub.f32 %v1160, %v1179
        %v1226 = vsub.f32 %v1161, %v1182
        %v1227 = vsub.f32 %v1162, %v1185
        %v1228 = vsub.f32 %v1163, %v1188
        %v1229 = vsub.f32 %v1164, %v1191
        %v1230 = vsub.f32 %v1165, %v1194
        %v1231 = vsub.f32 %v1166, %v1197
        %v1232 = vsub.f32 %v1167, %v1200
        %v1233 = vsub.f32 %v1168, %v1203
        %v1234 = vsub.f32 %v1169, %v1206
        %v1235 = vsub.f32 %v1170, %v1209
        %v1236 = vsub.f32 %v1171, %v1212
        %v1237 = vsub.f32 %v1172, %v1215
        %v1238 = vsub.f32 %v1173, %v1218
        %v1239 = vsub.f32 %v1174, %v1221
        %v1240 = vsub.f32 %v1175, %v1224
        %v1241 = vmul.f32 %v1225, 1.442695
        %v1242 = vpow.pop %v1241
        %v1243 = vmul.f32 %v1226, 1.442695
        %v1244 = vpow.pop %v1243
        %v1245 = vmul.f32 %v1227, 1.442695
        %v1246 = vpow.pop %v1245
        %v1247 = vmul.f32 %v1228, 1.442695
        %v1248 = vpow.pop %v1247
        %v1249 = vmul.f32 %v1229, 1.442695
        %v1250 = vpow.pop %v1249
        %v1251 = vmul.f32 %v1230, 1.442695
        %v1252 = vpow.pop %v1251
        %v1253 = vmul.f32 %v1231, 1.442695
        %v1254 = vpow.pop %v1253
        %v1255 = vmul.f32 %v1232, 1.442695
        %v1256 = vpow.pop %v1255
        %v1257 = vmul.f32 %v1233, 1.442695
        %v1258 = vpow.pop %v1257
        %v1259 = vmul.f32 %v1234, 1.442695
        %v1260 = vpow.pop %v1259
        %v1261 = vmul.f32 %v1235, 1.442695
        %v1262 = vpow.pop %v1261
        %v1263 = vmul.f32 %v1236, 1.442695
        %v1264 = vpow.pop %v1263
        %v1265 = vmul.f32 %v1237, 1.442695
        %v1266 = vpow.pop %v1265
        %v1267 = vmul.f32 %v1238, 1.442695
        %v1268 = vpow.pop %v1267
        %v1269 = vmul.f32 %v1239, 1.442695
        %v1270 = vpow.pop %v1269
        %v1271 = vmul.f32 %v1240, 1.442695
        %v1272 = vpow.pop %v1271
        %v1273 = vsel %vm1176, %v1242, 0.0
        %1274 = vadd.xlane.f32.xlu0 %v1273
        %v1275 = vpop.xlane.xlu0 %1274
        %v1276 = vsel %vm1176, %v1244, 0.0
        %1277 = vadd.xlane.f32.xlu0 %v1276
        %v1278 = vpop.xlane.xlu0 %1277
        %v1279 = vsel %vm1176, %v1246, 0.0
        %1280 = vadd.xlane.f32.xlu0 %v1279
        %v1281 = vpop.xlane.xlu0 %1280
        %v1282 = vsel %vm1176, %v1248, 0.0
        %1283 = vadd.xlane.f32.xlu0 %v1282
        %v1284 = vpop.xlane.xlu0 %1283
        %v1285 = vsel %vm1176, %v1250, 0.0
        %1286 = vadd.xlane.f32.xlu0 %v1285
        %v1287 = vpop.xlane.xlu0 %1286
        %v1288 = vsel %vm1176, %v1252, 0.0
        %1289 = vadd.xlane.f32.xlu0 %v1288
        %v1290 = vpop.xlane.xlu0 %1289
        %v1291 = vsel %vm1176, %v1254, 0.0
        %1292 = vadd.xlane.f32.xlu0 %v1291
        %v1293 = vpop.xlane.xlu0 %1292
        %v1294 = vsel %vm1176, %v1256, 0.0
        %1295 = vadd.xlane.f32.xlu0 %v1294
        %v1296 = vpop.xlane.xlu0 %1295
        %v1297 = vsel %vm1176, %v1258, 0.0
        %1298 = vadd.xlane.f32.xlu0 %v1297
        %v1299 = vpop.xlane.xlu0 %1298
        %v1300 = vsel %vm1176, %v1260, 0.0
        %1301 = vadd.xlane.f32.xlu0 %v1300
        %v1302 = vpop.xlane.xlu0 %1301
        %v1303 = vsel %vm1176, %v1262, 0.0
        %1304 = vadd.xlane.f32.xlu0 %v1303
        %v1305 = vpop.xlane.xlu0 %1304
        %v1306 = vsel %vm1176, %v1264, 0.0
        %1307 = vadd.xlane.f32.xlu0 %v1306
        %v1308 = vpop.xlane.xlu0 %1307
        %v1309 = vsel %vm1176, %v1266, 0.0
        %1310 = vadd.xlane.f32.xlu0 %v1309
        %v1311 = vpop.xlane.xlu0 %1310
        %v1312 = vsel %vm1176, %v1268, 0.0
        %1313 = vadd.xlane.f32.xlu0 %v1312
        %v1314 = vpop.xlane.xlu0 %1313
        %v1315 = vsel %vm1176, %v1270, 0.0
        %1316 = vadd.xlane.f32.xlu0 %v1315
        %v1317 = vpop.xlane.xlu0 %1316
        %v1318 = vsel %vm1176, %v1272, 0.0
        %1319 = vadd.xlane.f32.xlu0 %v1318
        %v1320 = vpop.xlane.xlu0 %1319
        %v1321 = vrcp.pop %v1275
        %v1322 = vrcp.pop %v1278
        %v1323 = vrcp.pop %v1281
        %v1324 = vrcp.pop %v1284
        %v1325 = vrcp.pop %v1287
        %v1326 = vrcp.pop %v1290
        %v1327 = vrcp.pop %v1293
        %v1328 = vrcp.pop %v1296
        %v1329 = vrcp.pop %v1299
        %v1330 = vrcp.pop %v1302
        %v1331 = vrcp.pop %v1305
        %v1332 = vrcp.pop %v1308
        %v1333 = vrcp.pop %v1311
        %v1334 = vrcp.pop %v1314
        %v1335 = vrcp.pop %v1317
        %v1336 = vrcp.pop %v1320
        %v1337 = vmul.f32 %v1242, %v1321
        %v1338 = vmul.f32 %v1244, %v1322
        %v1339 = vmul.f32 %v1246, %v1323
        %v1340 = vmul.f32 %v1248, %v1324
        %v1341 = vmul.f32 %v1250, %v1325
        %v1342 = vmul.f32 %v1252, %v1326
        %v1343 = vmul.f32 %v1254, %v1327
        %v1344 = vmul.f32 %v1256, %v1328
        %v1345 = vmul.f32 %v1258, %v1329
        %v1346 = vmul.f32 %v1260, %v1330
        %v1347 = vmul.f32 %v1262, %v1331
        %v1348 = vmul.f32 %v1264, %v1332
        %v1349 = vmul.f32 %v1266, %v1333
        %v1350 = vmul.f32 %v1268, %v1334
        %v1351 = vmul.f32 %v1270, %v1335
        %v1352 = vmul.f32 %v1272, %v1336
        %1353 = vst.msk [vmem:[%s544] sm:$0xff] %vm1176, %v1337
        %1354 = vst.msk [vmem:[%s544 + $0x8] sm:$0xff] %vm1176, %v1338
        %1355 = vst.msk [vmem:[%s544 + $0x40] sm:$0xff] %vm1176, %v1339
        %1356 = vst.msk [vmem:[%s544 + $0x48] sm:$0xff] %vm1176, %v1340
        %1357 = vst.msk [vmem:[%s544 + $0x80] sm:$0xff] %vm1176, %v1341
        %1358 = vst.msk [vmem:[%s544 + $0x88] sm:$0xff] %vm1176, %v1342
        %1359 = vst.msk [vmem:[%s544 + $0xc0] sm:$0xff] %vm1176, %v1343
        %1360 = vst.msk [vmem:[%s544 + $0xc8] sm:$0xff] %vm1176, %v1344
        %1361 = vst.msk [vmem:[%s544 + $0x100] sm:$0xff] %vm1176, %v1345
        %1362 = vst.msk [vmem:[%s544 + $0x108] sm:$0xff] %vm1176, %v1346
        %1363 = vst.msk [vmem:[%s544 + $0x140] sm:$0xff] %vm1176, %v1347
        %1364 = vst.msk [vmem:[%s544 + $0x148] sm:$0xff] %vm1176, %v1348
        %1365 = vst.msk [vmem:[%s544 + $0x180] sm:$0xff] %vm1176, %v1349
        %1366 = vst.msk [vmem:[%s544 + $0x188] sm:$0xff] %vm1176, %v1350
        %1367 = vst.msk [vmem:[%s544 + $0x1c0] sm:$0xff] %vm1176, %v1351
        %1368 = vst.msk [vmem:[%s544 + $0x1c8] sm:$0xff] %vm1176, %v1352
        %v1369 = vpack.c.bf16 %v1337, %v1337
        %v1370 = vpack.c.bf16 %v1338, %v1338
        %v1371 = vpack.c.bf16 %v1339, %v1339
        %v1372 = vpack.c.bf16 %v1340, %v1340
        %v1373 = vpack.c.bf16 %v1341, %v1341
        %v1374 = vpack.c.bf16 %v1342, %v1342
        %v1375 = vpack.c.bf16 %v1343, %v1343
        %v1376 = vpack.c.bf16 %v1344, %v1344
        %v1377 = vpack.c.bf16 %v1345, %v1345
        %v1378 = vpack.c.bf16 %v1346, %v1346
        %v1379 = vpack.c.bf16 %v1347, %v1347
        %v1380 = vpack.c.bf16 %v1348, %v1348
        %v1381 = vpack.c.bf16 %v1349, %v1349
        %v1382 = vpack.c.bf16 %v1350, %v1350
        %v1383 = vpack.c.bf16 %v1351, %v1351
        %v1384 = vpack.c.bf16 %v1352, %v1352
        %v1387 = vunpack.c.l.b16 %v1369
        %v1388 = vunpack.c.l.b16 %v1370
        %v1389 = vpack.c.b16 %v1388, %v1387
        %v1392 = vunpack.c.l.b16 %v885
        %v1393 = vunpack.c.l.b16 %v886
        %v1394 = vpack.c.b16 %v1393, %v1392
        %v1397 = vsel %vm1176, %v1389, 0
        %1399 = vmatpush.bf16.msra.mxu0 0
        %1400 = vmatpush.bf16.msra.mxu0 0
        %1401 = vmatpush.bf16.msra.mxu0 0
        %1402 = vmatpush.bf16.msra.mxu0 0
        %1403 = vmatpush.bf16.msra.mxu0 0
        %1404 = vmatpush.bf16.msra.mxu0 0
        %1405 = vmatpush.bf16.msra.mxu0 0
        %1406 = vmatpush.bf16.msra.mxu0 %v1394
        %1407 = vmatmul.bf16.gmra.mxu0 %v1397
        %v1408 = vpop.f32.mrf.mxu0
        %v1409 = vadd.f32 0.0, %v1408
        %v1410 = vpop.f32.mrf.mxu0
        %v1411 = vadd.f32 0.0, %v1410
        %1412 = vdwg.mxu0
        %v1415 = vunpack.c.l.b16 %v1371
        %v1416 = vunpack.c.l.b16 %v1372
        %v1417 = vpack.c.b16 %v1416, %v1415
        %v1420 = vunpack.c.l.b16 %v887
        %v1421 = vunpack.c.l.b16 %v888
        %v1422 = vpack.c.b16 %v1421, %v1420
        %v1425 = vsel %vm1176, %v1417, 0
        %1427 = vmatpush.bf16.msra.mxu0 0
        %1428 = vmatpush.bf16.msra.mxu0 0
        %1429 = vmatpush.bf16.msra.mxu0 0
        %1430 = vmatpush.bf16.msra.mxu0 0
        %1431 = vmatpush.bf16.msra.mxu0 0
        %1432 = vmatpush.bf16.msra.mxu0 0
        %1433 = vmatpush.bf16.msra.mxu0 0
        %1434 = vmatpush.bf16.msra.mxu0 %v1422
        %1435 = vmatmul.bf16.gmra.mxu0 %v1425
        %v1436 = vpop.f32.mrf.mxu0
        %v1437 = vadd.f32 0.0, %v1436
        %v1438 = vpop.f32.mrf.mxu0
        %v1439 = vadd.f32 0.0, %v1438
        %1440 = vdwg.mxu0
        %v1443 = vunpack.c.l.b16 %v1373
        %v1444 = vunpack.c.l.b16 %v1374
        %v1445 = vpack.c.b16 %v1444, %v1443
        %v1448 = vunpack.c.l.b16 %v889
        %v1449 = vunpack.c.l.b16 %v890
        %v1450 = vpack.c.b16 %v1449, %v1448
        %v1453 = vsel %vm1176, %v1445, 0
        %1455 = vmatpush.bf16.msra.mxu0 0
        %1456 = vmatpush.bf16.msra.mxu0 0
        %1457 = vmatpush.bf16.msra.mxu0 0
        %1458 = vmatpush.bf16.msra.mxu0 0
        %1459 = vmatpush.bf16.msra.mxu0 0
        %1460 = vmatpush.bf16.msra.mxu0 0
        %1461 = vmatpush.bf16.msra.mxu0 0
        %1462 = vmatpush.bf16.msra.mxu0 %v1450
        %1463 = vmatmul.bf16.gmra.mxu0 %v1453
        %v1464 = vpop.f32.mrf.mxu0
        %v1465 = vadd.f32 0.0, %v1464
        %v1466 = vpop.f32.mrf.mxu0
        %v1467 = vadd.f32 0.0, %v1466
        %1468 = vdwg.mxu0
        %v1471 = vunpack.c.l.b16 %v1375
        %v1472 = vunpack.c.l.b16 %v1376
        %v1473 = vpack.c.b16 %v1472, %v1471
        %v1476 = vunpack.c.l.b16 %v891
        %v1477 = vunpack.c.l.b16 %v892
        %v1478 = vpack.c.b16 %v1477, %v1476
        %v1481 = vsel %vm1176, %v1473, 0
        %1483 = vmatpush.bf16.msra.mxu0 0
        %1484 = vmatpush.bf16.msra.mxu0 0
        %1485 = vmatpush.bf16.msra.mxu0 0
        %1486 = vmatpush.bf16.msra.mxu0 0
        %1487 = vmatpush.bf16.msra.mxu0 0
        %1488 = vmatpush.bf16.msra.mxu0 0
        %1489 = vmatpush.bf16.msra.mxu0 0
        %1490 = vmatpush.bf16.msra.mxu0 %v1478
        %1491 = vmatmul.bf16.gmra.mxu0 %v1481
        %v1492 = vpop.f32.mrf.mxu0
        %v1493 = vadd.f32 0.0, %v1492
        %v1494 = vpop.f32.mrf.mxu0
        %v1495 = vadd.f32 0.0, %v1494
        %1496 = vdwg.mxu0
        %v1499 = vunpack.c.l.b16 %v1377
        %v1500 = vunpack.c.l.b16 %v1378
        %v1501 = vpack.c.b16 %v1500, %v1499
        %v1504 = vunpack.c.l.b16 %v893
        %v1505 = vunpack.c.l.b16 %v894
        %v1506 = vpack.c.b16 %v1505, %v1504
        %v1509 = vsel %vm1176, %v1501, 0
        %1511 = vmatpush.bf16.msra.mxu0 0
        %1512 = vmatpush.bf16.msra.mxu0 0
        %1513 = vmatpush.bf16.msra.mxu0 0
        %1514 = vmatpush.bf16.msra.mxu0 0
        %1515 = vmatpush.bf16.msra.mxu0 0
        %1516 = vmatpush.bf16.msra.mxu0 0
        %1517 = vmatpush.bf16.msra.mxu0 0
        %1518 = vmatpush.bf16.msra.mxu0 %v1506
        %1519 = vmatmul.bf16.gmra.mxu0 %v1509
        %v1520 = vpop.f32.mrf.mxu0
        %v1521 = vadd.f32 0.0, %v1520
        %v1522 = vpop.f32.mrf.mxu0
        %v1523 = vadd.f32 0.0, %v1522
        %1524 = vdwg.mxu0
        %v1527 = vunpack.c.l.b16 %v1379
        %v1528 = vunpack.c.l.b16 %v1380
        %v1529 = vpack.c.b16 %v1528, %v1527
        %v1532 = vunpack.c.l.b16 %v895
        %v1533 = vunpack.c.l.b16 %v896
        %v1534 = vpack.c.b16 %v1533, %v1532
        %v1537 = vsel %vm1176, %v1529, 0
        %1539 = vmatpush.bf16.msra.mxu0 0
        %1540 = vmatpush.bf16.msra.mxu0 0
        %1541 = vmatpush.bf16.msra.mxu0 0
        %1542 = vmatpush.bf16.msra.mxu0 0
        %1543 = vmatpush.bf16.msra.mxu0 0
        %1544 = vmatpush.bf16.msra.mxu0 0
        %1545 = vmatpush.bf16.msra.mxu0 0
        %1546 = vmatpush.bf16.msra.mxu0 %v1534
        %1547 = vmatmul.bf16.gmra.mxu0 %v1537
        %v1548 = vpop.f32.mrf.mxu0
        %v1549 = vadd.f32 0.0, %v1548
        %v1550 = vpop.f32.mrf.mxu0
        %v1551 = vadd.f32 0.0, %v1550
        %1552 = vdwg.mxu0
        %v1555 = vunpack.c.l.b16 %v1381
        %v1556 = vunpack.c.l.b16 %v1382
        %v1557 = vpack.c.b16 %v1556, %v1555
        %v1560 = vunpack.c.l.b16 %v897
        %v1561 = vunpack.c.l.b16 %v898
        %v1562 = vpack.c.b16 %v1561, %v1560
        %v1565 = vsel %vm1176, %v1557, 0
        %1567 = vmatpush.bf16.msra.mxu0 0
        %1568 = vmatpush.bf16.msra.mxu0 0
        %1569 = vmatpush.bf16.msra.mxu0 0
        %1570 = vmatpush.bf16.msra.mxu0 0
        %1571 = vmatpush.bf16.msra.mxu0 0
        %1572 = vmatpush.bf16.msra.mxu0 0
        %1573 = vmatpush.bf16.msra.mxu0 0
        %1574 = vmatpush.bf16.msra.mxu0 %v1562
        %1575 = vmatmul.bf16.gmra.mxu0 %v1565
        %v1576 = vpop.f32.mrf.mxu0
        %v1577 = vadd.f32 0.0, %v1576
        %v1578 = vpop.f32.mrf.mxu0
        %v1579 = vadd.f32 0.0, %v1578
        %1580 = vdwg.mxu0
        %v1583 = vunpack.c.l.b16 %v1383
        %v1584 = vunpack.c.l.b16 %v1384
        %v1585 = vpack.c.b16 %v1584, %v1583
        %v1588 = vunpack.c.l.b16 %v899
        %v1589 = vunpack.c.l.b16 %v900
        %v1590 = vpack.c.b16 %v1589, %v1588
        %v1593 = vsel %vm1176, %v1585, 0
        %1595 = vmatpush.bf16.msra.mxu0 0
        %1596 = vmatpush.bf16.msra.mxu0 0
        %1597 = vmatpush.bf16.msra.mxu0 0
        %1598 = vmatpush.bf16.msra.mxu0 0
        %1599 = vmatpush.bf16.msra.mxu0 0
        %1600 = vmatpush.bf16.msra.mxu0 0
        %1601 = vmatpush.bf16.msra.mxu0 0
        %1602 = vmatpush.bf16.msra.mxu0 %v1590
        %1603 = vmatmul.bf16.gmra.mxu0 %v1593
        %v1604 = vpop.f32.mrf.mxu0
        %v1605 = vadd.f32 0.0, %v1604
        %v1606 = vpop.f32.mrf.mxu0
        %v1607 = vadd.f32 0.0, %v1606
        %1608 = vdwg.mxu0
        %v1609 = vpack.c.bf16 %v1409, %v1409
        %v1610 = vpack.c.bf16 %v1411, %v1411
        %v1611 = vpack.c.bf16 %v1437, %v1437
        %v1612 = vpack.c.bf16 %v1439, %v1439
        %v1613 = vpack.c.bf16 %v1465, %v1465
        %v1614 = vpack.c.bf16 %v1467, %v1467
        %v1615 = vpack.c.bf16 %v1493, %v1493
        %v1616 = vpack.c.bf16 %v1495, %v1495
        %v1617 = vpack.c.bf16 %v1521, %v1521
        %v1618 = vpack.c.bf16 %v1523, %v1523
        %v1619 = vpack.c.bf16 %v1549, %v1549
        %v1620 = vpack.c.bf16 %v1551, %v1551
        %v1621 = vpack.c.bf16 %v1577, %v1577
        %v1622 = vpack.c.bf16 %v1579, %v1579
        %v1623 = vpack.c.bf16 %v1605, %v1605
        %v1624 = vpack.c.bf16 %v1607, %v1607
        %vm1625 = vcmask 60416
        %1626 = vst.msk [vmem:[#allocation2] sm:$0xf] %vm1625, %v1609
        %1627 = vst.msk [vmem:[#allocation2 + $0x4] sm:$0xf] %vm1625, %v1610
        %1628 = vst.msk [vmem:[#allocation2 + $0x8] sm:$0xf] %vm1625, %v1611
        %1629 = vst.msk [vmem:[#allocation2 + $0xc] sm:$0xf] %vm1625, %v1612
        %1630 = vst.msk [vmem:[#allocation2 + $0x10] sm:$0xf] %vm1625, %v1613
        %1631 = vst.msk [vmem:[#allocation2 + $0x14] sm:$0xf] %vm1625, %v1614
        %1632 = vst.msk [vmem:[#allocation2 + $0x18] sm:$0xf] %vm1625, %v1615
        %1633 = vst.msk [vmem:[#allocation2 + $0x1c] sm:$0xf] %vm1625, %v1616
        %1634 = vst.msk [vmem:[#allocation2 + $0x20] sm:$0xf] %vm1625, %v1617
        %1635 = vst.msk [vmem:[#allocation2 + $0x24] sm:$0xf] %vm1625, %v1618
        %1636 = vst.msk [vmem:[#allocation2 + $0x28] sm:$0xf] %vm1625, %v1619
        %1637 = vst.msk [vmem:[#allocation2 + $0x2c] sm:$0xf] %vm1625, %v1620
        %1638 = vst.msk [vmem:[#allocation2 + $0x30] sm:$0xf] %vm1625, %v1621
        %1639 = vst.msk [vmem:[#allocation2 + $0x34] sm:$0xf] %vm1625, %v1622
        %1640 = vst.msk [vmem:[#allocation2 + $0x38] sm:$0xf] %vm1625, %v1623
        %1641 = vst.msk [vmem:[#allocation2 + $0x3c] sm:$0xf] %vm1625, %v1624
        %s1642 = scalar_lea.vmem [#allocation11], 16
        %v1643 = vld [vmem:[%s1642] sm:$0xff]
        %v1644 = vld [vmem:[%s1642 + $0x8] sm:$0xff]
        %1645 = vrot.lane.b32.xlu0 %v923, 120
        %v1646 = vpop.permute.xlu0 %1645
        %1647 = vrot.lane.b32.xlu0 %v928, 120
        %v1648 = vpop.permute.xlu0 %1647
        %v1650 = vsel %vm929, %v1646, 0
        %v1653 = vsel %vm929, %v1648, 0
        %1655 = vmatpush.bf16.xpose.msra.mxu0 0
        %1656 = vmatpush.bf16.xpose.msra.mxu0 0
        %1657 = vmatpush.bf16.xpose.msra.mxu0 0
        %1658 = vmatpush.bf16.xpose.msra.mxu0 0
        %1659 = vmatpush.bf16.xpose.msra.mxu0 0
        %1660 = vmatpush.bf16.xpose.msra.mxu0 0
        %1661 = vmatpush.bf16.xpose.msra.mxu0 0
        %1662 = vmatpush.bf16.xpose.msra.mxu0 %v1653
        %1663 = vmatmul.bf16.gmra.mxu0 %v1650
        %v1664 = vpop.f32.mrf.mxu0
        %v1665 = vadd.f32 %v1643, %v1664
        %v1666 = vpop.f32.mrf.mxu0
        %v1667 = vadd.f32 %v1644, %v1666
        %1668 = vdwg.mxu0
        %1669 = vrot.lane.b32.xlu0 %v954, 120
        %v1670 = vpop.permute.xlu0 %1669
        %1671 = vrot.lane.b32.xlu0 %v959, 120
        %v1672 = vpop.permute.xlu0 %1671
        %v1674 = vsel %vm929, %v1670, 0
        %v1677 = vsel %vm929, %v1672, 0
        %1679 = vmatpush.bf16.xpose.msra.mxu0 0
        %1680 = vmatpush.bf16.xpose.msra.mxu0 0
        %1681 = vmatpush.bf16.xpose.msra.mxu0 0
        %1682 = vmatpush.bf16.xpose.msra.mxu0 0
        %1683 = vmatpush.bf16.xpose.msra.mxu0 0
        %1684 = vmatpush.bf16.xpose.msra.mxu0 0
        %1685 = vmatpush.bf16.xpose.msra.mxu0 0
        %1686 = vmatpush.bf16.xpose.msra.mxu0 %v1677
        %1687 = vmatmul.bf16.gmra.mxu0 %v1674
        %v1688 = vpop.f32.mrf.mxu0
        %v1689 = vadd.f32 %v1643, %v1688
        %v1690 = vpop.f32.mrf.mxu0
        %v1691 = vadd.f32 %v1644, %v1690
        %1692 = vdwg.mxu0
        %1693 = vrot.lane.b32.xlu0 %v984, 120
        %v1694 = vpop.permute.xlu0 %1693
        %1695 = vrot.lane.b32.xlu0 %v989, 120
        %v1696 = vpop.permute.xlu0 %1695
        %v1698 = vsel %vm929, %v1694, 0
        %v1701 = vsel %vm929, %v1696, 0
        %1703 = vmatpush.bf16.xpose.msra.mxu0 0
        %1704 = vmatpush.bf16.xpose.msra.mxu0 0
        %1705 = vmatpush.bf16.xpose.msra.mxu0 0
        %1706 = vmatpush.bf16.xpose.msra.mxu0 0
        %1707 = vmatpush.bf16.xpose.msra.mxu0 0
        %1708 = vmatpush.bf16.xpose.msra.mxu0 0
        %1709 = vmatpush.bf16.xpose.msra.mxu0 0
        %1710 = vmatpush.bf16.xpose.msra.mxu0 %v1701
        %1711 = vmatmul.bf16.gmra.mxu0 %v1698
        %v1712 = vpop.f32.mrf.mxu0
        %v1713 = vadd.f32 %v1643, %v1712
        %v1714 = vpop.f32.mrf.mxu0
        %v1715 = vadd.f32 %v1644, %v1714
        %1716 = vdwg.mxu0
        %1717 = vrot.lane.b32.xlu0 %v1014, 120
        %v1718 = vpop.permute.xlu0 %1717
        %1719 = vrot.lane.b32.xlu0 %v1019, 120
        %v1720 = vpop.permute.xlu0 %1719
        %v1722 = vsel %vm929, %v1718, 0
        %v1725 = vsel %vm929, %v1720, 0
        %1727 = vmatpush.bf16.xpose.msra.mxu0 0
        %1728 = vmatpush.bf16.xpose.msra.mxu0 0
        %1729 = vmatpush.bf16.xpose.msra.mxu0 0
        %1730 = vmatpush.bf16.xpose.msra.mxu0 0
        %1731 = vmatpush.bf16.xpose.msra.mxu0 0
        %1732 = vmatpush.bf16.xpose.msra.mxu0 0
        %1733 = vmatpush.bf16.xpose.msra.mxu0 0
        %1734 = vmatpush.bf16.xpose.msra.mxu0 %v1725
        %1735 = vmatmul.bf16.gmra.mxu0 %v1722
        %v1736 = vpop.f32.mrf.mxu0
        %v1737 = vadd.f32 %v1643, %v1736
        %v1738 = vpop.f32.mrf.mxu0
        %v1739 = vadd.f32 %v1644, %v1738
        %1740 = vdwg.mxu0
        %1741 = vrot.lane.b32.xlu0 %v1044, 120
        %v1742 = vpop.permute.xlu0 %1741
        %1743 = vrot.lane.b32.xlu0 %v1049, 120
        %v1744 = vpop.permute.xlu0 %1743
        %v1746 = vsel %vm929, %v1742, 0
        %v1749 = vsel %vm929, %v1744, 0
        %1751 = vmatpush.bf16.xpose.msra.mxu0 0
        %1752 = vmatpush.bf16.xpose.msra.mxu0 0
        %1753 = vmatpush.bf16.xpose.msra.mxu0 0
        %1754 = vmatpush.bf16.xpose.msra.mxu0 0
        %1755 = vmatpush.bf16.xpose.msra.mxu0 0
        %1756 = vmatpush.bf16.xpose.msra.mxu0 0
        %1757 = vmatpush.bf16.xpose.msra.mxu0 0
        %1758 = vmatpush.bf16.xpose.msra.mxu0 %v1749
        %1759 = vmatmul.bf16.gmra.mxu0 %v1746
        %v1760 = vpop.f32.mrf.mxu0
        %v1761 = vadd.f32 %v1643, %v1760
        %v1762 = vpop.f32.mrf.mxu0
        %v1763 = vadd.f32 %v1644, %v1762
        %1764 = vdwg.mxu0
        %1765 = vrot.lane.b32.xlu0 %v1074, 120
        %v1766 = vpop.permute.xlu0 %1765
        %1767 = vrot.lane.b32.xlu0 %v1079, 120
        %v1768 = vpop.permute.xlu0 %1767
        %v1770 = vsel %vm929, %v1766, 0
        %v1773 = vsel %vm929, %v1768, 0
        %1775 = vmatpush.bf16.xpose.msra.mxu0 0
        %1776 = vmatpush.bf16.xpose.msra.mxu0 0
        %1777 = vmatpush.bf16.xpose.msra.mxu0 0
        %1778 = vmatpush.bf16.xpose.msra.mxu0 0
        %1779 = vmatpush.bf16.xpose.msra.mxu0 0
        %1780 = vmatpush.bf16.xpose.msra.mxu0 0
        %1781 = vmatpush.bf16.xpose.msra.mxu0 0
        %1782 = vmatpush.bf16.xpose.msra.mxu0 %v1773
        %1783 = vmatmul.bf16.gmra.mxu0 %v1770
        %v1784 = vpop.f32.mrf.mxu0
        %v1785 = vadd.f32 %v1643, %v1784
        %v1786 = vpop.f32.mrf.mxu0
        %v1787 = vadd.f32 %v1644, %v1786
        %1788 = vdwg.mxu0
        %1789 = vrot.lane.b32.xlu0 %v1104, 120
        %v1790 = vpop.permute.xlu0 %1789
        %1791 = vrot.lane.b32.xlu0 %v1109, 120
        %v1792 = vpop.permute.xlu0 %1791
        %v1794 = vsel %vm929, %v1790, 0
        %v1797 = vsel %vm929, %v1792, 0
        %1799 = vmatpush.bf16.xpose.msra.mxu0 0
        %1800 = vmatpush.bf16.xpose.msra.mxu0 0
        %1801 = vmatpush.bf16.xpose.msra.mxu0 0
        %1802 = vmatpush.bf16.xpose.msra.mxu0 0
        %1803 = vmatpush.bf16.xpose.msra.mxu0 0
        %1804 = vmatpush.bf16.xpose.msra.mxu0 0
        %1805 = vmatpush.bf16.xpose.msra.mxu0 0
        %1806 = vmatpush.bf16.xpose.msra.mxu0 %v1797
        %1807 = vmatmul.bf16.gmra.mxu0 %v1794
        %v1808 = vpop.f32.mrf.mxu0
        %v1809 = vadd.f32 %v1643, %v1808
        %v1810 = vpop.f32.mrf.mxu0
        %v1811 = vadd.f32 %v1644, %v1810
        %1812 = vdwg.mxu0
        %1813 = vrot.lane.b32.xlu0 %v1134, 120
        %v1814 = vpop.permute.xlu0 %1813
        %1815 = vrot.lane.b32.xlu0 %v1139, 120
        %v1816 = vpop.permute.xlu0 %1815
        %v1818 = vsel %vm929, %v1814, 0
        %v1821 = vsel %vm929, %v1816, 0
        %1823 = vmatpush.bf16.xpose.msra.mxu0 0
        %1824 = vmatpush.bf16.xpose.msra.mxu0 0
        %1825 = vmatpush.bf16.xpose.msra.mxu0 0
        %1826 = vmatpush.bf16.xpose.msra.mxu0 0
        %1827 = vmatpush.bf16.xpose.msra.mxu0 0
        %1828 = vmatpush.bf16.xpose.msra.mxu0 0
        %1829 = vmatpush.bf16.xpose.msra.mxu0 0
        %1830 = vmatpush.bf16.xpose.msra.mxu0 %v1821
        %1831 = vmatmul.bf16.gmra.mxu0 %v1818
        %v1832 = vpop.f32.mrf.mxu0
        %v1833 = vadd.f32 %v1643, %v1832
        %v1834 = vpop.f32.mrf.mxu0
        %v1835 = vadd.f32 %v1644, %v1834
        %1836 = vdwg.mxu0
        %v1837 = vadd.f32 %v1665, %v901
        %v1838 = vadd.f32 %v1667, %v902
        %v1839 = vadd.f32 %v1689, %v903
        %v1840 = vadd.f32 %v1691, %v904
        %v1841 = vadd.f32 %v1713, %v905
        %v1842 = vadd.f32 %v1715, %v906
        %v1843 = vadd.f32 %v1737, %v907
        %v1844 = vadd.f32 %v1739, %v908
        %v1845 = vadd.f32 %v1761, %v909
        %v1846 = vadd.f32 %v1763, %v910
        %v1847 = vadd.f32 %v1785, %v911
        %v1848 = vadd.f32 %v1787, %v912
        %v1849 = vadd.f32 %v1809, %v913
        %v1850 = vadd.f32 %v1811, %v914
        %v1851 = vadd.f32 %v1833, %v915
        %v1852 = vadd.f32 %v1835, %v916
        %v1853 = vsel %vm1176, %v1837, -inf
        %1854 = vmax.xlane.f32.xlu0 %v1853
        %v1855 = vpop.xlane.xlu0 %1854
        %v1856 = vsel %vm1176, %v1838, -inf
        %1857 = vmax.xlane.f32.xlu0 %v1856
        %v1858 = vpop.xlane.xlu0 %1857
        %v1859 = vsel %vm1176, %v1839, -inf
        %1860 = vmax.xlane.f32.xlu0 %v1859
        %v1861 = vpop.xlane.xlu0 %1860
        %v1862 = vsel %vm1176, %v1840, -inf
        %1863 = vmax.xlane.f32.xlu0 %v1862
        %v1864 = vpop.xlane.xlu0 %1863
        %v1865 = vsel %vm1176, %v1841, -inf
        %1866 = vmax.xlane.f32.xlu0 %v1865
        %v1867 = vpop.xlane.xlu0 %1866
        %v1868 = vsel %vm1176, %v1842, -inf
        %1869 = vmax.xlane.f32.xlu0 %v1868
        %v1870 = vpop.xlane.xlu0 %1869
        %v1871 = vsel %vm1176, %v1843, -inf
        %1872 = vmax.xlane.f32.xlu0 %v1871
        %v1873 = vpop.xlane.xlu0 %1872
        %v1874 = vsel %vm1176, %v1844, -inf
        %1875 = vmax.xlane.f32.xlu0 %v1874
        %v1876 = vpop.xlane.xlu0 %1875
        %v1877 = vsel %vm1176, %v1845, -inf
        %1878 = vmax.xlane.f32.xlu0 %v1877
        %v1879 = vpop.xlane.xlu0 %1878
        %v1880 = vsel %vm1176, %v1846, -inf
        %1881 = vmax.xlane.f32.xlu0 %v1880
        %v1882 = vpop.xlane.xlu0 %1881
        %v1883 = vsel %vm1176, %v1847, -inf
        %1884 = vmax.xlane.f32.xlu0 %v1883
        %v1885 = vpop.xlane.xlu0 %1884
        %v1886 = vsel %vm1176, %v1848, -inf
        %1887 = vmax.xlane.f32.xlu0 %v1886
        %v1888 = vpop.xlane.xlu0 %1887
        %v1889 = vsel %vm1176, %v1849, -inf
        %1890 = vmax.xlane.f32.xlu0 %v1889
        %v1891 = vpop.xlane.xlu0 %1890
        %v1892 = vsel %vm1176, %v1850, -inf
        %1893 = vmax.xlane.f32.xlu0 %v1892
        %v1894 = vpop.xlane.xlu0 %1893
        %v1895 = vsel %vm1176, %v1851, -inf
        %1896 = vmax.xlane.f32.xlu0 %v1895
        %v1897 = vpop.xlane.xlu0 %1896
        %v1898 = vsel %vm1176, %v1852, -inf
        %1899 = vmax.xlane.f32.xlu0 %v1898
        %v1900 = vpop.xlane.xlu0 %1899
        %v1901 = vsub.f32 %v1837, %v1855
        %v1902 = vsub.f32 %v1838, %v1858
        %v1903 = vsub.f32 %v1839, %v1861
        %v1904 = vsub.f32 %v1840, %v1864
        %v1905 = vsub.f32 %v1841, %v1867
        %v1906 = vsub.f32 %v1842, %v1870
        %v1907 = vsub.f32 %v1843, %v1873
        %v1908 = vsub.f32 %v1844, %v1876
        %v1909 = vsub.f32 %v1845, %v1879
        %v1910 = vsub.f32 %v1846, %v1882
        %v1911 = vsub.f32 %v1847, %v1885
        %v1912 = vsub.f32 %v1848, %v1888
        %v1913 = vsub.f32 %v1849, %v1891
        %v1914 = vsub.f32 %v1850, %v1894
        %v1915 = vsub.f32 %v1851, %v1897
        %v1916 = vsub.f32 %v1852, %v1900
        %v1917 = vmul.f32 %v1901, 1.442695
        %v1918 = vpow.pop %v1917
        %v1919 = vmul.f32 %v1902, 1.442695
        %v1920 = vpow.pop %v1919
        %v1921 = vmul.f32 %v1903, 1.442695
        %v1922 = vpow.pop %v1921
        %v1923 = vmul.f32 %v1904, 1.442695
        %v1924 = vpow.pop %v1923
        %v1925 = vmul.f32 %v1905, 1.442695
        %v1926 = vpow.pop %v1925
        %v1927 = vmul.f32 %v1906, 1.442695
        %v1928 = vpow.pop %v1927
        %v1929 = vmul.f32 %v1907, 1.442695
        %v1930 = vpow.pop %v1929
        %v1931 = vmul.f32 %v1908, 1.442695
        %v1932 = vpow.pop %v1931
        %v1933 = vmul.f32 %v1909, 1.442695
        %v1934 = vpow.pop %v1933
        %v1935 = vmul.f32 %v1910, 1.442695
        %v1936 = vpow.pop %v1935
        %v1937 = vmul.f32 %v1911, 1.442695
        %v1938 = vpow.pop %v1937
        %v1939 = vmul.f32 %v1912, 1.442695
        %v1940 = vpow.pop %v1939
        %v1941 = vmul.f32 %v1913, 1.442695
        %v1942 = vpow.pop %v1941
        %v1943 = vmul.f32 %v1914, 1.442695
        %v1944 = vpow.pop %v1943
        %v1945 = vmul.f32 %v1915, 1.442695
        %v1946 = vpow.pop %v1945
        %v1947 = vmul.f32 %v1916, 1.442695
        %v1948 = vpow.pop %v1947
        %v1949 = vsel %vm1176, %v1918, 0.0
        %1950 = vadd.xlane.f32.xlu0 %v1949
        %v1951 = vpop.xlane.xlu0 %1950
        %v1952 = vsel %vm1176, %v1920, 0.0
        %1953 = vadd.xlane.f32.xlu0 %v1952
        %v1954 = vpop.xlane.xlu0 %1953
        %v1955 = vsel %vm1176, %v1922, 0.0
        %1956 = vadd.xlane.f32.xlu0 %v1955
        %v1957 = vpop.xlane.xlu0 %1956
        %v1958 = vsel %vm1176, %v1924, 0.0
        %1959 = vadd.xlane.f32.xlu0 %v1958
        %v1960 = vpop.xlane.xlu0 %1959
        %v1961 = vsel %vm1176, %v1926, 0.0
        %1962 = vadd.xlane.f32.xlu0 %v1961
        %v1963 = vpop.xlane.xlu0 %1962
        %v1964 = vsel %vm1176, %v1928, 0.0
        %1965 = vadd.xlane.f32.xlu0 %v1964
        %v1966 = vpop.xlane.xlu0 %1965
        %v1967 = vsel %vm1176, %v1930, 0.0
        %1968 = vadd.xlane.f32.xlu0 %v1967
        %v1969 = vpop.xlane.xlu0 %1968
        %v1970 = vsel %vm1176, %v1932, 0.0
        %1971 = vadd.xlane.f32.xlu0 %v1970
        %v1972 = vpop.xlane.xlu0 %1971
        %v1973 = vsel %vm1176, %v1934, 0.0
        %1974 = vadd.xlane.f32.xlu0 %v1973
        %v1975 = vpop.xlane.xlu0 %1974
        %v1976 = vsel %vm1176, %v1936, 0.0
        %1977 = vadd.xlane.f32.xlu0 %v1976
        %v1978 = vpop.xlane.xlu0 %1977
        %v1979 = vsel %vm1176, %v1938, 0.0
        %1980 = vadd.xlane.f32.xlu0 %v1979
        %v1981 = vpop.xlane.xlu0 %1980
        %v1982 = vsel %vm1176, %v1940, 0.0
        %1983 = vadd.xlane.f32.xlu0 %v1982
        %v1984 = vpop.xlane.xlu0 %1983
        %v1985 = vsel %vm1176, %v1942, 0.0
        %1986 = vadd.xlane.f32.xlu0 %v1985
        %v1987 = vpop.xlane.xlu0 %1986
        %v1988 = vsel %vm1176, %v1944, 0.0
        %1989 = vadd.xlane.f32.xlu0 %v1988
        %v1990 = vpop.xlane.xlu0 %1989
        %v1991 = vsel %vm1176, %v1946, 0.0
        %1992 = vadd.xlane.f32.xlu0 %v1991
        %v1993 = vpop.xlane.xlu0 %1992
        %v1994 = vsel %vm1176, %v1948, 0.0
        %1995 = vadd.xlane.f32.xlu0 %v1994
        %v1996 = vpop.xlane.xlu0 %1995
        %v1997 = vrcp.pop %v1951
        %v1998 = vrcp.pop %v1954
        %v1999 = vrcp.pop %v1957
        %v2000 = vrcp.pop %v1960
        %v2001 = vrcp.pop %v1963
        %v2002 = vrcp.pop %v1966
        %v2003 = vrcp.pop %v1969
        %v2004 = vrcp.pop %v1972
        %v2005 = vrcp.pop %v1975
        %v2006 = vrcp.pop %v1978
        %v2007 = vrcp.pop %v1981
        %v2008 = vrcp.pop %v1984
        %v2009 = vrcp.pop %v1987
        %v2010 = vrcp.pop %v1990
        %v2011 = vrcp.pop %v1993
        %v2012 = vrcp.pop %v1996
        %v2013 = vmul.f32 %v1918, %v1997
        %v2014 = vmul.f32 %v1920, %v1998
        %v2015 = vmul.f32 %v1922, %v1999
        %v2016 = vmul.f32 %v1924, %v2000
        %v2017 = vmul.f32 %v1926, %v2001
        %v2018 = vmul.f32 %v1928, %v2002
        %v2019 = vmul.f32 %v1930, %v2003
        %v2020 = vmul.f32 %v1932, %v2004
        %v2021 = vmul.f32 %v1934, %v2005
        %v2022 = vmul.f32 %v1936, %v2006
        %v2023 = vmul.f32 %v1938, %v2007
        %v2024 = vmul.f32 %v1940, %v2008
        %v2025 = vmul.f32 %v1942, %v2009
        %v2026 = vmul.f32 %v1944, %v2010
        %v2027 = vmul.f32 %v1946, %v2011
        %v2028 = vmul.f32 %v1948, %v2012
        %s2029 = scalar_lea.vmem %s544, 16 [#allocation16]
        %2030 = vst.msk [vmem:[%s2029] sm:$0xff] %vm1176, %v2013
        %2031 = vst.msk [vmem:[%s2029 + $0x8] sm:$0xff] %vm1176, %v2014
        %2032 = vst.msk [vmem:[%s2029 + $0x40] sm:$0xff] %vm1176, %v2015
        %2033 = vst.msk [vmem:[%s2029 + $0x48] sm:$0xff] %vm1176, %v2016
        %2034 = vst.msk [vmem:[%s2029 + $0x80] sm:$0xff] %vm1176, %v2017
        %2035 = vst.msk [vmem:[%s2029 + $0x88] sm:$0xff] %vm1176, %v2018
        %2036 = vst.msk [vmem:[%s2029 + $0xc0] sm:$0xff] %vm1176, %v2019
        %2037 = vst.msk [vmem:[%s2029 + $0xc8] sm:$0xff] %vm1176, %v2020
        %2038 = vst.msk [vmem:[%s2029 + $0x100] sm:$0xff] %vm1176, %v2021
        %2039 = vst.msk [vmem:[%s2029 + $0x108] sm:$0xff] %vm1176, %v2022
        %2040 = vst.msk [vmem:[%s2029 + $0x140] sm:$0xff] %vm1176, %v2023
        %2041 = vst.msk [vmem:[%s2029 + $0x148] sm:$0xff] %vm1176, %v2024
        %2042 = vst.msk [vmem:[%s2029 + $0x180] sm:$0xff] %vm1176, %v2025
        %2043 = vst.msk [vmem:[%s2029 + $0x188] sm:$0xff] %vm1176, %v2026
        %2044 = vst.msk [vmem:[%s2029 + $0x1c0] sm:$0xff] %vm1176, %v2027
        %2045 = vst.msk [vmem:[%s2029 + $0x1c8] sm:$0xff] %vm1176, %v2028
        %v2046 = vpack.c.bf16 %v2013, %v2013
        %v2047 = vpack.c.bf16 %v2014, %v2014
        %v2048 = vpack.c.bf16 %v2015, %v2015
        %v2049 = vpack.c.bf16 %v2016, %v2016
        %v2050 = vpack.c.bf16 %v2017, %v2017
        %v2051 = vpack.c.bf16 %v2018, %v2018
        %v2052 = vpack.c.bf16 %v2019, %v2019
        %v2053 = vpack.c.bf16 %v2020, %v2020
        %v2054 = vpack.c.bf16 %v2021, %v2021
        %v2055 = vpack.c.bf16 %v2022, %v2022
        %v2056 = vpack.c.bf16 %v2023, %v2023
        %v2057 = vpack.c.bf16 %v2024, %v2024
        %v2058 = vpack.c.bf16 %v2025, %v2025
        %v2059 = vpack.c.bf16 %v2026, %v2026
        %v2060 = vpack.c.bf16 %v2027, %v2027
        %v2061 = vpack.c.bf16 %v2028, %v2028
        %v2064 = vunpack.c.l.b16 %v2046
        %v2065 = vunpack.c.l.b16 %v2047
        %v2066 = vpack.c.b16 %v2065, %v2064
        %2067 = vrot.lane.b32.xlu0 %v1394, 120
        %v2068 = vpop.permute.xlu0 %2067
        %v2071 = vsel %vm1176, %v2066, 0
        %2073 = vmatpush.bf16.msra.mxu0 0
        %2074 = vmatpush.bf16.msra.mxu0 0
        %2075 = vmatpush.bf16.msra.mxu0 0
        %2076 = vmatpush.bf16.msra.mxu0 0
        %2077 = vmatpush.bf16.msra.mxu0 0
        %2078 = vmatpush.bf16.msra.mxu0 0
        %2079 = vmatpush.bf16.msra.mxu0 0
        %2080 = vmatpush.bf16.msra.mxu0 %v2068
        %2081 = vmatmul.bf16.gmra.mxu0 %v2071
        %v2082 = vpop.f32.mrf.mxu0
        %v2083 = vadd.f32 0.0, %v2082
        %v2084 = vpop.f32.mrf.mxu0
        %v2085 = vadd.f32 0.0, %v2084
        %2086 = vdwg.mxu0
        %v2089 = vunpack.c.l.b16 %v2048
        %v2090 = vunpack.c.l.b16 %v2049
        %v2091 = vpack.c.b16 %v2090, %v2089
        %2092 = vrot.lane.b32.xlu0 %v1422, 120
        %v2093 = vpop.permute.xlu0 %2092
        %v2096 = vsel %vm1176, %v2091, 0
        %2098 = vmatpush.bf16.msra.mxu0 0
        %2099 = vmatpush.bf16.msra.mxu0 0
        %2100 = vmatpush.bf16.msra.mxu0 0
        %2101 = vmatpush.bf16.msra.mxu0 0
        %2102 = vmatpush.bf16.msra.mxu0 0
        %2103 = vmatpush.bf16.msra.mxu0 0
        %2104 = vmatpush.bf16.msra.mxu0 0
        %2105 = vmatpush.bf16.msra.mxu0 %v2093
        %2106 = vmatmul.bf16.gmra.mxu0 %v2096
        %v2107 = vpop.f32.mrf.mxu0
        %v2108 = vadd.f32 0.0, %v2107
        %v2109 = vpop.f32.mrf.mxu0
        %v2110 = vadd.f32 0.0, %v2109
        %2111 = vdwg.mxu0
        %v2114 = vunpack.c.l.b16 %v2050
        %v2115 = vunpack.c.l.b16 %v2051
        %v2116 = vpack.c.b16 %v2115, %v2114
        %2117 = vrot.lane.b32.xlu0 %v1450, 120
        %v2118 = vpop.permute.xlu0 %2117
        %v2121 = vsel %vm1176, %v2116, 0
        %2123 = vmatpush.bf16.msra.mxu0 0
        %2124 = vmatpush.bf16.msra.mxu0 0
        %2125 = vmatpush.bf16.msra.mxu0 0
        %2126 = vmatpush.bf16.msra.mxu0 0
        %2127 = vmatpush.bf16.msra.mxu0 0
        %2128 = vmatpush.bf16.msra.mxu0 0
        %2129 = vmatpush.bf16.msra.mxu0 0
        %2130 = vmatpush.bf16.msra.mxu0 %v2118
        %2131 = vmatmul.bf16.gmra.mxu0 %v2121
        %v2132 = vpop.f32.mrf.mxu0
        %v2133 = vadd.f32 0.0, %v2132
        %v2134 = vpop.f32.mrf.mxu0
        %v2135 = vadd.f32 0.0, %v2134
        %2136 = vdwg.mxu0
        %v2139 = vunpack.c.l.b16 %v2052
        %v2140 = vunpack.c.l.b16 %v2053
        %v2141 = vpack.c.b16 %v2140, %v2139
        %2142 = vrot.lane.b32.xlu0 %v1478, 120
        %v2143 = vpop.permute.xlu0 %2142
        %v2146 = vsel %vm1176, %v2141, 0
        %2148 = vmatpush.bf16.msra.mxu0 0
        %2149 = vmatpush.bf16.msra.mxu0 0
        %2150 = vmatpush.bf16.msra.mxu0 0
        %2151 = vmatpush.bf16.msra.mxu0 0
        %2152 = vmatpush.bf16.msra.mxu0 0
        %2153 = vmatpush.bf16.msra.mxu0 0
        %2154 = vmatpush.bf16.msra.mxu0 0
        %2155 = vmatpush.bf16.msra.mxu0 %v2143
        %2156 = vmatmul.bf16.gmra.mxu0 %v2146
        %v2157 = vpop.f32.mrf.mxu0
        %v2158 = vadd.f32 0.0, %v2157
        %v2159 = vpop.f32.mrf.mxu0
        %v2160 = vadd.f32 0.0, %v2159
        %2161 = vdwg.mxu0
        %v2164 = vunpack.c.l.b16 %v2054
        %v2165 = vunpack.c.l.b16 %v2055
        %v2166 = vpack.c.b16 %v2165, %v2164
        %2167 = vrot.lane.b32.xlu0 %v1506, 120
        %v2168 = vpop.permute.xlu0 %2167
        %v2171 = vsel %vm1176, %v2166, 0
        %2173 = vmatpush.bf16.msra.mxu0 0
        %2174 = vmatpush.bf16.msra.mxu0 0
        %2175 = vmatpush.bf16.msra.mxu0 0
        %2176 = vmatpush.bf16.msra.mxu0 0
        %2177 = vmatpush.bf16.msra.mxu0 0
        %2178 = vmatpush.bf16.msra.mxu0 0
        %2179 = vmatpush.bf16.msra.mxu0 0
        %2180 = vmatpush.bf16.msra.mxu0 %v2168
        %2181 = vmatmul.bf16.gmra.mxu0 %v2171
        %v2182 = vpop.f32.mrf.mxu0
        %v2183 = vadd.f32 0.0, %v2182
        %v2184 = vpop.f32.mrf.mxu0
        %v2185 = vadd.f32 0.0, %v2184
        %2186 = vdwg.mxu0
        %v2189 = vunpack.c.l.b16 %v2056
        %v2190 = vunpack.c.l.b16 %v2057
        %v2191 = vpack.c.b16 %v2190, %v2189
        %2192 = vrot.lane.b32.xlu0 %v1534, 120
        %v2193 = vpop.permute.xlu0 %2192
        %v2196 = vsel %vm1176, %v2191, 0
        %2198 = vmatpush.bf16.msra.mxu0 0
        %2199 = vmatpush.bf16.msra.mxu0 0
        %2200 = vmatpush.bf16.msra.mxu0 0
        %2201 = vmatpush.bf16.msra.mxu0 0
        %2202 = vmatpush.bf16.msra.mxu0 0
        %2203 = vmatpush.bf16.msra.mxu0 0
        %2204 = vmatpush.bf16.msra.mxu0 0
        %2205 = vmatpush.bf16.msra.mxu0 %v2193
        %2206 = vmatmul.bf16.gmra.mxu0 %v2196
        %v2207 = vpop.f32.mrf.mxu0
        %v2208 = vadd.f32 0.0, %v2207
        %v2209 = vpop.f32.mrf.mxu0
        %v2210 = vadd.f32 0.0, %v2209
        %2211 = vdwg.mxu0
        %v2214 = vunpack.c.l.b16 %v2058
        %v2215 = vunpack.c.l.b16 %v2059
        %v2216 = vpack.c.b16 %v2215, %v2214
        %2217 = vrot.lane.b32.xlu0 %v1562, 120
        %v2218 = vpop.permute.xlu0 %2217
        %v2221 = vsel %vm1176, %v2216, 0
        %2223 = vmatpush.bf16.msra.mxu0 0
        %2224 = vmatpush.bf16.msra.mxu0 0
        %2225 = vmatpush.bf16.msra.mxu0 0
        %2226 = vmatpush.bf16.msra.mxu0 0
        %2227 = vmatpush.bf16.msra.mxu0 0
        %2228 = vmatpush.bf16.msra.mxu0 0
        %2229 = vmatpush.bf16.msra.mxu0 0
        %2230 = vmatpush.bf16.msra.mxu0 %v2218
        %2231 = vmatmul.bf16.gmra.mxu0 %v2221
        %v2232 = vpop.f32.mrf.mxu0
        %v2233 = vadd.f32 0.0, %v2232
        %v2234 = vpop.f32.mrf.mxu0
        %v2235 = vadd.f32 0.0, %v2234
        %2236 = vdwg.mxu0
        %v2239 = vunpack.c.l.b16 %v2060
        %v2240 = vunpack.c.l.b16 %v2061
        %v2241 = vpack.c.b16 %v2240, %v2239
        %2242 = vrot.lane.b32.xlu0 %v1590, 120
        %v2243 = vpop.permute.xlu0 %2242
        %v2246 = vsel %vm1176, %v2241, 0
        %2248 = vmatpush.bf16.msra.mxu0 0
        %2249 = vmatpush.bf16.msra.mxu0 0
        %2250 = vmatpush.bf16.msra.mxu0 0
        %2251 = vmatpush.bf16.msra.mxu0 0
        %2252 = vmatpush.bf16.msra.mxu0 0
        %2253 = vmatpush.bf16.msra.mxu0 0
        %2254 = vmatpush.bf16.msra.mxu0 0
        %2255 = vmatpush.bf16.msra.mxu0 %v2243
        %2256 = vmatmul.bf16.gmra.mxu0 %v2246
        %v2257 = vpop.f32.mrf.mxu0
        %v2258 = vadd.f32 0.0, %v2257
        %v2259 = vpop.f32.mrf.mxu0
        %v2260 = vadd.f32 0.0, %v2259
        %2261 = vdwg.mxu0
        %v2262 = vpack.c.bf16 %v2083, %v2083
        %v2263 = vpack.c.bf16 %v2085, %v2085
        %v2264 = vpack.c.bf16 %v2108, %v2108
        %v2265 = vpack.c.bf16 %v2110, %v2110
        %v2266 = vpack.c.bf16 %v2133, %v2133
        %v2267 = vpack.c.bf16 %v2135, %v2135
        %v2268 = vpack.c.bf16 %v2158, %v2158
        %v2269 = vpack.c.bf16 %v2160, %v2160
        %v2270 = vpack.c.bf16 %v2183, %v2183
        %v2271 = vpack.c.bf16 %v2185, %v2185
        %v2272 = vpack.c.bf16 %v2208, %v2208
        %v2273 = vpack.c.bf16 %v2210, %v2210
        %v2274 = vpack.c.bf16 %v2233, %v2233
        %v2275 = vpack.c.bf16 %v2235, %v2235
        %v2276 = vpack.c.bf16 %v2258, %v2258
        %v2277 = vpack.c.bf16 %v2260, %v2260
        %2294 = vrot.lane.b32.xlu0 %v2262, 8
        %v2295 = vpop.permute.xlu0 %2294
        %2296 = vrot.lane.b32.xlu0 %v2263, 8
        %v2297 = vpop.permute.xlu0 %2296
        %2298 = vrot.lane.b32.xlu0 %v2264, 8
        %v2299 = vpop.permute.xlu0 %2298
        %2300 = vrot.lane.b32.xlu0 %v2265, 8
        %v2301 = vpop.permute.xlu0 %2300
        %2302 = vrot.lane.b32.xlu0 %v2266, 8
        %v2303 = vpop.permute.xlu0 %2302
        %2304 = vrot.lane.b32.xlu0 %v2267, 8
        %v2305 = vpop.permute.xlu0 %2304
        %2306 = vrot.lane.b32.xlu0 %v2268, 8
        %v2307 = vpop.permute.xlu0 %2306
        %2308 = vrot.lane.b32.xlu0 %v2269, 8
        %v2309 = vpop.permute.xlu0 %2308
        %2310 = vrot.lane.b32.xlu0 %v2270, 8
        %v2311 = vpop.permute.xlu0 %2310
        %2312 = vrot.lane.b32.xlu0 %v2271, 8
        %v2313 = vpop.permute.xlu0 %2312
        %2314 = vrot.lane.b32.xlu0 %v2272, 8
        %v2315 = vpop.permute.xlu0 %2314
        %2316 = vrot.lane.b32.xlu0 %v2273, 8
        %v2317 = vpop.permute.xlu0 %2316
        %2318 = vrot.lane.b32.xlu0 %v2274, 8
        %v2319 = vpop.permute.xlu0 %2318
        %2320 = vrot.lane.b32.xlu0 %v2275, 8
        %v2321 = vpop.permute.xlu0 %2320
        %2322 = vrot.lane.b32.xlu0 %v2276, 8
        %v2323 = vpop.permute.xlu0 %2322
        %2324 = vrot.lane.b32.xlu0 %v2277, 8
        %v2325 = vpop.permute.xlu0 %2324
        %vm2342 = vcmask 126016
        %2343 = vst.msk [vmem:[#allocation2] sm:$0xf] %vm2342, %v2295
        %2344 = vst.msk [vmem:[#allocation2 + $0x4] sm:$0xf] %vm2342, %v2297
        %2345 = vst.msk [vmem:[#allocation2 + $0x8] sm:$0xf] %vm2342, %v2299
        %2346 = vst.msk [vmem:[#allocation2 + $0xc] sm:$0xf] %vm2342, %v2301
        %2347 = vst.msk [vmem:[#allocation2 + $0x10] sm:$0xf] %vm2342, %v2303
        %2348 = vst.msk [vmem:[#allocation2 + $0x14] sm:$0xf] %vm2342, %v2305
        %2349 = vst.msk [vmem:[#allocation2 + $0x18] sm:$0xf] %vm2342, %v2307
        %2350 = vst.msk [vmem:[#allocation2 + $0x1c] sm:$0xf] %vm2342, %v2309
        %2351 = vst.msk [vmem:[#allocation2 + $0x20] sm:$0xf] %vm2342, %v2311
        %2352 = vst.msk [vmem:[#allocation2 + $0x24] sm:$0xf] %vm2342, %v2313
        %2353 = vst.msk [vmem:[#allocation2 + $0x28] sm:$0xf] %vm2342, %v2315
        %2354 = vst.msk [vmem:[#allocation2 + $0x2c] sm:$0xf] %vm2342, %v2317
        %2355 = vst.msk [vmem:[#allocation2 + $0x30] sm:$0xf] %vm2342, %v2319
        %2356 = vst.msk [vmem:[#allocation2 + $0x34] sm:$0xf] %vm2342, %v2321
        %2357 = vst.msk [vmem:[#allocation2 + $0x38] sm:$0xf] %vm2342, %v2323
        %2358 = vst.msk [vmem:[#allocation2 + $0x3c] sm:$0xf] %vm2342, %v2325
        %s2359 = scalar_lea.vmem [#allocation11], 32
        %v2360 = vld [vmem:[%s2359] sm:$0xff]
        %v2361 = vld [vmem:[%s2359 + $0x8] sm:$0xff]
        %2362 = vrot.lane.b32.xlu0 %v923, 112
        %v2363 = vpop.permute.xlu0 %2362
        %2364 = vrot.lane.b32.xlu0 %v928, 112
        %v2365 = vpop.permute.xlu0 %2364
        %v2367 = vsel %vm929, %v2363, 0
        %v2370 = vsel %vm929, %v2365, 0
        %2372 = vmatpush.bf16.xpose.msra.mxu0 0
        %2373 = vmatpush.bf16.xpose.msra.mxu0 0
        %2374 = vmatpush.bf16.xpose.msra.mxu0 0
        %2375 = vmatpush.bf16.xpose.msra.mxu0 0
        %2376 = vmatpush.bf16.xpose.msra.mxu0 0
        %2377 = vmatpush.bf16.xpose.msra.mxu0 0
        %2378 = vmatpush.bf16.xpose.msra.mxu0 0
        %2379 = vmatpush.bf16.xpose.msra.mxu0 %v2370
        %2380 = vmatmul.bf16.gmra.mxu0 %v2367
        %v2381 = vpop.f32.mrf.mxu0
        %v2382 = vadd.f32 %v2360, %v2381
        %v2383 = vpop.f32.mrf.mxu0
        %v2384 = vadd.f32 %v2361, %v2383
        %2385 = vdwg.mxu0
        %2386 = vrot.lane.b32.xlu0 %v954, 112
        %v2387 = vpop.permute.xlu0 %2386
        %2388 = vrot.lane.b32.xlu0 %v959, 112
        %v2389 = vpop.permute.xlu0 %2388
        %v2391 = vsel %vm929, %v2387, 0
        %v2394 = vsel %vm929, %v2389, 0
        %2396 = vmatpush.bf16.xpose.msra.mxu0 0
        %2397 = vmatpush.bf16.xpose.msra.mxu0 0
        %2398 = vmatpush.bf16.xpose.msra.mxu0 0
        %2399 = vmatpush.bf16.xpose.msra.mxu0 0
        %2400 = vmatpush.bf16.xpose.msra.mxu0 0
        %2401 = vmatpush.bf16.xpose.msra.mxu0 0
        %2402 = vmatpush.bf16.xpose.msra.mxu0 0
        %2403 = vmatpush.bf16.xpose.msra.mxu0 %v2394
        %2404 = vmatmul.bf16.gmra.mxu0 %v2391
        %v2405 = vpop.f32.mrf.mxu0
        %v2406 = vadd.f32 %v2360, %v2405
        %v2407 = vpop.f32.mrf.mxu0
        %v2408 = vadd.f32 %v2361, %v2407
        %2409 = vdwg.mxu0
        %2410 = vrot.lane.b32.xlu0 %v984, 112
        %v2411 = vpop.permute.xlu0 %2410
        %2412 = vrot.lane.b32.xlu0 %v989, 112
        %v2413 = vpop.permute.xlu0 %2412
        %v2415 = vsel %vm929, %v2411, 0
        %v2418 = vsel %vm929, %v2413, 0
        %2420 = vmatpush.bf16.xpose.msra.mxu0 0
        %2421 = vmatpush.bf16.xpose.msra.mxu0 0
        %2422 = vmatpush.bf16.xpose.msra.mxu0 0
        %2423 = vmatpush.bf16.xpose.msra.mxu0 0
        %2424 = vmatpush.bf16.xpose.msra.mxu0 0
        %2425 = vmatpush.bf16.xpose.msra.mxu0 0
        %2426 = vmatpush.bf16.xpose.msra.mxu0 0
        %2427 = vmatpush.bf16.xpose.msra.mxu0 %v2418
        %2428 = vmatmul.bf16.gmra.mxu0 %v2415
        %v2429 = vpop.f32.mrf.mxu0
        %v2430 = vadd.f32 %v2360, %v2429
        %v2431 = vpop.f32.mrf.mxu0
        %v2432 = vadd.f32 %v2361, %v2431
        %2433 = vdwg.mxu0
        %2434 = vrot.lane.b32.xlu0 %v1014, 112
        %v2435 = vpop.permute.xlu0 %2434
        %2436 = vrot.lane.b32.xlu0 %v1019, 112
        %v2437 = vpop.permute.xlu0 %2436
        %v2439 = vsel %vm929, %v2435, 0
        %v2442 = vsel %vm929, %v2437, 0
        %2444 = vmatpush.bf16.xpose.msra.mxu0 0
        %2445 = vmatpush.bf16.xpose.msra.mxu0 0
        %2446 = vmatpush.bf16.xpose.msra.mxu0 0
        %2447 = vmatpush.bf16.xpose.msra.mxu0 0
        %2448 = vmatpush.bf16.xpose.msra.mxu0 0
        %2449 = vmatpush.bf16.xpose.msra.mxu0 0
        %2450 = vmatpush.bf16.xpose.msra.mxu0 0
        %2451 = vmatpush.bf16.xpose.msra.mxu0 %v2442
        %2452 = vmatmul.bf16.gmra.mxu0 %v2439
        %v2453 = vpop.f32.mrf.mxu0
        %v2454 = vadd.f32 %v2360, %v2453
        %v2455 = vpop.f32.mrf.mxu0
        %v2456 = vadd.f32 %v2361, %v2455
        %2457 = vdwg.mxu0
        %2458 = vrot.lane.b32.xlu0 %v1044, 112
        %v2459 = vpop.permute.xlu0 %2458
        %2460 = vrot.lane.b32.xlu0 %v1049, 112
        %v2461 = vpop.permute.xlu0 %2460
        %v2463 = vsel %vm929, %v2459, 0
        %v2466 = vsel %vm929, %v2461, 0
        %2468 = vmatpush.bf16.xpose.msra.mxu0 0
        %2469 = vmatpush.bf16.xpose.msra.mxu0 0
        %2470 = vmatpush.bf16.xpose.msra.mxu0 0
        %2471 = vmatpush.bf16.xpose.msra.mxu0 0
        %2472 = vmatpush.bf16.xpose.msra.mxu0 0
        %2473 = vmatpush.bf16.xpose.msra.mxu0 0
        %2474 = vmatpush.bf16.xpose.msra.mxu0 0
        %2475 = vmatpush.bf16.xpose.msra.mxu0 %v2466
        %2476 = vmatmul.bf16.gmra.mxu0 %v2463
        %v2477 = vpop.f32.mrf.mxu0
        %v2478 = vadd.f32 %v2360, %v2477
        %v2479 = vpop.f32.mrf.mxu0
        %v2480 = vadd.f32 %v2361, %v2479
        %2481 = vdwg.mxu0
        %2482 = vrot.lane.b32.xlu0 %v1074, 112
        %v2483 = vpop.permute.xlu0 %2482
        %2484 = vrot.lane.b32.xlu0 %v1079, 112
        %v2485 = vpop.permute.xlu0 %2484
        %v2487 = vsel %vm929, %v2483, 0
        %v2490 = vsel %vm929, %v2485, 0
        %2492 = vmatpush.bf16.xpose.msra.mxu0 0
        %2493 = vmatpush.bf16.xpose.msra.mxu0 0
        %2494 = vmatpush.bf16.xpose.msra.mxu0 0
        %2495 = vmatpush.bf16.xpose.msra.mxu0 0
        %2496 = vmatpush.bf16.xpose.msra.mxu0 0
        %2497 = vmatpush.bf16.xpose.msra.mxu0 0
        %2498 = vmatpush.bf16.xpose.msra.mxu0 0
        %2499 = vmatpush.bf16.xpose.msra.mxu0 %v2490
        %2500 = vmatmul.bf16.gmra.mxu0 %v2487
        %v2501 = vpop.f32.mrf.mxu0
        %v2502 = vadd.f32 %v2360, %v2501
        %v2503 = vpop.f32.mrf.mxu0
        %v2504 = vadd.f32 %v2361, %v2503
        %2505 = vdwg.mxu0
        %2506 = vrot.lane.b32.xlu0 %v1104, 112
        %v2507 = vpop.permute.xlu0 %2506
        %2508 = vrot.lane.b32.xlu0 %v1109, 112
        %v2509 = vpop.permute.xlu0 %2508
        %v2511 = vsel %vm929, %v2507, 0
        %v2514 = vsel %vm929, %v2509, 0
        %2516 = vmatpush.bf16.xpose.msra.mxu0 0
        %2517 = vmatpush.bf16.xpose.msra.mxu0 0
        %2518 = vmatpush.bf16.xpose.msra.mxu0 0
        %2519 = vmatpush.bf16.xpose.msra.mxu0 0
        %2520 = vmatpush.bf16.xpose.msra.mxu0 0
        %2521 = vmatpush.bf16.xpose.msra.mxu0 0
        %2522 = vmatpush.bf16.xpose.msra.mxu0 0
        %2523 = vmatpush.bf16.xpose.msra.mxu0 %v2514
        %2524 = vmatmul.bf16.gmra.mxu0 %v2511
        %v2525 = vpop.f32.mrf.mxu0
        %v2526 = vadd.f32 %v2360, %v2525
        %v2527 = vpop.f32.mrf.mxu0
        %v2528 = vadd.f32 %v2361, %v2527
        %2529 = vdwg.mxu0
        %2530 = vrot.lane.b32.xlu0 %v1134, 112
        %v2531 = vpop.permute.xlu0 %2530
        %2532 = vrot.lane.b32.xlu0 %v1139, 112
        %v2533 = vpop.permute.xlu0 %2532
        %v2535 = vsel %vm929, %v2531, 0
        %v2538 = vsel %vm929, %v2533, 0
        %2540 = vmatpush.bf16.xpose.msra.mxu0 0
        %2541 = vmatpush.bf16.xpose.msra.mxu0 0
        %2542 = vmatpush.bf16.xpose.msra.mxu0 0
        %2543 = vmatpush.bf16.xpose.msra.mxu0 0
        %2544 = vmatpush.bf16.xpose.msra.mxu0 0
        %2545 = vmatpush.bf16.xpose.msra.mxu0 0
        %2546 = vmatpush.bf16.xpose.msra.mxu0 0
        %2547 = vmatpush.bf16.xpose.msra.mxu0 %v2538
        %2548 = vmatmul.bf16.gmra.mxu0 %v2535
        %v2549 = vpop.f32.mrf.mxu0
        %v2550 = vadd.f32 %v2360, %v2549
        %v2551 = vpop.f32.mrf.mxu0
        %v2552 = vadd.f32 %v2361, %v2551
        %2553 = vdwg.mxu0
        %v2554 = vadd.f32 %v2382, %v901
        %v2555 = vadd.f32 %v2384, %v902
        %v2556 = vadd.f32 %v2406, %v903
        %v2557 = vadd.f32 %v2408, %v904
        %v2558 = vadd.f32 %v2430, %v905
        %v2559 = vadd.f32 %v2432, %v906
        %v2560 = vadd.f32 %v2454, %v907
        %v2561 = vadd.f32 %v2456, %v908
        %v2562 = vadd.f32 %v2478, %v909
        %v2563 = vadd.f32 %v2480, %v910
        %v2564 = vadd.f32 %v2502, %v911
        %v2565 = vadd.f32 %v2504, %v912
        %v2566 = vadd.f32 %v2526, %v913
        %v2567 = vadd.f32 %v2528, %v914
        %v2568 = vadd.f32 %v2550, %v915
        %v2569 = vadd.f32 %v2552, %v916
        %v2570 = vsel %vm1176, %v2554, -inf
        %2571 = vmax.xlane.f32.xlu0 %v2570
        %v2572 = vpop.xlane.xlu0 %2571
        %v2573 = vsel %vm1176, %v2555, -inf
        %2574 = vmax.xlane.f32.xlu0 %v2573
        %v2575 = vpop.xlane.xlu0 %2574
        %v2576 = vsel %vm1176, %v2556, -inf
        %2577 = vmax.xlane.f32.xlu0 %v2576
        %v2578 = vpop.xlane.xlu0 %2577
        %v2579 = vsel %vm1176, %v2557, -inf
        %2580 = vmax.xlane.f32.xlu0 %v2579
        %v2581 = vpop.xlane.xlu0 %2580
        %v2582 = vsel %vm1176, %v2558, -inf
        %2583 = vmax.xlane.f32.xlu0 %v2582
        %v2584 = vpop.xlane.xlu0 %2583
        %v2585 = vsel %vm1176, %v2559, -inf
        %2586 = vmax.xlane.f32.xlu0 %v2585
        %v2587 = vpop.xlane.xlu0 %2586
        %v2588 = vsel %vm1176, %v2560, -inf
        %2589 = vmax.xlane.f32.xlu0 %v2588
        %v2590 = vpop.xlane.xlu0 %2589
        %v2591 = vsel %vm1176, %v2561, -inf
        %2592 = vmax.xlane.f32.xlu0 %v2591
        %v2593 = vpop.xlane.xlu0 %2592
        %v2594 = vsel %vm1176, %v2562, -inf
        %2595 = vmax.xlane.f32.xlu0 %v2594
        %v2596 = vpop.xlane.xlu0 %2595
        %v2597 = vsel %vm1176, %v2563, -inf
        %2598 = vmax.xlane.f32.xlu0 %v2597
        %v2599 = vpop.xlane.xlu0 %2598
        %v2600 = vsel %vm1176, %v2564, -inf
        %2601 = vmax.xlane.f32.xlu0 %v2600
        %v2602 = vpop.xlane.xlu0 %2601
        %v2603 = vsel %vm1176, %v2565, -inf
        %2604 = vmax.xlane.f32.xlu0 %v2603
        %v2605 = vpop.xlane.xlu0 %2604
        %v2606 = vsel %vm1176, %v2566, -inf
        %2607 = vmax.xlane.f32.xlu0 %v2606
        %v2608 = vpop.xlane.xlu0 %2607
        %v2609 = vsel %vm1176, %v2567, -inf
        %2610 = vmax.xlane.f32.xlu0 %v2609
        %v2611 = vpop.xlane.xlu0 %2610
        %v2612 = vsel %vm1176, %v2568, -inf
        %2613 = vmax.xlane.f32.xlu0 %v2612
        %v2614 = vpop.xlane.xlu0 %2613
        %v2615 = vsel %vm1176, %v2569, -inf
        %2616 = vmax.xlane.f32.xlu0 %v2615
        %v2617 = vpop.xlane.xlu0 %2616
        %v2618 = vsub.f32 %v2554, %v2572
        %v2619 = vsub.f32 %v2555, %v2575
        %v2620 = vsub.f32 %v2556, %v2578
        %v2621 = vsub.f32 %v2557, %v2581
        %v2622 = vsub.f32 %v2558, %v2584
        %v2623 = vsub.f32 %v2559, %v2587
        %v2624 = vsub.f32 %v2560, %v2590
        %v2625 = vsub.f32 %v2561, %v2593
        %v2626 = vsub.f32 %v2562, %v2596
        %v2627 = vsub.f32 %v2563, %v2599
        %v2628 = vsub.f32 %v2564, %v2602
        %v2629 = vsub.f32 %v2565, %v2605
        %v2630 = vsub.f32 %v2566, %v2608
        %v2631 = vsub.f32 %v2567, %v2611
        %v2632 = vsub.f32 %v2568, %v2614
        %v2633 = vsub.f32 %v2569, %v2617
        %v2634 = vmul.f32 %v2618, 1.442695
        %v2635 = vpow.pop %v2634
        %v2636 = vmul.f32 %v2619, 1.442695
        %v2637 = vpow.pop %v2636
        %v2638 = vmul.f32 %v2620, 1.442695
        %v2639 = vpow.pop %v2638
        %v2640 = vmul.f32 %v2621, 1.442695
        %v2641 = vpow.pop %v2640
        %v2642 = vmul.f32 %v2622, 1.442695
        %v2643 = vpow.pop %v2642
        %v2644 = vmul.f32 %v2623, 1.442695
        %v2645 = vpow.pop %v2644
        %v2646 = vmul.f32 %v2624, 1.442695
        %v2647 = vpow.pop %v2646
        %v2648 = vmul.f32 %v2625, 1.442695
        %v2649 = vpow.pop %v2648
        %v2650 = vmul.f32 %v2626, 1.442695
        %v2651 = vpow.pop %v2650
        %v2652 = vmul.f32 %v2627, 1.442695
        %v2653 = vpow.pop %v2652
        %v2654 = vmul.f32 %v2628, 1.442695
        %v2655 = vpow.pop %v2654
        %v2656 = vmul.f32 %v2629, 1.442695
        %v2657 = vpow.pop %v2656
        %v2658 = vmul.f32 %v2630, 1.442695
        %v2659 = vpow.pop %v2658
        %v2660 = vmul.f32 %v2631, 1.442695
        %v2661 = vpow.pop %v2660
        %v2662 = vmul.f32 %v2632, 1.442695
        %v2663 = vpow.pop %v2662
        %v2664 = vmul.f32 %v2633, 1.442695
        %v2665 = vpow.pop %v2664
        %v2666 = vsel %vm1176, %v2635, 0.0
        %2667 = vadd.xlane.f32.xlu0 %v2666
        %v2668 = vpop.xlane.xlu0 %2667
        %v2669 = vsel %vm1176, %v2637, 0.0
        %2670 = vadd.xlane.f32.xlu0 %v2669
        %v2671 = vpop.xlane.xlu0 %2670
        %v2672 = vsel %vm1176, %v2639, 0.0
        %2673 = vadd.xlane.f32.xlu0 %v2672
        %v2674 = vpop.xlane.xlu0 %2673
        %v2675 = vsel %vm1176, %v2641, 0.0
        %2676 = vadd.xlane.f32.xlu0 %v2675
        %v2677 = vpop.xlane.xlu0 %2676
        %v2678 = vsel %vm1176, %v2643, 0.0
        %2679 = vadd.xlane.f32.xlu0 %v2678
        %v2680 = vpop.xlane.xlu0 %2679
        %v2681 = vsel %vm1176, %v2645, 0.0
        %2682 = vadd.xlane.f32.xlu0 %v2681
        %v2683 = vpop.xlane.xlu0 %2682
        %v2684 = vsel %vm1176, %v2647, 0.0
        %2685 = vadd.xlane.f32.xlu0 %v2684
        %v2686 = vpop.xlane.xlu0 %2685
        %v2687 = vsel %vm1176, %v2649, 0.0
        %2688 = vadd.xlane.f32.xlu0 %v2687
        %v2689 = vpop.xlane.xlu0 %2688
        %v2690 = vsel %vm1176, %v2651, 0.0
        %2691 = vadd.xlane.f32.xlu0 %v2690
        %v2692 = vpop.xlane.xlu0 %2691
        %v2693 = vsel %vm1176, %v2653, 0.0
        %2694 = vadd.xlane.f32.xlu0 %v2693
        %v2695 = vpop.xlane.xlu0 %2694
        %v2696 = vsel %vm1176, %v2655, 0.0
        %2697 = vadd.xlane.f32.xlu0 %v2696
        %v2698 = vpop.xlane.xlu0 %2697
        %v2699 = vsel %vm1176, %v2657, 0.0
        %2700 = vadd.xlane.f32.xlu0 %v2699
        %v2701 = vpop.xlane.xlu0 %2700
        %v2702 = vsel %vm1176, %v2659, 0.0
        %2703 = vadd.xlane.f32.xlu0 %v2702
        %v2704 = vpop.xlane.xlu0 %2703
        %v2705 = vsel %vm1176, %v2661, 0.0
        %2706 = vadd.xlane.f32.xlu0 %v2705
        %v2707 = vpop.xlane.xlu0 %2706
        %v2708 = vsel %vm1176, %v2663, 0.0
        %2709 = vadd.xlane.f32.xlu0 %v2708
        %v2710 = vpop.xlane.xlu0 %2709
        %v2711 = vsel %vm1176, %v2665, 0.0
        %2712 = vadd.xlane.f32.xlu0 %v2711
        %v2713 = vpop.xlane.xlu0 %2712
        %v2714 = vrcp.pop %v2668
        %v2715 = vrcp.pop %v2671
        %v2716 = vrcp.pop %v2674
        %v2717 = vrcp.pop %v2677
        %v2718 = vrcp.pop %v2680
        %v2719 = vrcp.pop %v2683
        %v2720 = vrcp.pop %v2686
        %v2721 = vrcp.pop %v2689
        %v2722 = vrcp.pop %v2692
        %v2723 = vrcp.pop %v2695
        %v2724 = vrcp.pop %v2698
        %v2725 = vrcp.pop %v2701
        %v2726 = vrcp.pop %v2704
        %v2727 = vrcp.pop %v2707
        %v2728 = vrcp.pop %v2710
        %v2729 = vrcp.pop %v2713
        %v2730 = vmul.f32 %v2635, %v2714
        %v2731 = vmul.f32 %v2637, %v2715
        %v2732 = vmul.f32 %v2639, %v2716
        %v2733 = vmul.f32 %v2641, %v2717
        %v2734 = vmul.f32 %v2643, %v2718
        %v2735 = vmul.f32 %v2645, %v2719
        %v2736 = vmul.f32 %v2647, %v2720
        %v2737 = vmul.f32 %v2649, %v2721
        %v2738 = vmul.f32 %v2651, %v2722
        %v2739 = vmul.f32 %v2653, %v2723
        %v2740 = vmul.f32 %v2655, %v2724
        %v2741 = vmul.f32 %v2657, %v2725
        %v2742 = vmul.f32 %v2659, %v2726
        %v2743 = vmul.f32 %v2661, %v2727
        %v2744 = vmul.f32 %v2663, %v2728
        %v2745 = vmul.f32 %v2665, %v2729
        %s2746 = scalar_lea.vmem %s544, 32 [#allocation16]
        %2747 = vst.msk [vmem:[%s2746] sm:$0xff] %vm1176, %v2730
        %2748 = vst.msk [vmem:[%s2746 + $0x8] sm:$0xff] %vm1176, %v2731
        %2749 = vst.msk [vmem:[%s2746 + $0x40] sm:$0xff] %vm1176, %v2732
        %2750 = vst.msk [vmem:[%s2746 + $0x48] sm:$0xff] %vm1176, %v2733
        %2751 = vst.msk [vmem:[%s2746 + $0x80] sm:$0xff] %vm1176, %v2734
        %2752 = vst.msk [vmem:[%s2746 + $0x88] sm:$0xff] %vm1176, %v2735
        %2753 = vst.msk [vmem:[%s2746 + $0xc0] sm:$0xff] %vm1176, %v2736
        %2754 = vst.msk [vmem:[%s2746 + $0xc8] sm:$0xff] %vm1176, %v2737
        %2755 = vst.msk [vmem:[%s2746 + $0x100] sm:$0xff] %vm1176, %v2738
        %2756 = vst.msk [vmem:[%s2746 + $0x108] sm:$0xff] %vm1176, %v2739
        %2757 = vst.msk [vmem:[%s2746 + $0x140] sm:$0xff] %vm1176, %v2740
        %2758 = vst.msk [vmem:[%s2746 + $0x148] sm:$0xff] %vm1176, %v2741
        %2759 = vst.msk [vmem:[%s2746 + $0x180] sm:$0xff] %vm1176, %v2742
        %2760 = vst.msk [vmem:[%s2746 + $0x188] sm:$0xff] %vm1176, %v2743
        %2761 = vst.msk [vmem:[%s2746 + $0x1c0] sm:$0xff] %vm1176, %v2744
        %2762 = vst.msk [vmem:[%s2746 + $0x1c8] sm:$0xff] %vm1176, %v2745
        %v2763 = vpack.c.bf16 %v2730, %v2730
        %v2764 = vpack.c.bf16 %v2731, %v2731
        %v2765 = vpack.c.bf16 %v2732, %v2732
        %v2766 = vpack.c.bf16 %v2733, %v2733
        %v2767 = vpack.c.bf16 %v2734, %v2734
        %v2768 = vpack.c.bf16 %v2735, %v2735
        %v2769 = vpack.c.bf16 %v2736, %v2736
        %v2770 = vpack.c.bf16 %v2737, %v2737
        %v2771 = vpack.c.bf16 %v2738, %v2738
        %v2772 = vpack.c.bf16 %v2739, %v2739
        %v2773 = vpack.c.bf16 %v2740, %v2740
        %v2774 = vpack.c.bf16 %v2741, %v2741
        %v2775 = vpack.c.bf16 %v2742, %v2742
        %v2776 = vpack.c.bf16 %v2743, %v2743
        %v2777 = vpack.c.bf16 %v2744, %v2744
        %v2778 = vpack.c.bf16 %v2745, %v2745
        %v2781 = vunpack.c.l.b16 %v2763
        %v2782 = vunpack.c.l.b16 %v2764
        %v2783 = vpack.c.b16 %v2782, %v2781
        %2784 = vrot.lane.b32.xlu0 %v1394, 112
        %v2785 = vpop.permute.xlu0 %2784
        %v2788 = vsel %vm1176, %v2783, 0
        %2790 = vmatpush.bf16.msra.mxu0 0
        %2791 = vmatpush.bf16.msra.mxu0 0
        %2792 = vmatpush.bf16.msra.mxu0 0
        %2793 = vmatpush.bf16.msra.mxu0 0
        %2794 = vmatpush.bf16.msra.mxu0 0
        %2795 = vmatpush.bf16.msra.mxu0 0
        %2796 = vmatpush.bf16.msra.mxu0 0
        %2797 = vmatpush.bf16.msra.mxu0 %v2785
        %2798 = vmatmul.bf16.gmra.mxu0 %v2788
        %v2799 = vpop.f32.mrf.mxu0
        %v2800 = vadd.f32 0.0, %v2799
        %v2801 = vpop.f32.mrf.mxu0
        %v2802 = vadd.f32 0.0, %v2801
        %2803 = vdwg.mxu0
        %v2806 = vunpack.c.l.b16 %v2765
        %v2807 = vunpack.c.l.b16 %v2766
        %v2808 = vpack.c.b16 %v2807, %v2806
        %2809 = vrot.lane.b32.xlu0 %v1422, 112
        %v2810 = vpop.permute.xlu0 %2809
        %v2813 = vsel %vm1176, %v2808, 0
        %2815 = vmatpush.bf16.msra.mxu0 0
        %2816 = vmatpush.bf16.msra.mxu0 0
        %2817 = vmatpush.bf16.msra.mxu0 0
        %2818 = vmatpush.bf16.msra.mxu0 0
        %2819 = vmatpush.bf16.msra.mxu0 0
        %2820 = vmatpush.bf16.msra.mxu0 0
        %2821 = vmatpush.bf16.msra.mxu0 0
        %2822 = vmatpush.bf16.msra.mxu0 %v2810
        %2823 = vmatmul.bf16.gmra.mxu0 %v2813
        %v2824 = vpop.f32.mrf.mxu0
        %v2825 = vadd.f32 0.0, %v2824
        %v2826 = vpop.f32.mrf.mxu0
        %v2827 = vadd.f32 0.0, %v2826
        %2828 = vdwg.mxu0
        %v2831 = vunpack.c.l.b16 %v2767
        %v2832 = vunpack.c.l.b16 %v2768
        %v2833 = vpack.c.b16 %v2832, %v2831
        %2834 = vrot.lane.b32.xlu0 %v1450, 112
        %v2835 = vpop.permute.xlu0 %2834
        %v2838 = vsel %vm1176, %v2833, 0
        %2840 = vmatpush.bf16.msra.mxu0 0
        %2841 = vmatpush.bf16.msra.mxu0 0
        %2842 = vmatpush.bf16.msra.mxu0 0
        %2843 = vmatpush.bf16.msra.mxu0 0
        %2844 = vmatpush.bf16.msra.mxu0 0
        %2845 = vmatpush.bf16.msra.mxu0 0
        %2846 = vmatpush.bf16.msra.mxu0 0
        %2847 = vmatpush.bf16.msra.mxu0 %v2835
        %2848 = vmatmul.bf16.gmra.mxu0 %v2838
        %v2849 = vpop.f32.mrf.mxu0
        %v2850 = vadd.f32 0.0, %v2849
        %v2851 = vpop.f32.mrf.mxu0
        %v2852 = vadd.f32 0.0, %v2851
        %2853 = vdwg.mxu0
        %v2856 = vunpack.c.l.b16 %v2769
        %v2857 = vunpack.c.l.b16 %v2770
        %v2858 = vpack.c.b16 %v2857, %v2856
        %2859 = vrot.lane.b32.xlu0 %v1478, 112
        %v2860 = vpop.permute.xlu0 %2859
        %v2863 = vsel %vm1176, %v2858, 0
        %2865 = vmatpush.bf16.msra.mxu0 0
        %2866 = vmatpush.bf16.msra.mxu0 0
        %2867 = vmatpush.bf16.msra.mxu0 0
        %2868 = vmatpush.bf16.msra.mxu0 0
        %2869 = vmatpush.bf16.msra.mxu0 0
        %2870 = vmatpush.bf16.msra.mxu0 0
        %2871 = vmatpush.bf16.msra.mxu0 0
        %2872 = vmatpush.bf16.msra.mxu0 %v2860
        %2873 = vmatmul.bf16.gmra.mxu0 %v2863
        %v2874 = vpop.f32.mrf.mxu0
        %v2875 = vadd.f32 0.0, %v2874
        %v2876 = vpop.f32.mrf.mxu0
        %v2877 = vadd.f32 0.0, %v2876
        %2878 = vdwg.mxu0
        %v2881 = vunpack.c.l.b16 %v2771
        %v2882 = vunpack.c.l.b16 %v2772
        %v2883 = vpack.c.b16 %v2882, %v2881
        %2884 = vrot.lane.b32.xlu0 %v1506, 112
        %v2885 = vpop.permute.xlu0 %2884
        %v2888 = vsel %vm1176, %v2883, 0
        %2890 = vmatpush.bf16.msra.mxu0 0
        %2891 = vmatpush.bf16.msra.mxu0 0
        %2892 = vmatpush.bf16.msra.mxu0 0
        %2893 = vmatpush.bf16.msra.mxu0 0
        %2894 = vmatpush.bf16.msra.mxu0 0
        %2895 = vmatpush.bf16.msra.mxu0 0
        %2896 = vmatpush.bf16.msra.mxu0 0
        %2897 = vmatpush.bf16.msra.mxu0 %v2885
        %2898 = vmatmul.bf16.gmra.mxu0 %v2888
        %v2899 = vpop.f32.mrf.mxu0
        %v2900 = vadd.f32 0.0, %v2899
        %v2901 = vpop.f32.mrf.mxu0
        %v2902 = vadd.f32 0.0, %v2901
        %2903 = vdwg.mxu0
        %v2906 = vunpack.c.l.b16 %v2773
        %v2907 = vunpack.c.l.b16 %v2774
        %v2908 = vpack.c.b16 %v2907, %v2906
        %2909 = vrot.lane.b32.xlu0 %v1534, 112
        %v2910 = vpop.permute.xlu0 %2909
        %v2913 = vsel %vm1176, %v2908, 0
        %2915 = vmatpush.bf16.msra.mxu0 0
        %2916 = vmatpush.bf16.msra.mxu0 0
        %2917 = vmatpush.bf16.msra.mxu0 0
        %2918 = vmatpush.bf16.msra.mxu0 0
        %2919 = vmatpush.bf16.msra.mxu0 0
        %2920 = vmatpush.bf16.msra.mxu0 0
        %2921 = vmatpush.bf16.msra.mxu0 0
        %2922 = vmatpush.bf16.msra.mxu0 %v2910
        %2923 = vmatmul.bf16.gmra.mxu0 %v2913
        %v2924 = vpop.f32.mrf.mxu0
        %v2925 = vadd.f32 0.0, %v2924
        %v2926 = vpop.f32.mrf.mxu0
        %v2927 = vadd.f32 0.0, %v2926
        %2928 = vdwg.mxu0
        %v2931 = vunpack.c.l.b16 %v2775
        %v2932 = vunpack.c.l.b16 %v2776
        %v2933 = vpack.c.b16 %v2932, %v2931
        %2934 = vrot.lane.b32.xlu0 %v1562, 112
        %v2935 = vpop.permute.xlu0 %2934
        %v2938 = vsel %vm1176, %v2933, 0
        %2940 = vmatpush.bf16.msra.mxu0 0
        %2941 = vmatpush.bf16.msra.mxu0 0
        %2942 = vmatpush.bf16.msra.mxu0 0
        %2943 = vmatpush.bf16.msra.mxu0 0
        %2944 = vmatpush.bf16.msra.mxu0 0
        %2945 = vmatpush.bf16.msra.mxu0 0
        %2946 = vmatpush.bf16.msra.mxu0 0
        %2947 = vmatpush.bf16.msra.mxu0 %v2935
        %2948 = vmatmul.bf16.gmra.mxu0 %v2938
        %v2949 = vpop.f32.mrf.mxu0
        %v2950 = vadd.f32 0.0, %v2949
        %v2951 = vpop.f32.mrf.mxu0
        %v2952 = vadd.f32 0.0, %v2951
        %2953 = vdwg.mxu0
        %v2956 = vunpack.c.l.b16 %v2777
        %v2957 = vunpack.c.l.b16 %v2778
        %v2958 = vpack.c.b16 %v2957, %v2956
        %2959 = vrot.lane.b32.xlu0 %v1590, 112
        %v2960 = vpop.permute.xlu0 %2959
        %v2963 = vsel %vm1176, %v2958, 0
        %2965 = vmatpush.bf16.msra.mxu0 0
        %2966 = vmatpush.bf16.msra.mxu0 0
        %2967 = vmatpush.bf16.msra.mxu0 0
        %2968 = vmatpush.bf16.msra.mxu0 0
        %2969 = vmatpush.bf16.msra.mxu0 0
        %2970 = vmatpush.bf16.msra.mxu0 0
        %2971 = vmatpush.bf16.msra.mxu0 0
        %2972 = vmatpush.bf16.msra.mxu0 %v2960
        %2973 = vmatmul.bf16.gmra.mxu0 %v2963
        %v2974 = vpop.f32.mrf.mxu0
        %v2975 = vadd.f32 0.0, %v2974
        %v2976 = vpop.f32.mrf.mxu0
        %v2977 = vadd.f32 0.0, %v2976
        %2978 = vdwg.mxu0
        %v2979 = vpack.c.bf16 %v2800, %v2800
        %v2980 = vpack.c.bf16 %v2802, %v2802
        %v2981 = vpack.c.bf16 %v2825, %v2825
        %v2982 = vpack.c.bf16 %v2827, %v2827
        %v2983 = vpack.c.bf16 %v2850, %v2850
        %v2984 = vpack.c.bf16 %v2852, %v2852
        %v2985 = vpack.c.bf16 %v2875, %v2875
        %v2986 = vpack.c.bf16 %v2877, %v2877
        %v2987 = vpack.c.bf16 %v2900, %v2900
        %v2988 = vpack.c.bf16 %v2902, %v2902
        %v2989 = vpack.c.bf16 %v2925, %v2925
        %v2990 = vpack.c.bf16 %v2927, %v2927
        %v2991 = vpack.c.bf16 %v2950, %v2950
        %v2992 = vpack.c.bf16 %v2952, %v2952
        %v2993 = vpack.c.bf16 %v2975, %v2975
        %v2994 = vpack.c.bf16 %v2977, %v2977
        %3011 = vrot.lane.b32.xlu0 %v2979, 16
        %v3012 = vpop.permute.xlu0 %3011
        %3013 = vrot.lane.b32.xlu0 %v2980, 16
        %v3014 = vpop.permute.xlu0 %3013
        %3015 = vrot.lane.b32.xlu0 %v2981, 16
        %v3016 = vpop.permute.xlu0 %3015
        %3017 = vrot.lane.b32.xlu0 %v2982, 16
        %v3018 = vpop.permute.xlu0 %3017
        %3019 = vrot.lane.b32.xlu0 %v2983, 16
        %v3020 = vpop.permute.xlu0 %3019
        %3021 = vrot.lane.b32.xlu0 %v2984, 16
        %v3022 = vpop.permute.xlu0 %3021
        %3023 = vrot.lane.b32.xlu0 %v2985, 16
        %v3024 = vpop.permute.xlu0 %3023
        %3025 = vrot.lane.b32.xlu0 %v2986, 16
        %v3026 = vpop.permute.xlu0 %3025
        %3027 = vrot.lane.b32.xlu0 %v2987, 16
        %v3028 = vpop.permute.xlu0 %3027
        %3029 = vrot.lane.b32.xlu0 %v2988, 16
        %v3030 = vpop.permute.xlu0 %3029
        %3031 = vrot.lane.b32.xlu0 %v2989, 16
        %v3032 = vpop.permute.xlu0 %3031
        %3033 = vrot.lane.b32.xlu0 %v2990, 16
        %v3034 = vpop.permute.xlu0 %3033
        %3035 = vrot.lane.b32.xlu0 %v2991, 16
        %v3036 = vpop.permute.xlu0 %3035
        %3037 = vrot.lane.b32.xlu0 %v2992, 16
        %v3038 = vpop.permute.xlu0 %3037
        %3039 = vrot.lane.b32.xlu0 %v2993, 16
        %v3040 = vpop.permute.xlu0 %3039
        %3041 = vrot.lane.b32.xlu0 %v2994, 16
        %v3042 = vpop.permute.xlu0 %3041
        %vm3059 = vcmask 191616
        %3060 = vst.msk [vmem:[#allocation2] sm:$0xf] %vm3059, %v3012
        %3061 = vst.msk [vmem:[#allocation2 + $0x4] sm:$0xf] %vm3059, %v3014
        %3062 = vst.msk [vmem:[#allocation2 + $0x8] sm:$0xf] %vm3059, %v3016
        %3063 = vst.msk [vmem:[#allocation2 + $0xc] sm:$0xf] %vm3059, %v3018
        %3064 = vst.msk [vmem:[#allocation2 + $0x10] sm:$0xf] %vm3059, %v3020
        %3065 = vst.msk [vmem:[#allocation2 + $0x14] sm:$0xf] %vm3059, %v3022
        %3066 = vst.msk [vmem:[#allocation2 + $0x18] sm:$0xf] %vm3059, %v3024
        %3067 = vst.msk [vmem:[#allocation2 + $0x1c] sm:$0xf] %vm3059, %v3026
        %3068 = vst.msk [vmem:[#allocation2 + $0x20] sm:$0xf] %vm3059, %v3028
        %3069 = vst.msk [vmem:[#allocation2 + $0x24] sm:$0xf] %vm3059, %v3030
        %3070 = vst.msk [vmem:[#allocation2 + $0x28] sm:$0xf] %vm3059, %v3032
        %3071 = vst.msk [vmem:[#allocation2 + $0x2c] sm:$0xf] %vm3059, %v3034
        %3072 = vst.msk [vmem:[#allocation2 + $0x30] sm:$0xf] %vm3059, %v3036
        %3073 = vst.msk [vmem:[#allocation2 + $0x34] sm:$0xf] %vm3059, %v3038
        %3074 = vst.msk [vmem:[#allocation2 + $0x38] sm:$0xf] %vm3059, %v3040
        %3075 = vst.msk [vmem:[#allocation2 + $0x3c] sm:$0xf] %vm3059, %v3042
        %s3076 = scalar_lea.vmem [#allocation11], 48
        %v3077 = vld [vmem:[%s3076] sm:$0xff]
        %v3078 = vld [vmem:[%s3076 + $0x8] sm:$0xff]
        %3079 = vrot.lane.b32.xlu0 %v923, 104
        %v3080 = vpop.permute.xlu0 %3079
        %3081 = vrot.lane.b32.xlu0 %v928, 104
        %v3082 = vpop.permute.xlu0 %3081
        %v3084 = vsel %vm929, %v3080, 0
        %v3087 = vsel %vm929, %v3082, 0
        %3089 = vmatpush.bf16.xpose.msra.mxu0 0
        %3090 = vmatpush.bf16.xpose.msra.mxu0 0
        %3091 = vmatpush.bf16.xpose.msra.mxu0 0
        %3092 = vmatpush.bf16.xpose.msra.mxu0 0
        %3093 = vmatpush.bf16.xpose.msra.mxu0 0
        %3094 = vmatpush.bf16.xpose.msra.mxu0 0
        %3095 = vmatpush.bf16.xpose.msra.mxu0 0
        %3096 = vmatpush.bf16.xpose.msra.mxu0 %v3087
        %3097 = vmatmul.bf16.gmra.mxu0 %v3084
        %v3098 = vpop.f32.mrf.mxu0
        %v3099 = vadd.f32 %v3077, %v3098
        %v3100 = vpop.f32.mrf.mxu0
        %v3101 = vadd.f32 %v3078, %v3100
        %3102 = vdwg.mxu0
        %3103 = vrot.lane.b32.xlu0 %v954, 104
        %v3104 = vpop.permute.xlu0 %3103
        %3105 = vrot.lane.b32.xlu0 %v959, 104
        %v3106 = vpop.permute.xlu0 %3105
        %v3108 = vsel %vm929, %v3104, 0
        %v3111 = vsel %vm929, %v3106, 0
        %3113 = vmatpush.bf16.xpose.msra.mxu0 0
        %3114 = vmatpush.bf16.xpose.msra.mxu0 0
        %3115 = vmatpush.bf16.xpose.msra.mxu0 0
        %3116 = vmatpush.bf16.xpose.msra.mxu0 0
        %3117 = vmatpush.bf16.xpose.msra.mxu0 0
        %3118 = vmatpush.bf16.xpose.msra.mxu0 0
        %3119 = vmatpush.bf16.xpose.msra.mxu0 0
        %3120 = vmatpush.bf16.xpose.msra.mxu0 %v3111
        %3121 = vmatmul.bf16.gmra.mxu0 %v3108
        %v3122 = vpop.f32.mrf.mxu0
        %v3123 = vadd.f32 %v3077, %v3122
        %v3124 = vpop.f32.mrf.mxu0
        %v3125 = vadd.f32 %v3078, %v3124
        %3126 = vdwg.mxu0
        %3127 = vrot.lane.b32.xlu0 %v984, 104
        %v3128 = vpop.permute.xlu0 %3127
        %3129 = vrot.lane.b32.xlu0 %v989, 104
        %v3130 = vpop.permute.xlu0 %3129
        %v3132 = vsel %vm929, %v3128, 0
        %v3135 = vsel %vm929, %v3130, 0
        %3137 = vmatpush.bf16.xpose.msra.mxu0 0
        %3138 = vmatpush.bf16.xpose.msra.mxu0 0
        %3139 = vmatpush.bf16.xpose.msra.mxu0 0
        %3140 = vmatpush.bf16.xpose.msra.mxu0 0
        %3141 = vmatpush.bf16.xpose.msra.mxu0 0
        %3142 = vmatpush.bf16.xpose.msra.mxu0 0
        %3143 = vmatpush.bf16.xpose.msra.mxu0 0
        %3144 = vmatpush.bf16.xpose.msra.mxu0 %v3135
        %3145 = vmatmul.bf16.gmra.mxu0 %v3132
        %v3146 = vpop.f32.mrf.mxu0
        %v3147 = vadd.f32 %v3077, %v3146
        %v3148 = vpop.f32.mrf.mxu0
        %v3149 = vadd.f32 %v3078, %v3148
        %3150 = vdwg.mxu0
        %3151 = vrot.lane.b32.xlu0 %v1014, 104
        %v3152 = vpop.permute.xlu0 %3151
        %3153 = vrot.lane.b32.xlu0 %v1019, 104
        %v3154 = vpop.permute.xlu0 %3153
        %v3156 = vsel %vm929, %v3152, 0
        %v3159 = vsel %vm929, %v3154, 0
        %3161 = vmatpush.bf16.xpose.msra.mxu0 0
        %3162 = vmatpush.bf16.xpose.msra.mxu0 0
        %3163 = vmatpush.bf16.xpose.msra.mxu0 0
        %3164 = vmatpush.bf16.xpose.msra.mxu0 0
        %3165 = vmatpush.bf16.xpose.msra.mxu0 0
        %3166 = vmatpush.bf16.xpose.msra.mxu0 0
        %3167 = vmatpush.bf16.xpose.msra.mxu0 0
        %3168 = vmatpush.bf16.xpose.msra.mxu0 %v3159
        %3169 = vmatmul.bf16.gmra.mxu0 %v3156
        %v3170 = vpop.f32.mrf.mxu0
        %v3171 = vadd.f32 %v3077, %v3170
        %v3172 = vpop.f32.mrf.mxu0
        %v3173 = vadd.f32 %v3078, %v3172
        %3174 = vdwg.mxu0
        %3175 = vrot.lane.b32.xlu0 %v1044, 104
        %v3176 = vpop.permute.xlu0 %3175
        %3177 = vrot.lane.b32.xlu0 %v1049, 104
        %v3178 = vpop.permute.xlu0 %3177
        %v3180 = vsel %vm929, %v3176, 0
        %v3183 = vsel %vm929, %v3178, 0
        %3185 = vmatpush.bf16.xpose.msra.mxu0 0
        %3186 = vmatpush.bf16.xpose.msra.mxu0 0
        %3187 = vmatpush.bf16.xpose.msra.mxu0 0
        %3188 = vmatpush.bf16.xpose.msra.mxu0 0
        %3189 = vmatpush.bf16.xpose.msra.mxu0 0
        %3190 = vmatpush.bf16.xpose.msra.mxu0 0
        %3191 = vmatpush.bf16.xpose.msra.mxu0 0
        %3192 = vmatpush.bf16.xpose.msra.mxu0 %v3183
        %3193 = vmatmul.bf16.gmra.mxu0 %v3180
        %v3194 = vpop.f32.mrf.mxu0
        %v3195 = vadd.f32 %v3077, %v3194
        %v3196 = vpop.f32.mrf.mxu0
        %v3197 = vadd.f32 %v3078, %v3196
        %3198 = vdwg.mxu0
        %3199 = vrot.lane.b32.xlu0 %v1074, 104
        %v3200 = vpop.permute.xlu0 %3199
        %3201 = vrot.lane.b32.xlu0 %v1079, 104
        %v3202 = vpop.permute.xlu0 %3201
        %v3204 = vsel %vm929, %v3200, 0
        %v3207 = vsel %vm929, %v3202, 0
        %3209 = vmatpush.bf16.xpose.msra.mxu0 0
        %3210 = vmatpush.bf16.xpose.msra.mxu0 0
        %3211 = vmatpush.bf16.xpose.msra.mxu0 0
        %3212 = vmatpush.bf16.xpose.msra.mxu0 0
        %3213 = vmatpush.bf16.xpose.msra.mxu0 0
        %3214 = vmatpush.bf16.xpose.msra.mxu0 0
        %3215 = vmatpush.bf16.xpose.msra.mxu0 0
        %3216 = vmatpush.bf16.xpose.msra.mxu0 %v3207
        %3217 = vmatmul.bf16.gmra.mxu0 %v3204
        %v3218 = vpop.f32.mrf.mxu0
        %v3219 = vadd.f32 %v3077, %v3218
        %v3220 = vpop.f32.mrf.mxu0
        %v3221 = vadd.f32 %v3078, %v3220
        %3222 = vdwg.mxu0
        %3223 = vrot.lane.b32.xlu0 %v1104, 104
        %v3224 = vpop.permute.xlu0 %3223
        %3225 = vrot.lane.b32.xlu0 %v1109, 104
        %v3226 = vpop.permute.xlu0 %3225
        %v3228 = vsel %vm929, %v3224, 0
        %v3231 = vsel %vm929, %v3226, 0
        %3233 = vmatpush.bf16.xpose.msra.mxu0 0
        %3234 = vmatpush.bf16.xpose.msra.mxu0 0
        %3235 = vmatpush.bf16.xpose.msra.mxu0 0
        %3236 = vmatpush.bf16.xpose.msra.mxu0 0
        %3237 = vmatpush.bf16.xpose.msra.mxu0 0
        %3238 = vmatpush.bf16.xpose.msra.mxu0 0
        %3239 = vmatpush.bf16.xpose.msra.mxu0 0
        %3240 = vmatpush.bf16.xpose.msra.mxu0 %v3231
        %3241 = vmatmul.bf16.gmra.mxu0 %v3228
        %v3242 = vpop.f32.mrf.mxu0
        %v3243 = vadd.f32 %v3077, %v3242
        %v3244 = vpop.f32.mrf.mxu0
        %v3245 = vadd.f32 %v3078, %v3244
        %3246 = vdwg.mxu0
        %3247 = vrot.lane.b32.xlu0 %v1134, 104
        %v3248 = vpop.permute.xlu0 %3247
        %3249 = vrot.lane.b32.xlu0 %v1139, 104
        %v3250 = vpop.permute.xlu0 %3249
        %v3252 = vsel %vm929, %v3248, 0
        %v3255 = vsel %vm929, %v3250, 0
        %3257 = vmatpush.bf16.xpose.msra.mxu0 0
        %3258 = vmatpush.bf16.xpose.msra.mxu0 0
        %3259 = vmatpush.bf16.xpose.msra.mxu0 0
        %3260 = vmatpush.bf16.xpose.msra.mxu0 0
        %3261 = vmatpush.bf16.xpose.msra.mxu0 0
        %3262 = vmatpush.bf16.xpose.msra.mxu0 0
        %3263 = vmatpush.bf16.xpose.msra.mxu0 0
        %3264 = vmatpush.bf16.xpose.msra.mxu0 %v3255
        %3265 = vmatmul.bf16.gmra.mxu0 %v3252
        %v3266 = vpop.f32.mrf.mxu0
        %v3267 = vadd.f32 %v3077, %v3266
        %v3268 = vpop.f32.mrf.mxu0
        %v3269 = vadd.f32 %v3078, %v3268
        %3270 = vdwg.mxu0
        %v3271 = vadd.f32 %v3099, %v901
        %v3272 = vadd.f32 %v3101, %v902
        %v3273 = vadd.f32 %v3123, %v903
        %v3274 = vadd.f32 %v3125, %v904
        %v3275 = vadd.f32 %v3147, %v905
        %v3276 = vadd.f32 %v3149, %v906
        %v3277 = vadd.f32 %v3171, %v907
        %v3278 = vadd.f32 %v3173, %v908
        %v3279 = vadd.f32 %v3195, %v909
        %v3280 = vadd.f32 %v3197, %v910
        %v3281 = vadd.f32 %v3219, %v911
        %v3282 = vadd.f32 %v3221, %v912
        %v3283 = vadd.f32 %v3243, %v913
        %v3284 = vadd.f32 %v3245, %v914
        %v3285 = vadd.f32 %v3267, %v915
        %v3286 = vadd.f32 %v3269, %v916
        %v3287 = vsel %vm1176, %v3271, -inf
        %3288 = vmax.xlane.f32.xlu0 %v3287
        %v3289 = vpop.xlane.xlu0 %3288
        %v3290 = vsel %vm1176, %v3272, -inf
        %3291 = vmax.xlane.f32.xlu0 %v3290
        %v3292 = vpop.xlane.xlu0 %3291
        %v3293 = vsel %vm1176, %v3273, -inf
        %3294 = vmax.xlane.f32.xlu0 %v3293
        %v3295 = vpop.xlane.xlu0 %3294
        %v3296 = vsel %vm1176, %v3274, -inf
        %3297 = vmax.xlane.f32.xlu0 %v3296
        %v3298 = vpop.xlane.xlu0 %3297
        %v3299 = vsel %vm1176, %v3275, -inf
        %3300 = vmax.xlane.f32.xlu0 %v3299
        %v3301 = vpop.xlane.xlu0 %3300
        %v3302 = vsel %vm1176, %v3276, -inf
        %3303 = vmax.xlane.f32.xlu0 %v3302
        %v3304 = vpop.xlane.xlu0 %3303
        %v3305 = vsel %vm1176, %v3277, -inf
        %3306 = vmax.xlane.f32.xlu0 %v3305
        %v3307 = vpop.xlane.xlu0 %3306
        %v3308 = vsel %vm1176, %v3278, -inf
        %3309 = vmax.xlane.f32.xlu0 %v3308
        %v3310 = vpop.xlane.xlu0 %3309
        %v3311 = vsel %vm1176, %v3279, -inf
        %3312 = vmax.xlane.f32.xlu0 %v3311
        %v3313 = vpop.xlane.xlu0 %3312
        %v3314 = vsel %vm1176, %v3280, -inf
        %3315 = vmax.xlane.f32.xlu0 %v3314
        %v3316 = vpop.xlane.xlu0 %3315
        %v3317 = vsel %vm1176, %v3281, -inf
        %3318 = vmax.xlane.f32.xlu0 %v3317
        %v3319 = vpop.xlane.xlu0 %3318
        %v3320 = vsel %vm1176, %v3282, -inf
        %3321 = vmax.xlane.f32.xlu0 %v3320
        %v3322 = vpop.xlane.xlu0 %3321
        %v3323 = vsel %vm1176, %v3283, -inf
        %3324 = vmax.xlane.f32.xlu0 %v3323
        %v3325 = vpop.xlane.xlu0 %3324
        %v3326 = vsel %vm1176, %v3284, -inf
        %3327 = vmax.xlane.f32.xlu0 %v3326
        %v3328 = vpop.xlane.xlu0 %3327
        %v3329 = vsel %vm1176, %v3285, -inf
        %3330 = vmax.xlane.f32.xlu0 %v3329
        %v3331 = vpop.xlane.xlu0 %3330
        %v3332 = vsel %vm1176, %v3286, -inf
        %3333 = vmax.xlane.f32.xlu0 %v3332
        %v3334 = vpop.xlane.xlu0 %3333
        %v3335 = vsub.f32 %v3271, %v3289
        %v3336 = vsub.f32 %v3272, %v3292
        %v3337 = vsub.f32 %v3273, %v3295
        %v3338 = vsub.f32 %v3274, %v3298
        %v3339 = vsub.f32 %v3275, %v3301
        %v3340 = vsub.f32 %v3276, %v3304
        %v3341 = vsub.f32 %v3277, %v3307
        %v3342 = vsub.f32 %v3278, %v3310
        %v3343 = vsub.f32 %v3279, %v3313
        %v3344 = vsub.f32 %v3280, %v3316
        %v3345 = vsub.f32 %v3281, %v3319
        %v3346 = vsub.f32 %v3282, %v3322
        %v3347 = vsub.f32 %v3283, %v3325
        %v3348 = vsub.f32 %v3284, %v3328
        %v3349 = vsub.f32 %v3285, %v3331
        %v3350 = vsub.f32 %v3286, %v3334
        %v3351 = vmul.f32 %v3335, 1.442695
        %v3352 = vpow.pop %v3351
        %v3353 = vmul.f32 %v3336, 1.442695
        %v3354 = vpow.pop %v3353
        %v3355 = vmul.f32 %v3337, 1.442695
        %v3356 = vpow.pop %v3355
        %v3357 = vmul.f32 %v3338, 1.442695
        %v3358 = vpow.pop %v3357
        %v3359 = vmul.f32 %v3339, 1.442695
        %v3360 = vpow.pop %v3359
        %v3361 = vmul.f32 %v3340, 1.442695
        %v3362 = vpow.pop %v3361
        %v3363 = vmul.f32 %v3341, 1.442695
        %v3364 = vpow.pop %v3363
        %v3365 = vmul.f32 %v3342, 1.442695
        %v3366 = vpow.pop %v3365
        %v3367 = vmul.f32 %v3343, 1.442695
        %v3368 = vpow.pop %v3367
        %v3369 = vmul.f32 %v3344, 1.442695
        %v3370 = vpow.pop %v3369
        %v3371 = vmul.f32 %v3345, 1.442695
        %v3372 = vpow.pop %v3371
        %v3373 = vmul.f32 %v3346, 1.442695
        %v3374 = vpow.pop %v3373
        %v3375 = vmul.f32 %v3347, 1.442695
        %v3376 = vpow.pop %v3375
        %v3377 = vmul.f32 %v3348, 1.442695
        %v3378 = vpow.pop %v3377
        %v3379 = vmul.f32 %v3349, 1.442695
        %v3380 = vpow.pop %v3379
        %v3381 = vmul.f32 %v3350, 1.442695
        %v3382 = vpow.pop %v3381
        %v3383 = vsel %vm1176, %v3352, 0.0
        %3384 = vadd.xlane.f32.xlu0 %v3383
        %v3385 = vpop.xlane.xlu0 %3384
        %v3386 = vsel %vm1176, %v3354, 0.0
        %3387 = vadd.xlane.f32.xlu0 %v3386
        %v3388 = vpop.xlane.xlu0 %3387
        %v3389 = vsel %vm1176, %v3356, 0.0
        %3390 = vadd.xlane.f32.xlu0 %v3389
        %v3391 = vpop.xlane.xlu0 %3390
        %v3392 = vsel %vm1176, %v3358, 0.0
        %3393 = vadd.xlane.f32.xlu0 %v3392
        %v3394 = vpop.xlane.xlu0 %3393
        %v3395 = vsel %vm1176, %v3360, 0.0
        %3396 = vadd.xlane.f32.xlu0 %v3395
        %v3397 = vpop.xlane.xlu0 %3396
        %v3398 = vsel %vm1176, %v3362, 0.0
        %3399 = vadd.xlane.f32.xlu0 %v3398
        %v3400 = vpop.xlane.xlu0 %3399
        %v3401 = vsel %vm1176, %v3364, 0.0
        %3402 = vadd.xlane.f32.xlu0 %v3401
        %v3403 = vpop.xlane.xlu0 %3402
        %v3404 = vsel %vm1176, %v3366, 0.0
        %3405 = vadd.xlane.f32.xlu0 %v3404
        %v3406 = vpop.xlane.xlu0 %3405
        %v3407 = vsel %vm1176, %v3368, 0.0
        %3408 = vadd.xlane.f32.xlu0 %v3407
        %v3409 = vpop.xlane.xlu0 %3408
        %v3410 = vsel %vm1176, %v3370, 0.0
        %3411 = vadd.xlane.f32.xlu0 %v3410
        %v3412 = vpop.xlane.xlu0 %3411
        %v3413 = vsel %vm1176, %v3372, 0.0
        %3414 = vadd.xlane.f32.xlu0 %v3413
        %v3415 = vpop.xlane.xlu0 %3414
        %v3416 = vsel %vm1176, %v3374, 0.0
        %3417 = vadd.xlane.f32.xlu0 %v3416
        %v3418 = vpop.xlane.xlu0 %3417
        %v3419 = vsel %vm1176, %v3376, 0.0
        %3420 = vadd.xlane.f32.xlu0 %v3419
        %v3421 = vpop.xlane.xlu0 %3420
        %v3422 = vsel %vm1176, %v3378, 0.0
        %3423 = vadd.xlane.f32.xlu0 %v3422
        %v3424 = vpop.xlane.xlu0 %3423
        %v3425 = vsel %vm1176, %v3380, 0.0
        %3426 = vadd.xlane.f32.xlu0 %v3425
        %v3427 = vpop.xlane.xlu0 %3426
        %v3428 = vsel %vm1176, %v3382, 0.0
        %3429 = vadd.xlane.f32.xlu0 %v3428
        %v3430 = vpop.xlane.xlu0 %3429
        %v3431 = vrcp.pop %v3385
        %v3432 = vrcp.pop %v3388
        %v3433 = vrcp.pop %v3391
        %v3434 = vrcp.pop %v3394
        %v3435 = vrcp.pop %v3397
        %v3436 = vrcp.pop %v3400
        %v3437 = vrcp.pop %v3403
        %v3438 = vrcp.pop %v3406
        %v3439 = vrcp.pop %v3409
        %v3440 = vrcp.pop %v3412
        %v3441 = vrcp.pop %v3415
        %v3442 = vrcp.pop %v3418
        %v3443 = vrcp.pop %v3421
        %v3444 = vrcp.pop %v3424
        %v3445 = vrcp.pop %v3427
        %v3446 = vrcp.pop %v3430
        %v3447 = vmul.f32 %v3352, %v3431
        %v3448 = vmul.f32 %v3354, %v3432
        %v3449 = vmul.f32 %v3356, %v3433
        %v3450 = vmul.f32 %v3358, %v3434
        %v3451 = vmul.f32 %v3360, %v3435
        %v3452 = vmul.f32 %v3362, %v3436
        %v3453 = vmul.f32 %v3364, %v3437
        %v3454 = vmul.f32 %v3366, %v3438
        %v3455 = vmul.f32 %v3368, %v3439
        %v3456 = vmul.f32 %v3370, %v3440
        %v3457 = vmul.f32 %v3372, %v3441
        %v3458 = vmul.f32 %v3374, %v3442
        %v3459 = vmul.f32 %v3376, %v3443
        %v3460 = vmul.f32 %v3378, %v3444
        %v3461 = vmul.f32 %v3380, %v3445
        %v3462 = vmul.f32 %v3382, %v3446
        %s3463 = scalar_lea.vmem %s544, 48 [#allocation16]
        %3464 = vst.msk [vmem:[%s3463] sm:$0xff] %vm1176, %v3447
        %3465 = vst.msk [vmem:[%s3463 + $0x8] sm:$0xff] %vm1176, %v3448
        %3466 = vst.msk [vmem:[%s3463 + $0x40] sm:$0xff] %vm1176, %v3449
        %3467 = vst.msk [vmem:[%s3463 + $0x48] sm:$0xff] %vm1176, %v3450
        %3468 = vst.msk [vmem:[%s3463 + $0x80] sm:$0xff] %vm1176, %v3451
        %3469 = vst.msk [vmem:[%s3463 + $0x88] sm:$0xff] %vm1176, %v3452
        %3470 = vst.msk [vmem:[%s3463 + $0xc0] sm:$0xff] %vm1176, %v3453
        %3471 = vst.msk [vmem:[%s3463 + $0xc8] sm:$0xff] %vm1176, %v3454
        %3472 = vst.msk [vmem:[%s3463 + $0x100] sm:$0xff] %vm1176, %v3455
        %3473 = vst.msk [vmem:[%s3463 + $0x108] sm:$0xff] %vm1176, %v3456
        %3474 = vst.msk [vmem:[%s3463 + $0x140] sm:$0xff] %vm1176, %v3457
        %3475 = vst.msk [vmem:[%s3463 + $0x148] sm:$0xff] %vm1176, %v3458
        %3476 = vst.msk [vmem:[%s3463 + $0x180] sm:$0xff] %vm1176, %v3459
        %3477 = vst.msk [vmem:[%s3463 + $0x188] sm:$0xff] %vm1176, %v3460
        %3478 = vst.msk [vmem:[%s3463 + $0x1c0] sm:$0xff] %vm1176, %v3461
        %3479 = vst.msk [vmem:[%s3463 + $0x1c8] sm:$0xff] %vm1176, %v3462
        %v3480 = vpack.c.bf16 %v3447, %v3447
        %v3481 = vpack.c.bf16 %v3448, %v3448
        %v3482 = vpack.c.bf16 %v3449, %v3449
        %v3483 = vpack.c.bf16 %v3450, %v3450
        %v3484 = vpack.c.bf16 %v3451, %v3451
        %v3485 = vpack.c.bf16 %v3452, %v3452
        %v3486 = vpack.c.bf16 %v3453, %v3453
        %v3487 = vpack.c.bf16 %v3454, %v3454
        %v3488 = vpack.c.bf16 %v3455, %v3455
        %v3489 = vpack.c.bf16 %v3456, %v3456
        %v3490 = vpack.c.bf16 %v3457, %v3457
        %v3491 = vpack.c.bf16 %v3458, %v3458
        %v3492 = vpack.c.bf16 %v3459, %v3459
        %v3493 = vpack.c.bf16 %v3460, %v3460
        %v3494 = vpack.c.bf16 %v3461, %v3461
        %v3495 = vpack.c.bf16 %v3462, %v3462
        %v3498 = vunpack.c.l.b16 %v3480
        %v3499 = vunpack.c.l.b16 %v3481
        %v3500 = vpack.c.b16 %v3499, %v3498
        %3501 = vrot.lane.b32.xlu0 %v1394, 104
        %v3502 = vpop.permute.xlu0 %3501
        %v3505 = vsel %vm1176, %v3500, 0
        %3507 = vmatpush.bf16.msra.mxu0 0
        %3508 = vmatpush.bf16.msra.mxu0 0
        %3509 = vmatpush.bf16.msra.mxu0 0
        %3510 = vmatpush.bf16.msra.mxu0 0
        %3511 = vmatpush.bf16.msra.mxu0 0
        %3512 = vmatpush.bf16.msra.mxu0 0
        %3513 = vmatpush.bf16.msra.mxu0 0
        %3514 = vmatpush.bf16.msra.mxu0 %v3502
        %3515 = vmatmul.bf16.gmra.mxu0 %v3505
        %v3516 = vpop.f32.mrf.mxu0
        %v3517 = vadd.f32 0.0, %v3516
        %v3518 = vpop.f32.mrf.mxu0
        %v3519 = vadd.f32 0.0, %v3518
        %3520 = vdwg.mxu0
        %v3523 = vunpack.c.l.b16 %v3482
        %v3524 = vunpack.c.l.b16 %v3483
        %v3525 = vpack.c.b16 %v3524, %v3523
        %3526 = vrot.lane.b32.xlu0 %v1422, 104
        %v3527 = vpop.permute.xlu0 %3526
        %v3530 = vsel %vm1176, %v3525, 0
        %3532 = vmatpush.bf16.msra.mxu0 0
        %3533 = vmatpush.bf16.msra.mxu0 0
        %3534 = vmatpush.bf16.msra.mxu0 0
        %3535 = vmatpush.bf16.msra.mxu0 0
        %3536 = vmatpush.bf16.msra.mxu0 0
        %3537 = vmatpush.bf16.msra.mxu0 0
        %3538 = vmatpush.bf16.msra.mxu0 0
        %3539 = vmatpush.bf16.msra.mxu0 %v3527
        %3540 = vmatmul.bf16.gmra.mxu0 %v3530
        %v3541 = vpop.f32.mrf.mxu0
        %v3542 = vadd.f32 0.0, %v3541
        %v3543 = vpop.f32.mrf.mxu0
        %v3544 = vadd.f32 0.0, %v3543
        %3545 = vdwg.mxu0
        %v3548 = vunpack.c.l.b16 %v3484
        %v3549 = vunpack.c.l.b16 %v3485
        %v3550 = vpack.c.b16 %v3549, %v3548
        %3551 = vrot.lane.b32.xlu0 %v1450, 104
        %v3552 = vpop.permute.xlu0 %3551
        %v3555 = vsel %vm1176, %v3550, 0
        %3557 = vmatpush.bf16.msra.mxu0 0
        %3558 = vmatpush.bf16.msra.mxu0 0
        %3559 = vmatpush.bf16.msra.mxu0 0
        %3560 = vmatpush.bf16.msra.mxu0 0
        %3561 = vmatpush.bf16.msra.mxu0 0
        %3562 = vmatpush.bf16.msra.mxu0 0
        %3563 = vmatpush.bf16.msra.mxu0 0
        %3564 = vmatpush.bf16.msra.mxu0 %v3552
        %3565 = vmatmul.bf16.gmra.mxu0 %v3555
        %v3566 = vpop.f32.mrf.mxu0
        %v3567 = vadd.f32 0.0, %v3566
        %v3568 = vpop.f32.mrf.mxu0
        %v3569 = vadd.f32 0.0, %v3568
        %3570 = vdwg.mxu0
        %v3573 = vunpack.c.l.b16 %v3486
        %v3574 = vunpack.c.l.b16 %v3487
        %v3575 = vpack.c.b16 %v3574, %v3573
        %3576 = vrot.lane.b32.xlu0 %v1478, 104
        %v3577 = vpop.permute.xlu0 %3576
        %v3580 = vsel %vm1176, %v3575, 0
        %3582 = vmatpush.bf16.msra.mxu0 0
        %3583 = vmatpush.bf16.msra.mxu0 0
        %3584 = vmatpush.bf16.msra.mxu0 0
        %3585 = vmatpush.bf16.msra.mxu0 0
        %3586 = vmatpush.bf16.msra.mxu0 0
        %3587 = vmatpush.bf16.msra.mxu0 0
        %3588 = vmatpush.bf16.msra.mxu0 0
        %3589 = vmatpush.bf16.msra.mxu0 %v3577
        %3590 = vmatmul.bf16.gmra.mxu0 %v3580
        %v3591 = vpop.f32.mrf.mxu0
        %v3592 = vadd.f32 0.0, %v3591
        %v3593 = vpop.f32.mrf.mxu0
        %v3594 = vadd.f32 0.0, %v3593
        %3595 = vdwg.mxu0
        %v3598 = vunpack.c.l.b16 %v3488
        %v3599 = vunpack.c.l.b16 %v3489
        %v3600 = vpack.c.b16 %v3599, %v3598
        %3601 = vrot.lane.b32.xlu0 %v1506, 104
        %v3602 = vpop.permute.xlu0 %3601
        %v3605 = vsel %vm1176, %v3600, 0
        %3607 = vmatpush.bf16.msra.mxu0 0
        %3608 = vmatpush.bf16.msra.mxu0 0
        %3609 = vmatpush.bf16.msra.mxu0 0
        %3610 = vmatpush.bf16.msra.mxu0 0
        %3611 = vmatpush.bf16.msra.mxu0 0
        %3612 = vmatpush.bf16.msra.mxu0 0
        %3613 = vmatpush.bf16.msra.mxu0 0
        %3614 = vmatpush.bf16.msra.mxu0 %v3602
        %3615 = vmatmul.bf16.gmra.mxu0 %v3605
        %v3616 = vpop.f32.mrf.mxu0
        %v3617 = vadd.f32 0.0, %v3616
        %v3618 = vpop.f32.mrf.mxu0
        %v3619 = vadd.f32 0.0, %v3618
        %3620 = vdwg.mxu0
        %v3623 = vunpack.c.l.b16 %v3490
        %v3624 = vunpack.c.l.b16 %v3491
        %v3625 = vpack.c.b16 %v3624, %v3623
        %3626 = vrot.lane.b32.xlu0 %v1534, 104
        %v3627 = vpop.permute.xlu0 %3626
        %v3630 = vsel %vm1176, %v3625, 0
        %3632 = vmatpush.bf16.msra.mxu0 0
        %3633 = vmatpush.bf16.msra.mxu0 0
        %3634 = vmatpush.bf16.msra.mxu0 0
        %3635 = vmatpush.bf16.msra.mxu0 0
        %3636 = vmatpush.bf16.msra.mxu0 0
        %3637 = vmatpush.bf16.msra.mxu0 0
        %3638 = vmatpush.bf16.msra.mxu0 0
        %3639 = vmatpush.bf16.msra.mxu0 %v3627
        %3640 = vmatmul.bf16.gmra.mxu0 %v3630
        %v3641 = vpop.f32.mrf.mxu0
        %v3642 = vadd.f32 0.0, %v3641
        %v3643 = vpop.f32.mrf.mxu0
        %v3644 = vadd.f32 0.0, %v3643
        %3645 = vdwg.mxu0
        %v3648 = vunpack.c.l.b16 %v3492
        %v3649 = vunpack.c.l.b16 %v3493
        %v3650 = vpack.c.b16 %v3649, %v3648
        %3651 = vrot.lane.b32.xlu0 %v1562, 104
        %v3652 = vpop.permute.xlu0 %3651
        %v3655 = vsel %vm1176, %v3650, 0
        %3657 = vmatpush.bf16.msra.mxu0 0
        %3658 = vmatpush.bf16.msra.mxu0 0
        %3659 = vmatpush.bf16.msra.mxu0 0
        %3660 = vmatpush.bf16.msra.mxu0 0
        %3661 = vmatpush.bf16.msra.mxu0 0
        %3662 = vmatpush.bf16.msra.mxu0 0
        %3663 = vmatpush.bf16.msra.mxu0 0
        %3664 = vmatpush.bf16.msra.mxu0 %v3652
        %3665 = vmatmul.bf16.gmra.mxu0 %v3655
        %v3666 = vpop.f32.mrf.mxu0
        %v3667 = vadd.f32 0.0, %v3666
        %v3668 = vpop.f32.mrf.mxu0
        %v3669 = vadd.f32 0.0, %v3668
        %3670 = vdwg.mxu0
        %v3673 = vunpack.c.l.b16 %v3494
        %v3674 = vunpack.c.l.b16 %v3495
        %v3675 = vpack.c.b16 %v3674, %v3673
        %3676 = vrot.lane.b32.xlu0 %v1590, 104
        %v3677 = vpop.permute.xlu0 %3676
        %v3680 = vsel %vm1176, %v3675, 0
        %3682 = vmatpush.bf16.msra.mxu0 0
        %3683 = vmatpush.bf16.msra.mxu0 0
        %3684 = vmatpush.bf16.msra.mxu0 0
        %3685 = vmatpush.bf16.msra.mxu0 0
        %3686 = vmatpush.bf16.msra.mxu0 0
        %3687 = vmatpush.bf16.msra.mxu0 0
        %3688 = vmatpush.bf16.msra.mxu0 0
        %3689 = vmatpush.bf16.msra.mxu0 %v3677
        %3690 = vmatmul.bf16.gmra.mxu0 %v3680
        %v3691 = vpop.f32.mrf.mxu0
        %v3692 = vadd.f32 0.0, %v3691
        %v3693 = vpop.f32.mrf.mxu0
        %v3694 = vadd.f32 0.0, %v3693
        %3695 = vdwg.mxu0
        %v3696 = vpack.c.bf16 %v3517, %v3517
        %v3697 = vpack.c.bf16 %v3519, %v3519
        %v3698 = vpack.c.bf16 %v3542, %v3542
        %v3699 = vpack.c.bf16 %v3544, %v3544
        %v3700 = vpack.c.bf16 %v3567, %v3567
        %v3701 = vpack.c.bf16 %v3569, %v3569
        %v3702 = vpack.c.bf16 %v3592, %v3592
        %v3703 = vpack.c.bf16 %v3594, %v3594
        %v3704 = vpack.c.bf16 %v3617, %v3617
        %v3705 = vpack.c.bf16 %v3619, %v3619
        %v3706 = vpack.c.bf16 %v3642, %v3642
        %v3707 = vpack.c.bf16 %v3644, %v3644
        %v3708 = vpack.c.bf16 %v3667, %v3667
        %v3709 = vpack.c.bf16 %v3669, %v3669
        %v3710 = vpack.c.bf16 %v3692, %v3692
        %v3711 = vpack.c.bf16 %v3694, %v3694
        %3728 = vrot.lane.b32.xlu0 %v3696, 24
        %v3729 = vpop.permute.xlu0 %3728
        %3730 = vrot.lane.b32.xlu0 %v3697, 24
        %v3731 = vpop.permute.xlu0 %3730
        %3732 = vrot.lane.b32.xlu0 %v3698, 24
        %v3733 = vpop.permute.xlu0 %3732
        %3734 = vrot.lane.b32.xlu0 %v3699, 24
        %v3735 = vpop.permute.xlu0 %3734
        %3736 = vrot.lane.b32.xlu0 %v3700, 24
        %v3737 = vpop.permute.xlu0 %3736
        %3738 = vrot.lane.b32.xlu0 %v3701, 24
        %v3739 = vpop.permute.xlu0 %3738
        %3740 = vrot.lane.b32.xlu0 %v3702, 24
        %v3741 = vpop.permute.xlu0 %3740
        %3742 = vrot.lane.b32.xlu0 %v3703, 24
        %v3743 = vpop.permute.xlu0 %3742
        %3744 = vrot.lane.b32.xlu0 %v3704, 24
        %v3745 = vpop.permute.xlu0 %3744
        %3746 = vrot.lane.b32.xlu0 %v3705, 24
        %v3747 = vpop.permute.xlu0 %3746
        %3748 = vrot.lane.b32.xlu0 %v3706, 24
        %v3749 = vpop.permute.xlu0 %3748
        %3750 = vrot.lane.b32.xlu0 %v3707, 24
        %v3751 = vpop.permute.xlu0 %3750
        %3752 = vrot.lane.b32.xlu0 %v3708, 24
        %v3753 = vpop.permute.xlu0 %3752
        %3754 = vrot.lane.b32.xlu0 %v3709, 24
        %v3755 = vpop.permute.xlu0 %3754
        %3756 = vrot.lane.b32.xlu0 %v3710, 24
        %v3757 = vpop.permute.xlu0 %3756
        %3758 = vrot.lane.b32.xlu0 %v3711, 24
        %v3759 = vpop.permute.xlu0 %3758
        %vm3776 = vcmask 257216
        %3777 = vst.msk [vmem:[#allocation2] sm:$0xf] %vm3776, %v3729
        %3778 = vst.msk [vmem:[#allocation2 + $0x4] sm:$0xf] %vm3776, %v3731
        %3779 = vst.msk [vmem:[#allocation2 + $0x8] sm:$0xf] %vm3776, %v3733
        %3780 = vst.msk [vmem:[#allocation2 + $0xc] sm:$0xf] %vm3776, %v3735
        %3781 = vst.msk [vmem:[#allocation2 + $0x10] sm:$0xf] %vm3776, %v3737
        %3782 = vst.msk [vmem:[#allocation2 + $0x14] sm:$0xf] %vm3776, %v3739
        %3783 = vst.msk [vmem:[#allocation2 + $0x18] sm:$0xf] %vm3776, %v3741
        %3784 = vst.msk [vmem:[#allocation2 + $0x1c] sm:$0xf] %vm3776, %v3743
        %3785 = vst.msk [vmem:[#allocation2 + $0x20] sm:$0xf] %vm3776, %v3745
        %3786 = vst.msk [vmem:[#allocation2 + $0x24] sm:$0xf] %vm3776, %v3747
        %3787 = vst.msk [vmem:[#allocation2 + $0x28] sm:$0xf] %vm3776, %v3749
        %3788 = vst.msk [vmem:[#allocation2 + $0x2c] sm:$0xf] %vm3776, %v3751
        %3789 = vst.msk [vmem:[#allocation2 + $0x30] sm:$0xf] %vm3776, %v3753
        %3790 = vst.msk [vmem:[#allocation2 + $0x34] sm:$0xf] %vm3776, %v3755
        %3791 = vst.msk [vmem:[#allocation2 + $0x38] sm:$0xf] %vm3776, %v3757
        %3792 = vst.msk [vmem:[#allocation2 + $0x3c] sm:$0xf] %vm3776, %v3759
        %v3793 = vld [vmem:[#allocation2] sm:$0xf]
        %v3794 = vld [vmem:[#allocation2 + $0x4] sm:$0xf]
        %v3795 = vld [vmem:[#allocation2 + $0x8] sm:$0xf]
        %v3796 = vld [vmem:[#allocation2 + $0xc] sm:$0xf]
        %v3797 = vld [vmem:[#allocation2 + $0x10] sm:$0xf]
        %v3798 = vld [vmem:[#allocation2 + $0x14] sm:$0xf]
        %v3799 = vld [vmem:[#allocation2 + $0x18] sm:$0xf]
        %v3800 = vld [vmem:[#allocation2 + $0x1c] sm:$0xf]
        %v3801 = vld [vmem:[#allocation2 + $0x20] sm:$0xf]
        %v3802 = vld [vmem:[#allocation2 + $0x24] sm:$0xf]
        %v3803 = vld [vmem:[#allocation2 + $0x28] sm:$0xf]
        %v3804 = vld [vmem:[#allocation2 + $0x2c] sm:$0xf]
        %v3805 = vld [vmem:[#allocation2 + $0x30] sm:$0xf]
        %v3806 = vld [vmem:[#allocation2 + $0x34] sm:$0xf]
        %v3807 = vld [vmem:[#allocation2 + $0x38] sm:$0xf]
        %v3808 = vld [vmem:[#allocation2 + $0x3c] sm:$0xf]
        %v3809 = vld [vmem:[#allocation14] sm:$0xf]
        %v3810 = vld [vmem:[#allocation14 + $0x4] sm:$0xf]
        %v3811 = vld [vmem:[#allocation14 + $0x8] sm:$0xf]
        %v3812 = vld [vmem:[#allocation14 + $0xc] sm:$0xf]
        %v3813 = vld [vmem:[%s10] sm:$0x1]
        %v3815 = vperm.slane %v3813, 0
        %v3833 = vunpack.c.l.b16 %v3793
        %v3834 = vunpack.c.l.b16 %v3794
        %v3835 = vunpack.c.l.b16 %v3795
        %v3836 = vunpack.c.l.b16 %v3796
        %v3837 = vunpack.c.l.b16 %v3797
        %v3838 = vunpack.c.l.b16 %v3798
        %v3839 = vunpack.c.l.b16 %v3799
        %v3840 = vunpack.c.l.b16 %v3800
        %v3841 = vunpack.c.l.b16 %v3801
        %v3842 = vunpack.c.l.b16 %v3802
        %v3843 = vunpack.c.l.b16 %v3803
        %v3844 = vunpack.c.l.b16 %v3804
        %v3845 = vunpack.c.l.b16 %v3805
        %v3846 = vunpack.c.l.b16 %v3806
        %v3847 = vunpack.c.l.b16 %v3807
        %v3848 = vunpack.c.l.b16 %v3808
        %v3849 = vpack.c.b16 %v3834, %v3833
        %v3850 = vpack.c.b16 %v3836, %v3835
        %v3851 = vpack.c.b16 %v3838, %v3837
        %v3852 = vpack.c.b16 %v3840, %v3839
        %v3853 = vpack.c.b16 %v3842, %v3841
        %v3854 = vpack.c.b16 %v3844, %v3843
        %v3855 = vpack.c.b16 %v3846, %v3845
        %v3856 = vpack.c.b16 %v3848, %v3847
        %v3861 = vunpack.c.l.b16 %v3809
        %v3862 = vunpack.c.l.b16 %v3810
        %v3863 = vunpack.c.l.b16 %v3811
        %v3864 = vunpack.c.l.b16 %v3812
        %v3865 = vpack.c.b16 %v3862, %v3861
        %v3866 = vpack.c.b16 %v3864, %v3863
        %v3870 = vsel %vm641, %v3849, 0
        %v3873 = vsel %vm641, %v3850, 0
        %v3876 = vsel %vm641, %v3851, 0
        %v3879 = vsel %vm641, %v3852, 0
        %v3882 = vsel %vm641, %v3853, 0
        %v3885 = vsel %vm641, %v3854, 0
        %v3888 = vsel %vm641, %v3855, 0
        %v3891 = vsel %vm641, %v3856, 0
        %3893 = vmatpush.bf16.msra.mxu0 0
        %3894 = vmatpush.bf16.msra.mxu0 0
        %3895 = vmatpush.bf16.msra.mxu0 0
        %3896 = vmatpush.bf16.msra.mxu0 0
        %3897 = vmatpush.bf16.msra.mxu0 0
        %3898 = vmatpush.bf16.msra.mxu0 0
        %3899 = vmatpush.bf16.msra.mxu0 %v3866
        %3900 = vmatpush.bf16.msra.mxu0 %v3865
        %3901 = vmatmul.bf16.gmra.mxu0 %v3870
        %v3902 = vpop.f32.mrf.mxu0
        %v3903 = vadd.f32 %v3815, %v3902
        %v3904 = vpop.f32.mrf.mxu0
        %v3905 = vadd.f32 %v3815, %v3904
        %3906 = vmatmul.bf16.gmra.mxu0 %v3873
        %v3907 = vpop.f32.mrf.mxu0
        %v3908 = vadd.f32 %v3815, %v3907
        %v3909 = vpop.f32.mrf.mxu0
        %v3910 = vadd.f32 %v3815, %v3909
        %3911 = vmatmul.bf16.gmra.mxu0 %v3876
        %v3912 = vpop.f32.mrf.mxu0
        %v3913 = vadd.f32 %v3815, %v3912
        %v3914 = vpop.f32.mrf.mxu0
        %v3915 = vadd.f32 %v3815, %v3914
        %3916 = vmatmul.bf16.gmra.mxu0 %v3879
        %v3917 = vpop.f32.mrf.mxu0
        %v3918 = vadd.f32 %v3815, %v3917
        %v3919 = vpop.f32.mrf.mxu0
        %v3920 = vadd.f32 %v3815, %v3919
        %3921 = vmatmul.bf16.gmra.mxu0 %v3882
        %v3922 = vpop.f32.mrf.mxu0
        %v3923 = vadd.f32 %v3815, %v3922
        %v3924 = vpop.f32.mrf.mxu0
        %v3925 = vadd.f32 %v3815, %v3924
        %3926 = vmatmul.bf16.gmra.mxu0 %v3885
        %v3927 = vpop.f32.mrf.mxu0
        %v3928 = vadd.f32 %v3815, %v3927
        %v3929 = vpop.f32.mrf.mxu0
        %v3930 = vadd.f32 %v3815, %v3929
        %3931 = vmatmul.bf16.gmra.mxu0 %v3888
        %v3932 = vpop.f32.mrf.mxu0
        %v3933 = vadd.f32 %v3815, %v3932
        %v3934 = vpop.f32.mrf.mxu0
        %v3935 = vadd.f32 %v3815, %v3934
        %3936 = vmatmul.bf16.gmra.mxu0 %v3891
        %v3937 = vpop.f32.mrf.mxu0
        %v3938 = vadd.f32 %v3815, %v3937
        %v3939 = vpop.f32.mrf.mxu0
        %v3940 = vadd.f32 %v3815, %v3939
        %3941 = vdwg.mxu0
        %3942 = vst.msk [vmem:[%s537] sm:$0xff] %vm641, %v3903
        %3943 = vst.msk [vmem:[%s537 + $0x8] sm:$0xff] %vm641, %v3905
        %3944 = vst.msk [vmem:[%s537 + $0x10] sm:$0xff] %vm641, %v3908
        %3945 = vst.msk [vmem:[%s537 + $0x18] sm:$0xff] %vm641, %v3910
        %3946 = vst.msk [vmem:[%s537 + $0x20] sm:$0xff] %vm641, %v3913
        %3947 = vst.msk [vmem:[%s537 + $0x28] sm:$0xff] %vm641, %v3915
        %3948 = vst.msk [vmem:[%s537 + $0x30] sm:$0xff] %vm641, %v3918
        %3949 = vst.msk [vmem:[%s537 + $0x38] sm:$0xff] %vm641, %v3920
        %3950 = vst.msk [vmem:[%s537 + $0x40] sm:$0xff] %vm641, %v3923
        %3951 = vst.msk [vmem:[%s537 + $0x48] sm:$0xff] %vm641, %v3925
        %3952 = vst.msk [vmem:[%s537 + $0x50] sm:$0xff] %vm641, %v3928
        %3953 = vst.msk [vmem:[%s537 + $0x58] sm:$0xff] %vm641, %v3930
        %3954 = vst.msk [vmem:[%s537 + $0x60] sm:$0xff] %vm641, %v3933
        %3955 = vst.msk [vmem:[%s537 + $0x68] sm:$0xff] %vm641, %v3935
        %3956 = vst.msk [vmem:[%s537 + $0x70] sm:$0xff] %vm641, %v3938
        %3957 = vst.msk [vmem:[%s537 + $0x78] sm:$0xff] %vm641, %v3940
        %s3958 = sand.u32 %s280, 1
        %s3959 = scalar_lea.sflag [#allocation5], %s3958
        %s3960 = sand.u32 %s280, 1
        %s3961 = smul.addr %s3960, 128
        %s3962 = scalar_lea.vmem [#allocation15], %s3961
        %s3963 = sand.u32 %s306, 1
        %s3964 = scalar_lea.sflag [#allocation17], %s3963
        %s3965 = sand.u32 %s306, 1
        %s3966 = smul.addr %s3965, 512
        %s3967 = scalar_lea.vmem [#allocation16], %s3966
        // Predicated region
        $region93: #{tpu_custom_call.1} parent=63 // pred_check
          %p3968 = pneg %p290
        $region94: #{tpu_custom_call.1} parent=63 // pred_check_branch
          %3970 = sbr.rel (%p3968) target = $region96
        $region95: #{tpu_custom_call.1} parent=63 // pred_region
          %s3971 = smul.u32 8, %s36
          %3973 = vsyncadd %s3959, 0
          %s3974 = smul.addr %s3971, 2
          %s3975 = smul.addr %s3974, 8
          %s3976 = scalar_lea.hbm %s11, %s3975
          %s3977 = sshll.u32 %s3962, 4
          %s3978 = int_to_ptr.vmem [resolvable:$true] %s3977
          %s3979 = sshll.u32 %s3976, 4
          %s3980 = int_to_ptr.hbm [resolvable:$true] %s3979
          %3985 = dma.vmem_to_hbm [thread:$0]  %s3978, 2048, %s3980, %s3959, 128, 128, 8
        $region96: #{tpu_custom_call.1} parent=63 // pred_fallthru
          _
        // Predicated region
        $region97: #{tpu_custom_call.1} parent=63 // pred_check
          %p3986 = pneg %p316
        $region98: #{tpu_custom_call.1} parent=63 // pred_check_branch
          %3988 = sbr.rel (%p3986) target = $region100
        $region99: #{tpu_custom_call.1} parent=63 // pred_region
          %s3989 = smul.u32 8, %s36
          %3991 = vsyncadd %s3964, 0
          %s3992 = smul.addr %s3989, 8
          %s3993 = smul.addr %s3992, 8
          %s3994 = scalar_lea.hbm %s12, %s3993
          %s3995 = sshll.u32 %s3967, 4
          %s3996 = int_to_ptr.vmem [resolvable:$true] %s3995
          %s3997 = sshll.u32 %s3994, 4
          %s3998 = int_to_ptr.hbm [resolvable:$true] %s3997
          %4003 = dma.vmem_to_hbm [thread:$0]  %s3996, 8192, %s3998, %s3964, 128, 128, 8
        $region100: #{tpu_custom_call.1} parent=63 // pred_fallthru
          _
      $region64: #{tpu_custom_call.1} parent=5 // pred_fallthru
        _
      %p4004 = scmp.le.s32.totalorder 2, %s31
      // Predicated region
      $region101: #{tpu_custom_call.1} parent=5 // pred_check
        %p4005 = pneg %p4004
      $region102: #{tpu_custom_call.1} parent=5 // pred_check_branch
        %4007 = sbr.rel (%p4005) target = $region104
      $region103: #{tpu_custom_call.1} parent=5 // pred_region
        %s4008 = ssub.s32 %s31, 2
        // Predicated region
        $region105: #{tpu_custom_call.1} parent=103 // pred_check
          %p4009 = pneg %p296
        $region106: #{tpu_custom_call.1} parent=103 // pred_check_branch
          %4011 = sbr.rel (%p4009) target = $region108
        $region107: #{tpu_custom_call.1} parent=103 // pred_region
          %s4012 = sand.u32 %s281, 1
          %s4013 = scalar_lea.sflag [#allocation5], %s4012
          %s4014 = sand.u32 %s281, 1
          %s4015 = smul.addr %s4014, 128
          %s4016 = scalar_lea.vmem [#allocation15], %s4015
          %4018 = dma.done %s4013, 2048
        $region108: #{tpu_custom_call.1} parent=103 // pred_fallthru
          _
        // Predicated region
        $region109: #{tpu_custom_call.1} parent=103 // pred_check
          %p4019 = pneg %p322
        $region110: #{tpu_custom_call.1} parent=103 // pred_check_branch
          %4021 = sbr.rel (%p4019) target = $region112
        $region111: #{tpu_custom_call.1} parent=103 // pred_region
          %s4022 = sand.u32 %s307, 1
          %s4023 = scalar_lea.sflag [#allocation17], %s4022
          %s4024 = sand.u32 %s307, 1
          %s4025 = smul.addr %s4024, 512
          %s4026 = scalar_lea.vmem [#allocation16], %s4025
          %4028 = dma.done %s4023, 8192
        $region112: #{tpu_custom_call.1} parent=103 // pred_fallthru
          _
      $region104: #{tpu_custom_call.1} parent=5 // pred_fallthru
        _
    $region6: #{tpu_custom_call.1} parent=1 // loop_footer
      %s35 = sadd.s32 1, %s31
    $region7: #{tpu_custom_call.1} parent=1 // loop_footer_branch
      %30 = sbr.rel target = $region3
    $region8: #{tpu_custom_call.1} parent=1 // loop_exit
      _
    %4029 = vsyncpa [#allocation4], 1
    %s4030 = scalar_lea.sflag [#allocation4], 1
    %4031 = vsyncpa %s4030, 1
    %4032 = vsyncpa [#allocation7], 1
    %4033 = vsyncpa [#allocation10], 1
    %4034 = vsyncpa [#allocation13], 1
    %4035 = vsyncpa [#allocation5], 1
    %s4036 = scalar_lea.sflag [#allocation5], 1
    %4037 = vsyncpa %s4036, 1
    %4038 = vsyncpa [#allocation17], 1
    %s4039 = scalar_lea.sflag [#allocation17], 1
    %4040 = vsyncpa %s4039, 1

</llo_original>
